<compile_context>
chip_gen: v7x
topology: tpu7x:2x2x1
jax: 0.10.0
libtpu: 0.0.40
codegen_flags: <defaults>
</compile_context>

<pallas_src>
import jax
import jax.numpy as jnp
import numpy as np
from jax.experimental import pallas as pl
from jax.experimental.pallas import tpu as pltpu

_SUB = 8
_LANE = 128
_BLOCK_ROWS = 1024                         # (1024,128) f32 tile = 512 KiB per input
_NUM_CORES = 2                             # leading "parallel" grid axis
_CHUNK = _NUM_CORES * _BLOCK_ROWS * _LANE  # padding granularity in elements
# softplus(-1e4) == 0 and sigmoid(-1e4) == 0 exactly in f32 -> padded elements
# contribute exactly zero to both reductions.
_PAD_VALUE = -1.0e4


def _miss_kernel(p_ref, q_ref, o_ref):
    """Accumulate per-core (8,128) partial sums over all node pairs of
         term_p = p*sigmoid(q) - softplus(p)
         term_q = q*sigmoid(q) - softplus(q)
    o_ref block is (2, 8, 128): row 0 -> term_p partials, row 1 -> term_q partials.
    """
    @pl.when(pl.program_id(1) == 0)
    def _():
        o_ref[...] = jnp.zeros_like(o_ref)

    p = p_ref[...].astype(jnp.float32)
    q = q_ref[...].astype(jnp.float32)

    # numerically-stable softplus and sigmoid sharing exp(-|x|); 5 EUP ops/element
    e_p = jnp.exp(-jnp.abs(p))
    e_q = jnp.exp(-jnp.abs(q))
    sp_p = jnp.maximum(p, 0.0) + jnp.log1p(e_p)     # softplus(p)
    sp_q = jnp.maximum(q, 0.0) + jnp.log1p(e_q)     # softplus(q)
    sig_q = jnp.exp(q - sp_q)                       # sigmoid(q) (exact, EUP slot)

    term_p = p * sig_q - sp_p
    term_q = q * sig_q - sp_q

    # reduce the (BLOCK_ROWS, 128) tile to one (8, 128) vreg tile (VPU tree adds)
    o_ref[0] += jnp.sum(term_p.reshape(-1, _SUB, _LANE), axis=0)
    o_ref[1] += jnp.sum(term_q.reshape(-1, _SUB, _LANE), axis=0)


def _pad_to_chunks(x):
    """Pad a 1-D array with the zero-contribution sentinel to a multiple of
    _CHUNK elements and reshape to (rows, 128) with the lane axis last."""
    n = x.shape[0]
    padded = max(_CHUNK, ((n + _CHUNK - 1) // _CHUNK) * _CHUNK)
    x = jnp.pad(x, (0, padded - n), constant_values=_PAD_VALUE)
    return x.reshape(padded // _LANE, _LANE)


def _all_pairs_sums(p_flat, q_flat):
    """Pallas hot path: returns (sum_p_all, sum_q_all) over ALL entries of
    p_flat/q_flat (padding contributes exactly zero)."""
    p2 = _pad_to_chunks(p_flat)
    q2 = _pad_to_chunks(q_flat)
    total_rows = p2.shape[0]
    bpc = total_rows // (_NUM_CORES * _BLOCK_ROWS)      # blocks per core, >= 1

    in_spec = pl.BlockSpec((_BLOCK_ROWS, _LANE), lambda c, j: (c * bpc + j, 0))
    out = pl.pallas_call(
        _miss_kernel,
        out_shape=jax.ShapeDtypeStruct((2 * _NUM_CORES, _SUB, _LANE), jnp.float32),
        grid_spec=pltpu.PrefetchScalarGridSpec(
            num_scalar_prefetch=0,
            grid=(_NUM_CORES, bpc),
            in_specs=[in_spec, in_spec],
            out_specs=pl.BlockSpec((2, _SUB, _LANE), lambda c, j: (c, 0, 0)),
        ),
        compiler_params=pltpu.CompilerParams(
            dimension_semantics=("parallel", "arbitrary")),
    )(p2, q2)
    # tiny final reduction of the resident accumulators: (NUM_CORES, 2, 8, 128)
    sums = jnp.sum(out.reshape(_NUM_CORES, 2, _SUB, _LANE), axis=(0, 2, 3))
    return sums[0], sums[1]


def _softplus(x):
    return jnp.maximum(x, 0.0) + jnp.log1p(jnp.exp(-jnp.abs(x)))


def _miss_terms(p, q):
    """Same math as the kernel body (for the per-edge corrections in glue)."""
    sp_p = _softplus(p)
    sp_q = _softplus(q)
    sig_q = jnp.exp(q - sp_q)
    return p * sig_q - sp_p, q * sig_q - sp_q


def elbo_lp_loss(num_nodes, p_a, q_a, edge_index, edge_label, weight):
    num_pairs = num_nodes * num_nodes
    p_flat = p_a.reshape(-1)                      # keep producer dtype (bf16 stays bf16)
    q_flat = q_a.reshape(-1)
    edge_flat = (edge_index[0].astype(jnp.int32) * num_nodes
                 + edge_index[1].astype(jnp.int32))
    edge_label = edge_label.astype(jnp.int32)

    # --- hot path (Pallas): sums of the two miss-terms over ALL num_nodes**2 pairs
    sum_p_all, sum_q_all = _all_pairs_sums(p_flat, q_flat)

    # --- glue (O(num_edges), plain JAX): gathers, scatter-free dedup, observed NLL
    p_obs = jnp.take(p_flat, edge_flat).astype(jnp.float32)
    q_obs = jnp.take(q_flat, edge_flat).astype(jnp.float32)

    # subtract the contributions of the UNIQUE edge positions from the all-pairs
    # sums (matches the reference's scatter-based mask which dedups duplicates)
    order = jnp.argsort(edge_flat)
    sorted_idx = edge_flat[order]
    is_first = jnp.concatenate(
        [jnp.ones((1,), dtype=bool), sorted_idx[1:] != sorted_idx[:-1]])
    term_p_e, term_q_e = _miss_terms(p_obs[order], q_obs[order])
    sum_p_edge = jnp.sum(jnp.where(is_first, term_p_e, 0.0))
    sum_q_edge = jnp.sum(jnp.where(is_first, term_q_e, 0.0))
    n_miss = (num_pairs - jnp.sum(is_first)).astype(jnp.float32)

    sum_p_miss = sum_p_all - sum_p_edge
    sum_q_miss = sum_q_all - sum_q_edge
    # torch.mean over an (n_miss, 2) tensor -> divide by 2*n_miss
    mean_p_miss = sum_p_miss / (2.0 * n_miss)
    mean_q_miss = sum_q_miss / (2.0 * n_miss)

    # observed-edge weighted NLL (tiny; XLA fuses this into the gathers)
    sp_p_obs = _softplus(p_obs)
    sp_q_obs = _softplus(q_obs)
    is1 = edge_label == 1
    logp_y = jnp.where(is1, p_obs - sp_p_obs, -sp_p_obs)   # log_softmax([0,p])[:, label]
    logq_y = jnp.where(is1, q_obs - sp_q_obs, -sp_q_obs)
    w_e = jnp.take(weight.astype(jnp.float32), edge_label)
    w_den = jnp.sum(w_e)                 # NOTE: NaN if no edges / all-zero weights, same as reference
    nll_p = jnp.sum(-w_e * logp_y) / w_den
    nll_q = jnp.sum(-w_e * logq_y) / w_den

    loss_p_a = nll_p - mean_p_miss
    loss_q_a = mean_q_miss
    loss_a_obs = 10.0 * nll_q
    return loss_p_a + loss_q_a + loss_a_obs


def _reference_numpy(num_nodes, p_a, q_a, edge_index, edge_label, weight):
    """Straight numpy mirror of the PyTorch forward (for verification)."""
    p = np.asarray(p_a, np.float64).reshape(-1)
    q = np.asarray(q_a, np.float64).reshape(-1)
    ei = np.asarray(edge_index)
    idx = ei[0] * num_nodes + ei[1]
    lab = np.asarray(edge_label)
    w = np.asarray(weight, np.float64)

    mask = np.zeros_like(q)
    mask[idx] = 1.0

    def log_softmax2(x):
        z = np.stack([np.zeros_like(x), x], axis=1)
        m = z.max(axis=1, keepdims=True)
        return z - (m + np.log(np.exp(z - m).sum(axis=1, keepdims=True)))

    logp = log_softmax2(p)
    logq = log_softmax2(q)
    logp_obs = logp[idx]
    logq_obs = logq[idx]
    logp_miss = logp[mask == 0]
    logq_miss = logq[mask == 0]
    q_miss = np.exp(logq_miss)

    w_e = w[lab]
    ar = np.arange(len(lab))
    nll_p = np.sum(-w_e * logp_obs[ar, lab]) / np.sum(w_e)
    nll_q = np.sum(-w_e * logq_obs[ar, lab]) / np.sum(w_e)

    loss_p_a = nll_p - np.mean(logp_miss * q_miss)
    loss_q_a = np.mean(q_miss * logq_miss)
    loss_a_obs = 10.0 * nll_q
    return loss_p_a + loss_q_a + loss_a_obs


if __name__ == "__main__":
    key = jax.random.PRNGKey(0)
    k1, k2, k3, k4 = jax.random.split(key, 4)

    num_nodes = 16
    num_edges = 10
    p_a = jax.random.normal(k1, (num_nodes, num_nodes), jnp.float32)
    q_a = jax.random.normal(k2, (num_nodes, num_nodes), jnp.float32)
    edge_index = jax.random.randint(k3, (2, num_edges), 0, num_nodes, jnp.int32)
    # force a duplicate edge to exercise the scatter-free dedup path
    edge_index = edge_index.at[:, -1].set(edge_index[:, 0])
    edge_label = jax.random.randint(k4, (num_edges,), 0, 2, jnp.int32)
    weight = jnp.array([1.0, 2.0], jnp.float32)  # nll_loss class weights (loss input)

    loss = elbo_lp_loss(num_nodes, p_a, q_a, edge_index, edge_label, weight)
    loss = jax.block_until_ready(loss)

    ref = _reference_numpy(num_nodes, p_a, q_a, edge_index, edge_label, weight)
    np.testing.assert_allclose(float(loss), float(ref), rtol=1e-4, atol=1e-4)
    print("KERNEL_OK")
</pallas_src>

<mosaic_0001>
module attributes {stable_mosaic.version = 11 : i64} {
  func.func @_miss_kernel(%arg0: i32, %arg1: i32, %arg2: memref<1024x128xf32, #tpu.memory_space<vmem>>, %arg3: memref<1024x128xf32, #tpu.memory_space<vmem>>, %arg4: memref<2x8x128xf32, #tpu.memory_space<vmem>>) attributes {dimension_semantics = [#tpu.dimension_semantics<parallel>, #tpu.dimension_semantics<arbitrary>], iteration_bounds = array<i64: 2, 1>, scalar_prefetch = 0 : i64, scratch_operands = 0 : i64, tpu.core_type = #tpu.core_type<tc>, window_params = [{transform_indices = @transform_0, window_bounds = array<i64: 1024, 128>}, {transform_indices = @transform_1, window_bounds = array<i64: 1024, 128>}, {transform_indices = @transform_2, window_bounds = array<i64: 2, 8, 128>}]} {
    %c0_i32 = arith.constant 0 : i32
    %0 = arith.cmpi eq, %arg1, %c0_i32 : i32
    %1 = arith.extui %0 : i1 to i32
    %c0_i32_0 = arith.constant 0 : i32
    %2 = arith.cmpi ne, %1, %c0_i32_0 : i32
    scf.if %2 {
      %cst_20 = arith.constant 0.000000e+00 : f32
      %43 = vector.broadcast %cst_20 : f32 to vector<2x8x128xf32>
      %c0_21 = arith.constant 0 : index
      %c0_22 = arith.constant 0 : index
      %c0_23 = arith.constant 0 : index
      %44 = vector.load %arg4[%c0_21, %c0_22, %c0_23] : memref<2x8x128xf32, #tpu.memory_space<vmem>>, vector<2x8x128xf32>
      tpu.vector_store %arg4[%c0_21, %c0_22, %c0_23], %43 {strides = array<i32>} : memref<2x8x128xf32, #tpu.memory_space<vmem>>, vector<2x8x128xf32>,
    } else {
    }
    %c0 = arith.constant 0 : index
    %c0_1 = arith.constant 0 : index
    %3 = vector.load %arg2[%c0, %c0_1] : memref<1024x128xf32, #tpu.memory_space<vmem>>, vector<1024x128xf32>
    %c0_2 = arith.constant 0 : index
    %c0_3 = arith.constant 0 : index
    %4 = vector.load %arg3[%c0_2, %c0_3] : memref<1024x128xf32, #tpu.memory_space<vmem>>, vector<1024x128xf32>
    %5 = math.absf %3 : vector<1024x128xf32>
    %cst = arith.constant 0.000000e+00 : f32
    %6 = vector.broadcast %cst : f32 to vector<1024x128xf32>
    %7 = arith.subf %6, %5 : vector<1024x128xf32>
    %8 = math.exp %7 : vector<1024x128xf32>
    %9 = math.absf %4 : vector<1024x128xf32>
    %cst_4 = arith.constant 0.000000e+00 : f32
    %10 = vector.broadcast %cst_4 : f32 to vector<1024x128xf32>
    %11 = arith.subf %10, %9 : vector<1024x128xf32>
    %12 = math.exp %11 : vector<1024x128xf32>
    %cst_5 = arith.constant 0.000000e+00 : f32
    %13 = vector.broadcast %cst_5 : f32 to vector<1024x128xf32>
    %14 = arith.maximumf %3, %13 : vector<1024x128xf32>
    %15 = math.log1p %8 : vector<1024x128xf32>
    %16 = arith.addf %14, %15 : vector<1024x128xf32>
    %cst_6 = arith.constant 0.000000e+00 : f32
    %17 = vector.broadcast %cst_6 : f32 to vector<1024x128xf32>
    %18 = arith.maximumf %4, %17 : vector<1024x128xf32>
    %19 = math.log1p %12 : vector<1024x128xf32>
    %20 = arith.addf %18, %19 : vector<1024x128xf32>
    %21 = arith.subf %4, %20 : vector<1024x128xf32>
    %22 = math.exp %21 : vector<1024x128xf32>
    %23 = arith.mulf %3, %22 : vector<1024x128xf32>
    %24 = arith.subf %23, %16 : vector<1024x128xf32>
    %25 = arith.mulf %4, %22 : vector<1024x128xf32>
    %26 = arith.subf %25, %20 : vector<1024x128xf32>
    %c0_7 = arith.constant 0 : index
    %c0_8 = arith.constant 0 : index
    %c0_9 = arith.constant 0 : index
    %27 = vector.load %arg4[%c0_7, %c0_8, %c0_9] : memref<2x8x128xf32, #tpu.memory_space<vmem>>, vector<1x8x128xf32>
    %28 = vector.shape_cast %27 : vector<1x8x128xf32> to vector<8x128xf32>
    %29 = vector.shape_cast %24 : vector<1024x128xf32> to vector<128x8x128xf32>
    %cst_10 = arith.constant dense<0.000000e+00> : vector<8x128xf32>
    %30 = vector.multi_reduction <add>, %29, %cst_10 [0] : vector<128x8x128xf32> to vector<8x128xf32>
    %31 = arith.addf %28, %30 : vector<8x128xf32>
    %c0_11 = arith.constant 0 : index
    %c0_12 = arith.constant 0 : index
    %c0_13 = arith.constant 0 : index
    %32 = vector.load %arg4[%c0_11, %c0_12, %c0_13] : memref<2x8x128xf32, #tpu.memory_space<vmem>>, vector<1x8x128xf32>
    %33 = vector.shape_cast %32 : vector<1x8x128xf32> to vector<8x128xf32>
    %34 = vector.shape_cast %31 : vector<8x128xf32> to vector<1x8x128xf32>
    tpu.vector_store %arg4[%c0_11, %c0_12, %c0_13], %34 {strides = array<i32>} : memref<2x8x128xf32, #tpu.memory_space<vmem>>, vector<1x8x128xf32>,
    %c1 = arith.constant 1 : index
    %c0_14 = arith.constant 0 : index
    %c0_15 = arith.constant 0 : index
    %35 = vector.load %arg4[%c1, %c0_14, %c0_15] : memref<2x8x128xf32, #tpu.memory_space<vmem>>, vector<1x8x128xf32>
    %36 = vector.shape_cast %35 : vector<1x8x128xf32> to vector<8x128xf32>
    %37 = vector.shape_cast %26 : vector<1024x128xf32> to vector<128x8x128xf32>
    %cst_16 = arith.constant dense<0.000000e+00> : vector<8x128xf32>
    %38 = vector.multi_reduction <add>, %37, %cst_16 [0] : vector<128x8x128xf32> to vector<8x128xf32>
    %39 = arith.addf %36, %38 : vector<8x128xf32>
    %c1_17 = arith.constant 1 : index
    %c0_18 = arith.constant 0 : index
    %c0_19 = arith.constant 0 : index
    %40 = vector.load %arg4[%c1_17, %c0_18, %c0_19] : memref<2x8x128xf32, #tpu.memory_space<vmem>>, vector<1x8x128xf32>
    %41 = vector.shape_cast %40 : vector<1x8x128xf32> to vector<8x128xf32>
    %42 = vector.shape_cast %39 : vector<8x128xf32> to vector<1x8x128xf32>
    tpu.vector_store %arg4[%c1_17, %c0_18, %c0_19], %42 {strides = array<i32>} : memref<2x8x128xf32, #tpu.memory_space<vmem>>, vector<1x8x128xf32>,
    return
  }
  func.func @transform_0(%arg0: i32, %arg1: i32) -> (i32, i32) {
    %c1_i32 = arith.constant 1 : i32
    %0 = arith.muli %arg0, %c1_i32 : i32
    %1 = arith.addi %0, %arg1 : i32
    %c0_i32 = arith.constant 0 : i32
    %c0_i32_0 = arith.constant 0 : i32
    return %1, %c0_i32 : i32, i32
  }
  func.func @transform_1(%arg0: i32, %arg1: i32) -> (i32, i32) {
    %c1_i32 = arith.constant 1 : i32
    %0 = arith.muli %arg0, %c1_i32 : i32
    %1 = arith.addi %0, %arg1 : i32
    %c0_i32 = arith.constant 0 : i32
    %c0_i32_0 = arith.constant 0 : i32
    return %1, %c0_i32 : i32, i32
  }
  func.func @transform_2(%arg0: i32, %arg1: i32) -> (i32, i32, i32) {
    %c0_i32 = arith.constant 0 : i32
    %c0_i32_0 = arith.constant 0 : i32
    %c0_i32_1 = arith.constant 0 : i32
    return %arg0, %c0_i32, %c0_i32_0 : i32, i32, i32
  }
}

</mosaic_0001>

<llo_original>
// kernel: tpu_custom_call.1
$region0: #{tpu_custom_call.1}
  #allocation0 [shape = 'u32[]', space=smem, size = 0x4, offset = 0x4, fixed_abs, tag = 'smem constant byte address 0x4 - core index']
  #allocation1 [shape = 'u32[144,128]{1,0:T(1,128)}', space=vmem, size = 0x12000, scoped, tag = 'internal scratch']
  %s0 = inlined_call_operand.hbm [shape: f32[2048,128], index: 0, kind: input, shape index: {}]
  %s1 = inlined_call_operand.hbm [shape: f32[2048,128], index: 1, kind: input, shape index: {}]
  %s2 = inlined_call_operand.hbm [shape: f32[4,8,128], index: 2, kind: output, shape index: {}]
  %s3 = sld [smem:[#allocation0]]
  $region53: #{tpu_custom_call.1} parent=0
    _
  %s5 = ssub.s32 1, %s3
  %s6 = scalar_select 0, %s5, %s3
  $region1: #{tpu_custom_call.1} parent=0
    #allocation2 [shape = 'u8[1048576]{0}', space=vmem, size = 0x100000, scoped, tag = 'input window, operand 0']
    #allocation3 [shape = 's32[2]{0}', space=sflag, size = 0x8, scoped, tag = 'scoped memory for tpu_custom_call.1']
    #allocation4 [shape = 's32[2]{0}', space=sflag, size = 0x8, scoped, tag = 'scoped memory for tpu_custom_call.1']
    #allocation5 [shape = 'u8[1048576]{0}', space=vmem, size = 0x100000, scoped, tag = 'input window, operand 1']
    #allocation6 [shape = 's32[2]{0}', space=sflag, size = 0x8, scoped, tag = 'scoped memory for tpu_custom_call.1']
    #allocation7 [shape = 'u8[16384]{0}', space=vmem, size = 0x4000, scoped, tag = 'output window, operand 0']
    %7 = vsyncpa [#allocation3], 0
    %s8 = scalar_lea.sflag [#allocation3], 1
    %9 = vsyncpa %s8, 0
    %10 = vsyncpa [#allocation6], 0
    %s11 = scalar_lea.sflag [#allocation6], 1
    %12 = vsyncpa %s11, 0
    %13 = vsyncpa [#allocation4], 0
    %s14 = scalar_lea.sflag [#allocation4], 1
    %15 = vsyncpa %s14, 0
    loop: start=0, step=1, limit=4
    $region2: #{tpu_custom_call.1} parent=1 // loop_pre_header
      _
    $region3: #{tpu_custom_call.1} parent=1 // loop_header
      %s17 = sphi 0, %s21
      %p18 = scmp.ge.s32.totalorder %s17, 4
      %s24 = sphi 0, %s36
      %s25 = sphi 0, %s32
      %s26 = sphi 0, %s24
      %s27 = sphi 0, %s25
      %s28 = sphi 0, %s26
      %s29 = sphi 0, %s27
      %s41 = sphi 0, %s43
      %s44 = sphi 0, %s41
      %s45 = sphi 0, %s44
      %s61 = sphi 0, %s45
      %s69 = sphi 0, %s71
      %s72 = sphi 0, %s69
      %s73 = sphi 0, %s72
      %s89 = sphi 0, %s73
      %s95 = sphi 0, %s97
      %s98 = sphi 0, %s95
      %s99 = sphi 0, %s98
      %s115 = sphi 0, %s99
    $region4: #{tpu_custom_call.1} parent=1 // loop_header_branch
      %20 = sbr.rel (%p18) target = $region8
    $region5: #{tpu_custom_call.1} parent=1 // loop_body
      %s22 = ssub.s32 %s17, 1
      %s23 = ssub.s32 %s17, 2
      %s30 = sadd.s32 1, %s25
      %p31 = scmp.ge.s32.totalorder %s30, 1
      %s32 = scalar_select %p31, 0, %s30
      %s33 = sadd.s32 1, %s24
      %s34 = scalar_select %p31, %s33, %s24
      %p35 = scmp.ge.s32.totalorder %s34, 2
      %s36 = scalar_select %p35, 0, %s34
      %s37 = sadd.s32 %s24, %s25
      %s38 = sadd.s32 %s36, %s32
      %s39 = ssub.s32 %s37, %s38
      %p40 = scmp.eq.s32.totalorder %s39, 0
      %s42 = sadd.s32 %s41, 1
      %s43 = scalar_select %p40, %s41, %s42
      %p46 = pneg %p40
      %p47 = scmp.eq.s32.totalorder %s17, 1
      %p48 = por %p46, %p47
      %p49 = scmp.ne.s32.totalorder %s41, %s44
      %p50 = scmp.eq.s32.totalorder %s17, 0
      %p51 = por %p49, %p50
      %p52 = scmp.ne.s32.totalorder %s41, %s44
      %p53 = scmp.eq.s32.totalorder %s22, 1
      %p54 = por %p52, %p53
      %p55 = scmp.ne.s32.totalorder %s44, %s45
      %p56 = scmp.eq.s32.totalorder %s22, 0
      %p57 = por %p55, %p56
      %p58 = scmp.ne.s32.totalorder %s44, %s45
      %p59 = scmp.eq.s32.totalorder %s23, 1
      %p60 = por %p58, %p59
      %p62 = scmp.ne.s32.totalorder %s45, %s61
      %p63 = scmp.eq.s32.totalorder %s23, 0
      %p64 = por %p62, %p63
      %s65 = sadd.s32 %s24, %s25
      %s66 = sadd.s32 %s36, %s32
      %s67 = ssub.s32 %s65, %s66
      %p68 = scmp.eq.s32.totalorder %s67, 0
      %s70 = sadd.s32 %s69, 1
      %s71 = scalar_select %p68, %s69, %s70
      %p74 = pneg %p68
      %p75 = scmp.eq.s32.totalorder %s17, 1
      %p76 = por %p74, %p75
      %p77 = scmp.ne.s32.totalorder %s69, %s72
      %p78 = scmp.eq.s32.totalorder %s17, 0
      %p79 = por %p77, %p78
      %p80 = scmp.ne.s32.totalorder %s69, %s72
      %p81 = scmp.eq.s32.totalorder %s22, 1
      %p82 = por %p80, %p81
      %p83 = scmp.ne.s32.totalorder %s72, %s73
      %p84 = scmp.eq.s32.totalorder %s22, 0
      %p85 = por %p83, %p84
      %p86 = scmp.ne.s32.totalorder %s72, %s73
      %p87 = scmp.eq.s32.totalorder %s23, 1
      %p88 = por %p86, %p87
      %p90 = scmp.ne.s32.totalorder %s73, %s89
      %p91 = scmp.eq.s32.totalorder %s23, 0
      %p92 = por %p90, %p91
      %s93 = ssub.s32 %s24, %s36
      %p94 = scmp.eq.s32.totalorder %s93, 0
      %s96 = sadd.s32 %s95, 1
      %s97 = scalar_select %p94, %s95, %s96
      %p100 = pneg %p94
      %p101 = scmp.eq.s32.totalorder %s17, 1
      %p102 = por %p100, %p101
      %p103 = scmp.ne.s32.totalorder %s95, %s98
      %p104 = scmp.eq.s32.totalorder %s17, 0
      %p105 = por %p103, %p104
      %p106 = scmp.ne.s32.totalorder %s95, %s98
      %p107 = scmp.eq.s32.totalorder %s22, 1
      %p108 = por %p106, %p107
      %p109 = scmp.ne.s32.totalorder %s98, %s99
      %p110 = scmp.eq.s32.totalorder %s22, 0
      %p111 = por %p109, %p110
      %p112 = scmp.ne.s32.totalorder %s98, %s99
      %p113 = scmp.eq.s32.totalorder %s23, 1
      %p114 = por %p112, %p113
      %p116 = scmp.ne.s32.totalorder %s99, %s115
      %p117 = scmp.eq.s32.totalorder %s23, 0
      %p118 = por %p116, %p117
      %p119 = scmp.le.s32.totalorder 1, %s17
      %p120 = scmp.lt.s32.totalorder %s17, 3
      %p121 = pnand %p119, %p120
      %p122 = pneg %p121
      // Predicated region
      $region9: #{tpu_custom_call.1} parent=5 // pred_check
        _
      $region10: #{tpu_custom_call.1} parent=5 // pred_check_branch
        %124 = sbr.rel (%p121) target = $region12
      $region11: #{tpu_custom_call.1} parent=5 // pred_region
        %s125 = ssub.s32 %s17, 1
      $region12: #{tpu_custom_call.1} parent=5 // pred_fallthru
        _
      %p126 = scmp.lt.s32.totalorder %s17, 2
      // Predicated region
      $region13: #{tpu_custom_call.1} parent=5 // pred_check
        %p127 = pneg %p126
      $region14: #{tpu_custom_call.1} parent=5 // pred_check_branch
        %129 = sbr.rel (%p127) target = $region16
      $region15: #{tpu_custom_call.1} parent=5 // pred_region
        // Predicated region
        $region17: #{tpu_custom_call.1} parent=15 // pred_check
          %p130 = pneg %p51
        $region18: #{tpu_custom_call.1} parent=15 // pred_check_branch
          %132 = sbr.rel (%p130) target = $region20
        $region19: #{tpu_custom_call.1} parent=15 // pred_region
          %s133 = sand.u32 %s41, 1
          %s134 = scalar_lea.sflag [#allocation3], %s133
          %s135 = sand.u32 %s41, 1
          %s136 = smul.addr %s135, 1024
          %s137 = scalar_lea.vmem [#allocation2], %s136
          %s138 = sadd.s32 %s24, %s25
          %s139 = smul.u32 128, %s138
          %s141 = ssub.s32 16384, 16384
          %142 = vsyncadd %s134, %s141
          %s143 = smul.addr %s139, 128
          %s144 = scalar_lea.hbm %s0, %s143
          %s145 = sshll.u32 %s137, 4
          %s146 = int_to_ptr.vmem [resolvable:$true] %s145
          %151 = dma.hbm_to_vmem [thread:$0]  %s144, 16384, %s146, %s134, 128, 128, 8
        $region20: #{tpu_custom_call.1} parent=15 // pred_fallthru
          _
        // Predicated region
        $region21: #{tpu_custom_call.1} parent=15 // pred_check
          %p152 = pneg %p79
        $region22: #{tpu_custom_call.1} parent=15 // pred_check_branch
          %154 = sbr.rel (%p152) target = $region24
        $region23: #{tpu_custom_call.1} parent=15 // pred_region
          %s155 = sand.u32 %s69, 1
          %s156 = scalar_lea.sflag [#allocation6], %s155
          %s157 = sand.u32 %s69, 1
          %s158 = smul.addr %s157, 1024
          %s159 = scalar_lea.vmem [#allocation5], %s158
          %s160 = sadd.s32 %s24, %s25
          %s161 = smul.u32 128, %s160
          %s163 = ssub.s32 16384, 16384
          %164 = vsyncadd %s156, %s163
          %s165 = smul.addr %s161, 128
          %s166 = scalar_lea.hbm %s1, %s165
          %s167 = sshll.u32 %s159, 4
          %s168 = int_to_ptr.vmem [resolvable:$true] %s167
          %173 = dma.hbm_to_vmem [thread:$0]  %s166, 16384, %s168, %s156, 128, 128, 8
        $region24: #{tpu_custom_call.1} parent=15 // pred_fallthru
          _
      $region16: #{tpu_custom_call.1} parent=5 // pred_fallthru
        _
      %p174 = scmp.le.s32.totalorder 1, %s17
      %p175 = scmp.lt.s32.totalorder %s17, 3
      %p176 = pnand %p174, %p175
      %p177 = pneg %p176
      // Predicated region
      $region25: #{tpu_custom_call.1} parent=5 // pred_check
        _
      $region26: #{tpu_custom_call.1} parent=5 // pred_check_branch
        %179 = sbr.rel (%p176) target = $region28
      $region27: #{tpu_custom_call.1} parent=5 // pred_region
        %s180 = ssub.s32 %s17, 1
        %s181 = sand.u32 %s44, 1
        %s182 = scalar_lea.sflag [#allocation3], %s181
        %s183 = sand.u32 %s44, 1
        %s184 = smul.addr %s183, 1024
        %s185 = scalar_lea.vmem [#allocation2], %s184
        // Predicated region
        $region29: #{tpu_custom_call.1} parent=27 // pred_check
          %p186 = pneg %p57
        $region30: #{tpu_custom_call.1} parent=27 // pred_check_branch
          %188 = sbr.rel (%p186) target = $region32
        $region31: #{tpu_custom_call.1} parent=27 // pred_region
          %189 = dma.done %s182, 16384
        $region32: #{tpu_custom_call.1} parent=27 // pred_fallthru
          _
        %s190 = sand.u32 %s72, 1
        %s191 = scalar_lea.sflag [#allocation6], %s190
        %s192 = sand.u32 %s72, 1
        %s193 = smul.addr %s192, 1024
        %s194 = scalar_lea.vmem [#allocation5], %s193
        // Predicated region
        $region33: #{tpu_custom_call.1} parent=27 // pred_check
          %p195 = pneg %p85
        $region34: #{tpu_custom_call.1} parent=27 // pred_check_branch
          %197 = sbr.rel (%p195) target = $region36
        $region35: #{tpu_custom_call.1} parent=27 // pred_region
          %198 = dma.done %s191, 16384
        $region36: #{tpu_custom_call.1} parent=27 // pred_fallthru
          _
        %s199 = sand.u32 %s44, 1
        %s200 = scalar_lea.sflag [#allocation3], %s199
        %s201 = sand.u32 %s44, 1
        %s202 = smul.addr %s201, 1024
        %s203 = scalar_lea.vmem [#allocation2], %s202
        %p204 = pneg %p57
        %p205 = pneg %p54
        %s206 = sand.u32 %s72, 1
        %s207 = scalar_lea.sflag [#allocation6], %s206
        %s208 = sand.u32 %s72, 1
        %s209 = smul.addr %s208, 1024
        %s210 = scalar_lea.vmem [#allocation5], %s209
        %p211 = pneg %p85
        %p212 = pneg %p82
        %p213 = pneg %p111
        %p214 = pneg %p108
        %s215 = sand.u32 %s98, 1
        %s216 = scalar_lea.sflag [#allocation4], %s215
        %s217 = sand.u32 %s98, 1
        %s218 = smul.addr %s217, 16
        %s219 = scalar_lea.vmem [#allocation7], %s218
        %s220 = sadd.s32 %s26, %s27
        %s221 = smul.u32 128, %s220
        %s222 = sadd.s32 %s26, %s27
        %s223 = smul.u32 128, %s222
        %s224 = smul.u32 2, %s26
        %p225 = scmp.eq.s32.totalorder %s27, 0
        // Predicated region
        $region37: #{tpu_custom_call.1} parent=27 // pred_check
          %p226 = pneg %p225
        $region38: #{tpu_custom_call.1} parent=27 // pred_check_branch
          %228 = sbr.rel (%p226) target = $region40
        $region39: #{tpu_custom_call.1} parent=27 // pred_region
          %229 = vst [vmem:[%s219] sm:$0xff] 0.0
          %230 = vst [vmem:[%s219 + $0x8] sm:$0xff] 0.0
        $region40: #{tpu_custom_call.1} parent=27 // pred_fallthru
          _
        %v231 = vld [vmem:[%s185] sm:$0xff]
        %v232 = vld [vmem:[%s185 + $0x8] sm:$0xff]
        %v233 = vld [vmem:[%s185 + $0x10] sm:$0xff]
        %v234 = vld [vmem:[%s185 + $0x18] sm:$0xff]
        %v235 = vld [vmem:[%s185 + $0x20] sm:$0xff]
        %v236 = vld [vmem:[%s185 + $0x28] sm:$0xff]
        %v237 = vld [vmem:[%s185 + $0x30] sm:$0xff]
        %v238 = vld [vmem:[%s185 + $0x38] sm:$0xff]
        %v239 = vld [vmem:[%s185 + $0x40] sm:$0xff]
        %v240 = vld [vmem:[%s185 + $0x48] sm:$0xff]
        %v241 = vld [vmem:[%s185 + $0x50] sm:$0xff]
        %v242 = vld [vmem:[%s185 + $0x58] sm:$0xff]
        %v243 = vld [vmem:[%s185 + $0x60] sm:$0xff]
        %v244 = vld [vmem:[%s185 + $0x68] sm:$0xff]
        %v245 = vld [vmem:[%s185 + $0x70] sm:$0xff]
        %v246 = vld [vmem:[%s185 + $0x78] sm:$0xff]
        %v247 = vld [vmem:[%s185 + $0x80] sm:$0xff]
        %v248 = vld [vmem:[%s185 + $0x88] sm:$0xff]
        %v249 = vld [vmem:[%s185 + $0x90] sm:$0xff]
        %v250 = vld [vmem:[%s185 + $0x98] sm:$0xff]
        %v251 = vld [vmem:[%s185 + $0xa0] sm:$0xff]
        %v252 = vld [vmem:[%s185 + $0xa8] sm:$0xff]
        %v253 = vld [vmem:[%s185 + $0xb0] sm:$0xff]
        %v254 = vld [vmem:[%s185 + $0xb8] sm:$0xff]
        %v255 = vld [vmem:[%s185 + $0xc0] sm:$0xff]
        %v256 = vld [vmem:[%s185 + $0xc8] sm:$0xff]
        %v257 = vld [vmem:[%s185 + $0xd0] sm:$0xff]
        %v258 = vld [vmem:[%s185 + $0xd8] sm:$0xff]
        %v259 = vld [vmem:[%s185 + $0xe0] sm:$0xff]
        %v260 = vld [vmem:[%s185 + $0xe8] sm:$0xff]
        %v261 = vld [vmem:[%s185 + $0xf0] sm:$0xff]
        %v262 = vld [vmem:[%s185 + $0xf8] sm:$0xff]
        %v263 = vld [vmem:[%s185 + $0x100] sm:$0xff]
        %v264 = vld [vmem:[%s185 + $0x108] sm:$0xff]
        %v265 = vld [vmem:[%s185 + $0x110] sm:$0xff]
        %v266 = vld [vmem:[%s185 + $0x118] sm:$0xff]
        %v267 = vld [vmem:[%s185 + $0x120] sm:$0xff]
        %v268 = vld [vmem:[%s185 + $0x128] sm:$0xff]
        %v269 = vld [vmem:[%s185 + $0x130] sm:$0xff]
        %v270 = vld [vmem:[%s185 + $0x138] sm:$0xff]
        %v271 = vld [vmem:[%s185 + $0x140] sm:$0xff]
        %v272 = vld [vmem:[%s185 + $0x148] sm:$0xff]
        %v273 = vld [vmem:[%s185 + $0x150] sm:$0xff]
        %v274 = vld [vmem:[%s185 + $0x158] sm:$0xff]
        %v275 = vld [vmem:[%s185 + $0x160] sm:$0xff]
        %v276 = vld [vmem:[%s185 + $0x168] sm:$0xff]
        %v277 = vld [vmem:[%s185 + $0x170] sm:$0xff]
        %v278 = vld [vmem:[%s185 + $0x178] sm:$0xff]
        %v279 = vld [vmem:[%s185 + $0x180] sm:$0xff]
        %v280 = vld [vmem:[%s185 + $0x188] sm:$0xff]
        %v281 = vld [vmem:[%s185 + $0x190] sm:$0xff]
        %v282 = vld [vmem:[%s185 + $0x198] sm:$0xff]
        %v283 = vld [vmem:[%s185 + $0x1a0] sm:$0xff]
        %v284 = vld [vmem:[%s185 + $0x1a8] sm:$0xff]
        %v285 = vld [vmem:[%s185 + $0x1b0] sm:$0xff]
        %v286 = vld [vmem:[%s185 + $0x1b8] sm:$0xff]
        %v287 = vld [vmem:[%s185 + $0x1c0] sm:$0xff]
        %v288 = vld [vmem:[%s185 + $0x1c8] sm:$0xff]
        %v289 = vld [vmem:[%s185 + $0x1d0] sm:$0xff]
        %v290 = vld [vmem:[%s185 + $0x1d8] sm:$0xff]
        %v291 = vld [vmem:[%s185 + $0x1e0] sm:$0xff]
        %v292 = vld [vmem:[%s185 + $0x1e8] sm:$0xff]
        %v293 = vld [vmem:[%s185 + $0x1f0] sm:$0xff]
        %v294 = vld [vmem:[%s185 + $0x1f8] sm:$0xff]
        %v295 = vld [vmem:[%s185 + $0x200] sm:$0xff]
        %v296 = vld [vmem:[%s185 + $0x208] sm:$0xff]
        %v297 = vld [vmem:[%s185 + $0x210] sm:$0xff]
        %v298 = vld [vmem:[%s185 + $0x218] sm:$0xff]
        %v299 = vld [vmem:[%s185 + $0x220] sm:$0xff]
        %v300 = vld [vmem:[%s185 + $0x228] sm:$0xff]
        %v301 = vld [vmem:[%s185 + $0x230] sm:$0xff]
        %v302 = vld [vmem:[%s185 + $0x238] sm:$0xff]
        %v303 = vld [vmem:[%s185 + $0x240] sm:$0xff]
        %v304 = vld [vmem:[%s185 + $0x248] sm:$0xff]
        %v305 = vld [vmem:[%s185 + $0x250] sm:$0xff]
        %v306 = vld [vmem:[%s185 + $0x258] sm:$0xff]
        %v307 = vld [vmem:[%s185 + $0x260] sm:$0xff]
        %v308 = vld [vmem:[%s185 + $0x268] sm:$0xff]
        %v309 = vld [vmem:[%s185 + $0x270] sm:$0xff]
        %v310 = vld [vmem:[%s185 + $0x278] sm:$0xff]
        %v311 = vld [vmem:[%s185 + $0x280] sm:$0xff]
        %v312 = vld [vmem:[%s185 + $0x288] sm:$0xff]
        %v313 = vld [vmem:[%s185 + $0x290] sm:$0xff]
        %v314 = vld [vmem:[%s185 + $0x298] sm:$0xff]
        %v315 = vld [vmem:[%s185 + $0x2a0] sm:$0xff]
        %v316 = vld [vmem:[%s185 + $0x2a8] sm:$0xff]
        %v317 = vld [vmem:[%s185 + $0x2b0] sm:$0xff]
        %v318 = vld [vmem:[%s185 + $0x2b8] sm:$0xff]
        %v319 = vld [vmem:[%s185 + $0x2c0] sm:$0xff]
        %v320 = vld [vmem:[%s185 + $0x2c8] sm:$0xff]
        %v321 = vld [vmem:[%s185 + $0x2d0] sm:$0xff]
        %v322 = vld [vmem:[%s185 + $0x2d8] sm:$0xff]
        %v323 = vld [vmem:[%s185 + $0x2e0] sm:$0xff]
        %v324 = vld [vmem:[%s185 + $0x2e8] sm:$0xff]
        %v325 = vld [vmem:[%s185 + $0x2f0] sm:$0xff]
        %v326 = vld [vmem:[%s185 + $0x2f8] sm:$0xff]
        %v327 = vld [vmem:[%s185 + $0x300] sm:$0xff]
        %v328 = vld [vmem:[%s185 + $0x308] sm:$0xff]
        %v329 = vld [vmem:[%s185 + $0x310] sm:$0xff]
        %v330 = vld [vmem:[%s185 + $0x318] sm:$0xff]
        %v331 = vld [vmem:[%s185 + $0x320] sm:$0xff]
        %v332 = vld [vmem:[%s185 + $0x328] sm:$0xff]
        %v333 = vld [vmem:[%s185 + $0x330] sm:$0xff]
        %v334 = vld [vmem:[%s185 + $0x338] sm:$0xff]
        %v335 = vld [vmem:[%s185 + $0x340] sm:$0xff]
        %v336 = vld [vmem:[%s185 + $0x348] sm:$0xff]
        %v337 = vld [vmem:[%s185 + $0x350] sm:$0xff]
        %v338 = vld [vmem:[%s185 + $0x358] sm:$0xff]
        %v339 = vld [vmem:[%s185 + $0x360] sm:$0xff]
        %v340 = vld [vmem:[%s185 + $0x368] sm:$0xff]
        %v341 = vld [vmem:[%s185 + $0x370] sm:$0xff]
        %v342 = vld [vmem:[%s185 + $0x378] sm:$0xff]
        %v343 = vld [vmem:[%s185 + $0x380] sm:$0xff]
        %v344 = vld [vmem:[%s185 + $0x388] sm:$0xff]
        %v345 = vld [vmem:[%s185 + $0x390] sm:$0xff]
        %v346 = vld [vmem:[%s185 + $0x398] sm:$0xff]
        %v347 = vld [vmem:[%s185 + $0x3a0] sm:$0xff]
        %v348 = vld [vmem:[%s185 + $0x3a8] sm:$0xff]
        %v349 = vld [vmem:[%s185 + $0x3b0] sm:$0xff]
        %v350 = vld [vmem:[%s185 + $0x3b8] sm:$0xff]
        %v351 = vld [vmem:[%s185 + $0x3c0] sm:$0xff]
        %v352 = vld [vmem:[%s185 + $0x3c8] sm:$0xff]
        %v353 = vld [vmem:[%s185 + $0x3d0] sm:$0xff]
        %v354 = vld [vmem:[%s185 + $0x3d8] sm:$0xff]
        %v355 = vld [vmem:[%s185 + $0x3e0] sm:$0xff]
        %v356 = vld [vmem:[%s185 + $0x3e8] sm:$0xff]
        %v357 = vld [vmem:[%s185 + $0x3f0] sm:$0xff]
        %v358 = vld [vmem:[%s185 + $0x3f8] sm:$0xff]
        %v359 = vld [vmem:[%s194] sm:$0xff]
        %v360 = vld [vmem:[%s194 + $0x8] sm:$0xff]
        %v361 = vld [vmem:[%s194 + $0x10] sm:$0xff]
        %v362 = vld [vmem:[%s194 + $0x18] sm:$0xff]
        %v363 = vld [vmem:[%s194 + $0x20] sm:$0xff]
        %v364 = vld [vmem:[%s194 + $0x28] sm:$0xff]
        %v365 = vld [vmem:[%s194 + $0x30] sm:$0xff]
        %v366 = vld [vmem:[%s194 + $0x38] sm:$0xff]
        %v367 = vld [vmem:[%s194 + $0x40] sm:$0xff]
        %v368 = vld [vmem:[%s194 + $0x48] sm:$0xff]
        %v369 = vld [vmem:[%s194 + $0x50] sm:$0xff]
        %v370 = vld [vmem:[%s194 + $0x58] sm:$0xff]
        %v371 = vld [vmem:[%s194 + $0x60] sm:$0xff]
        %v372 = vld [vmem:[%s194 + $0x68] sm:$0xff]
        %v373 = vld [vmem:[%s194 + $0x70] sm:$0xff]
        %v374 = vld [vmem:[%s194 + $0x78] sm:$0xff]
        %v375 = vld [vmem:[%s194 + $0x80] sm:$0xff]
        %v376 = vld [vmem:[%s194 + $0x88] sm:$0xff]
        %v377 = vld [vmem:[%s194 + $0x90] sm:$0xff]
        %v378 = vld [vmem:[%s194 + $0x98] sm:$0xff]
        %v379 = vld [vmem:[%s194 + $0xa0] sm:$0xff]
        %v380 = vld [vmem:[%s194 + $0xa8] sm:$0xff]
        %v381 = vld [vmem:[%s194 + $0xb0] sm:$0xff]
        %v382 = vld [vmem:[%s194 + $0xb8] sm:$0xff]
        %v383 = vld [vmem:[%s194 + $0xc0] sm:$0xff]
        %v384 = vld [vmem:[%s194 + $0xc8] sm:$0xff]
        %v385 = vld [vmem:[%s194 + $0xd0] sm:$0xff]
        %v386 = vld [vmem:[%s194 + $0xd8] sm:$0xff]
        %v387 = vld [vmem:[%s194 + $0xe0] sm:$0xff]
        %v388 = vld [vmem:[%s194 + $0xe8] sm:$0xff]
        %v389 = vld [vmem:[%s194 + $0xf0] sm:$0xff]
        %v390 = vld [vmem:[%s194 + $0xf8] sm:$0xff]
        %v391 = vld [vmem:[%s194 + $0x100] sm:$0xff]
        %v392 = vld [vmem:[%s194 + $0x108] sm:$0xff]
        %v393 = vld [vmem:[%s194 + $0x110] sm:$0xff]
        %v394 = vld [vmem:[%s194 + $0x118] sm:$0xff]
        %v395 = vld [vmem:[%s194 + $0x120] sm:$0xff]
        %v396 = vld [vmem:[%s194 + $0x128] sm:$0xff]
        %v397 = vld [vmem:[%s194 + $0x130] sm:$0xff]
        %v398 = vld [vmem:[%s194 + $0x138] sm:$0xff]
        %v399 = vld [vmem:[%s194 + $0x140] sm:$0xff]
        %v400 = vld [vmem:[%s194 + $0x148] sm:$0xff]
        %v401 = vld [vmem:[%s194 + $0x150] sm:$0xff]
        %v402 = vld [vmem:[%s194 + $0x158] sm:$0xff]
        %v403 = vld [vmem:[%s194 + $0x160] sm:$0xff]
        %v404 = vld [vmem:[%s194 + $0x168] sm:$0xff]
        %v405 = vld [vmem:[%s194 + $0x170] sm:$0xff]
        %v406 = vld [vmem:[%s194 + $0x178] sm:$0xff]
        %v407 = vld [vmem:[%s194 + $0x180] sm:$0xff]
        %v408 = vld [vmem:[%s194 + $0x188] sm:$0xff]
        %v409 = vld [vmem:[%s194 + $0x190] sm:$0xff]
        %v410 = vld [vmem:[%s194 + $0x198] sm:$0xff]
        %v411 = vld [vmem:[%s194 + $0x1a0] sm:$0xff]
        %v412 = vld [vmem:[%s194 + $0x1a8] sm:$0xff]
        %v413 = vld [vmem:[%s194 + $0x1b0] sm:$0xff]
        %v414 = vld [vmem:[%s194 + $0x1b8] sm:$0xff]
        %v415 = vld [vmem:[%s194 + $0x1c0] sm:$0xff]
        %v416 = vld [vmem:[%s194 + $0x1c8] sm:$0xff]
        %v417 = vld [vmem:[%s194 + $0x1d0] sm:$0xff]
        %v418 = vld [vmem:[%s194 + $0x1d8] sm:$0xff]
        %v419 = vld [vmem:[%s194 + $0x1e0] sm:$0xff]
        %v420 = vld [vmem:[%s194 + $0x1e8] sm:$0xff]
        %v421 = vld [vmem:[%s194 + $0x1f0] sm:$0xff]
        %v422 = vld [vmem:[%s194 + $0x1f8] sm:$0xff]
        %v423 = vld [vmem:[%s194 + $0x200] sm:$0xff]
        %v424 = vld [vmem:[%s194 + $0x208] sm:$0xff]
        %v425 = vld [vmem:[%s194 + $0x210] sm:$0xff]
        %v426 = vld [vmem:[%s194 + $0x218] sm:$0xff]
        %v427 = vld [vmem:[%s194 + $0x220] sm:$0xff]
        %v428 = vld [vmem:[%s194 + $0x228] sm:$0xff]
        %v429 = vld [vmem:[%s194 + $0x230] sm:$0xff]
        %v430 = vld [vmem:[%s194 + $0x238] sm:$0xff]
        %v431 = vld [vmem:[%s194 + $0x240] sm:$0xff]
        %v432 = vld [vmem:[%s194 + $0x248] sm:$0xff]
        %v433 = vld [vmem:[%s194 + $0x250] sm:$0xff]
        %v434 = vld [vmem:[%s194 + $0x258] sm:$0xff]
        %v435 = vld [vmem:[%s194 + $0x260] sm:$0xff]
        %v436 = vld [vmem:[%s194 + $0x268] sm:$0xff]
        %v437 = vld [vmem:[%s194 + $0x270] sm:$0xff]
        %v438 = vld [vmem:[%s194 + $0x278] sm:$0xff]
        %v439 = vld [vmem:[%s194 + $0x280] sm:$0xff]
        %v440 = vld [vmem:[%s194 + $0x288] sm:$0xff]
        %v441 = vld [vmem:[%s194 + $0x290] sm:$0xff]
        %v442 = vld [vmem:[%s194 + $0x298] sm:$0xff]
        %v443 = vld [vmem:[%s194 + $0x2a0] sm:$0xff]
        %v444 = vld [vmem:[%s194 + $0x2a8] sm:$0xff]
        %v445 = vld [vmem:[%s194 + $0x2b0] sm:$0xff]
        %v446 = vld [vmem:[%s194 + $0x2b8] sm:$0xff]
        %v447 = vld [vmem:[%s194 + $0x2c0] sm:$0xff]
        %v448 = vld [vmem:[%s194 + $0x2c8] sm:$0xff]
        %v449 = vld [vmem:[%s194 + $0x2d0] sm:$0xff]
        %v450 = vld [vmem:[%s194 + $0x2d8] sm:$0xff]
        %v451 = vld [vmem:[%s194 + $0x2e0] sm:$0xff]
        %v452 = vld [vmem:[%s194 + $0x2e8] sm:$0xff]
        %v453 = vld [vmem:[%s194 + $0x2f0] sm:$0xff]
        %v454 = vld [vmem:[%s194 + $0x2f8] sm:$0xff]
        %v455 = vld [vmem:[%s194 + $0x300] sm:$0xff]
        %v456 = vld [vmem:[%s194 + $0x308] sm:$0xff]
        %v457 = vld [vmem:[%s194 + $0x310] sm:$0xff]
        %v458 = vld [vmem:[%s194 + $0x318] sm:$0xff]
        %v459 = vld [vmem:[%s194 + $0x320] sm:$0xff]
        %v460 = vld [vmem:[%s194 + $0x328] sm:$0xff]
        %v461 = vld [vmem:[%s194 + $0x330] sm:$0xff]
        %v462 = vld [vmem:[%s194 + $0x338] sm:$0xff]
        %v463 = vld [vmem:[%s194 + $0x340] sm:$0xff]
        %v464 = vld [vmem:[%s194 + $0x348] sm:$0xff]
        %v465 = vld [vmem:[%s194 + $0x350] sm:$0xff]
        %v466 = vld [vmem:[%s194 + $0x358] sm:$0xff]
        %v467 = vld [vmem:[%s194 + $0x360] sm:$0xff]
        %v468 = vld [vmem:[%s194 + $0x368] sm:$0xff]
        %v469 = vld [vmem:[%s194 + $0x370] sm:$0xff]
        %v470 = vld [vmem:[%s194 + $0x378] sm:$0xff]
        %v471 = vld [vmem:[%s194 + $0x380] sm:$0xff]
        %v472 = vld [vmem:[%s194 + $0x388] sm:$0xff]
        %v473 = vld [vmem:[%s194 + $0x390] sm:$0xff]
        %v474 = vld [vmem:[%s194 + $0x398] sm:$0xff]
        %v475 = vld [vmem:[%s194 + $0x3a0] sm:$0xff]
        %v476 = vld [vmem:[%s194 + $0x3a8] sm:$0xff]
        %v477 = vld [vmem:[%s194 + $0x3b0] sm:$0xff]
        %v478 = vld [vmem:[%s194 + $0x3b8] sm:$0xff]
        %v479 = vld [vmem:[%s194 + $0x3c0] sm:$0xff]
        %v480 = vld [vmem:[%s194 + $0x3c8] sm:$0xff]
        %v481 = vld [vmem:[%s194 + $0x3d0] sm:$0xff]
        %v482 = vld [vmem:[%s194 + $0x3d8] sm:$0xff]
        %v483 = vld [vmem:[%s194 + $0x3e0] sm:$0xff]
        %v484 = vld [vmem:[%s194 + $0x3e8] sm:$0xff]
        %v485 = vld [vmem:[%s194 + $0x3f0] sm:$0xff]
        %v486 = vld [vmem:[%s194 + $0x3f8] sm:$0xff]
        %v487 = vand.u32 2147483647, %v231
        %v488 = vand.u32 2147483647, %v232
        %v489 = vand.u32 2147483647, %v233
        %v490 = vand.u32 2147483647, %v234
        %v491 = vand.u32 2147483647, %v235
        %v492 = vand.u32 2147483647, %v236
        %v493 = vand.u32 2147483647, %v237
        %v494 = vand.u32 2147483647, %v238
        %v495 = vand.u32 2147483647, %v239
        %v496 = vand.u32 2147483647, %v240
        %v497 = vand.u32 2147483647, %v241
        %v498 = vand.u32 2147483647, %v242
        %v499 = vand.u32 2147483647, %v243
        %v500 = vand.u32 2147483647, %v244
        %v501 = vand.u32 2147483647, %v245
        %v502 = vand.u32 2147483647, %v246
        %v503 = vand.u32 2147483647, %v247
        %v504 = vand.u32 2147483647, %v248
        %v505 = vand.u32 2147483647, %v249
        %v506 = vand.u32 2147483647, %v250
        %v507 = vand.u32 2147483647, %v251
        %v508 = vand.u32 2147483647, %v252
        %v509 = vand.u32 2147483647, %v253
        %v510 = vand.u32 2147483647, %v254
        %v511 = vand.u32 2147483647, %v255
        %v512 = vand.u32 2147483647, %v256
        %v513 = vand.u32 2147483647, %v257
        %v514 = vand.u32 2147483647, %v258
        %v515 = vand.u32 2147483647, %v259
        %v516 = vand.u32 2147483647, %v260
        %v517 = vand.u32 2147483647, %v261
        %v518 = vand.u32 2147483647, %v262
        %v519 = vand.u32 2147483647, %v263
        %v520 = vand.u32 2147483647, %v264
        %v521 = vand.u32 2147483647, %v265
        %v522 = vand.u32 2147483647, %v266
        %v523 = vand.u32 2147483647, %v267
        %v524 = vand.u32 2147483647, %v268
        %v525 = vand.u32 2147483647, %v269
        %v526 = vand.u32 2147483647, %v270
        %v527 = vand.u32 2147483647, %v271
        %v528 = vand.u32 2147483647, %v272
        %v529 = vand.u32 2147483647, %v273
        %v530 = vand.u32 2147483647, %v274
        %v531 = vand.u32 2147483647, %v275
        %v532 = vand.u32 2147483647, %v276
        %v533 = vand.u32 2147483647, %v277
        %v534 = vand.u32 2147483647, %v278
        %v535 = vand.u32 2147483647, %v279
        %v536 = vand.u32 2147483647, %v280
        %v537 = vand.u32 2147483647, %v281
        %v538 = vand.u32 2147483647, %v282
        %v539 = vand.u32 2147483647, %v283
        %v540 = vand.u32 2147483647, %v284
        %v541 = vand.u32 2147483647, %v285
        %v542 = vand.u32 2147483647, %v286
        %v543 = vand.u32 2147483647, %v287
        %v544 = vand.u32 2147483647, %v288
        %v545 = vand.u32 2147483647, %v289
        %v546 = vand.u32 2147483647, %v290
        %v547 = vand.u32 2147483647, %v291
        %v548 = vand.u32 2147483647, %v292
        %v549 = vand.u32 2147483647, %v293
        %v550 = vand.u32 2147483647, %v294
        %v551 = vand.u32 2147483647, %v295
        %v552 = vand.u32 2147483647, %v296
        %v553 = vand.u32 2147483647, %v297
        %v554 = vand.u32 2147483647, %v298
        %v555 = vand.u32 2147483647, %v299
        %v556 = vand.u32 2147483647, %v300
        %v557 = vand.u32 2147483647, %v301
        %v558 = vand.u32 2147483647, %v302
        %v559 = vand.u32 2147483647, %v303
        %v560 = vand.u32 2147483647, %v304
        %v561 = vand.u32 2147483647, %v305
        %v562 = vand.u32 2147483647, %v306
        %v563 = vand.u32 2147483647, %v307
        %v564 = vand.u32 2147483647, %v308
        %v565 = vand.u32 2147483647, %v309
        %v566 = vand.u32 2147483647, %v310
        %v567 = vand.u32 2147483647, %v311
        %v568 = vand.u32 2147483647, %v312
        %v569 = vand.u32 2147483647, %v313
        %v570 = vand.u32 2147483647, %v314
        %v571 = vand.u32 2147483647, %v315
        %v572 = vand.u32 2147483647, %v316
        %v573 = vand.u32 2147483647, %v317
        %v574 = vand.u32 2147483647, %v318
        %v575 = vand.u32 2147483647, %v319
        %v576 = vand.u32 2147483647, %v320
        %v577 = vand.u32 2147483647, %v321
        %v578 = vand.u32 2147483647, %v322
        %v579 = vand.u32 2147483647, %v323
        %v580 = vand.u32 2147483647, %v324
        %v581 = vand.u32 2147483647, %v325
        %v582 = vand.u32 2147483647, %v326
        %v583 = vand.u32 2147483647, %v327
        %v584 = vand.u32 2147483647, %v328
        %v585 = vand.u32 2147483647, %v329
        %v586 = vand.u32 2147483647, %v330
        %v587 = vand.u32 2147483647, %v331
        %v588 = vand.u32 2147483647, %v332
        %v589 = vand.u32 2147483647, %v333
        %v590 = vand.u32 2147483647, %v334
        %v591 = vand.u32 2147483647, %v335
        %v592 = vand.u32 2147483647, %v336
        %v593 = vand.u32 2147483647, %v337
        %v594 = vand.u32 2147483647, %v338
        %v595 = vand.u32 2147483647, %v339
        %v596 = vand.u32 2147483647, %v340
        %v597 = vand.u32 2147483647, %v341
        %v598 = vand.u32 2147483647, %v342
        %v599 = vand.u32 2147483647, %v343
        %v600 = vand.u32 2147483647, %v344
        %v601 = vand.u32 2147483647, %v345
        %v602 = vand.u32 2147483647, %v346
        %v603 = vand.u32 2147483647, %v347
        %v604 = vand.u32 2147483647, %v348
        %v605 = vand.u32 2147483647, %v349
        %v606 = vand.u32 2147483647, %v350
        %v607 = vand.u32 2147483647, %v351
        %v608 = vand.u32 2147483647, %v352
        %v609 = vand.u32 2147483647, %v353
        %v610 = vand.u32 2147483647, %v354
        %v611 = vand.u32 2147483647, %v355
        %v612 = vand.u32 2147483647, %v356
        %v613 = vand.u32 2147483647, %v357
        %v614 = vand.u32 2147483647, %v358
        %v615 = vsub.f32 0.0, %v487
        %v616 = vsub.f32 0.0, %v488
        %v617 = vsub.f32 0.0, %v489
        %v618 = vsub.f32 0.0, %v490
        %v619 = vsub.f32 0.0, %v491
        %v620 = vsub.f32 0.0, %v492
        %v621 = vsub.f32 0.0, %v493
        %v622 = vsub.f32 0.0, %v494
        %v623 = vsub.f32 0.0, %v495
        %v624 = vsub.f32 0.0, %v496
        %v625 = vsub.f32 0.0, %v497
        %v626 = vsub.f32 0.0, %v498
        %v627 = vsub.f32 0.0, %v499
        %v628 = vsub.f32 0.0, %v500
        %v629 = vsub.f32 0.0, %v501
        %v630 = vsub.f32 0.0, %v502
        %v631 = vsub.f32 0.0, %v503
        %v632 = vsub.f32 0.0, %v504
        %v633 = vsub.f32 0.0, %v505
        %v634 = vsub.f32 0.0, %v506
        %v635 = vsub.f32 0.0, %v507
        %v636 = vsub.f32 0.0, %v508
        %v637 = vsub.f32 0.0, %v509
        %v638 = vsub.f32 0.0, %v510
        %v639 = vsub.f32 0.0, %v511
        %v640 = vsub.f32 0.0, %v512
        %v641 = vsub.f32 0.0, %v513
        %v642 = vsub.f32 0.0, %v514
        %v643 = vsub.f32 0.0, %v515
        %v644 = vsub.f32 0.0, %v516
        %v645 = vsub.f32 0.0, %v517
        %v646 = vsub.f32 0.0, %v518
        %v647 = vsub.f32 0.0, %v519
        %v648 = vsub.f32 0.0, %v520
        %v649 = vsub.f32 0.0, %v521
        %v650 = vsub.f32 0.0, %v522
        %v651 = vsub.f32 0.0, %v523
        %v652 = vsub.f32 0.0, %v524
        %v653 = vsub.f32 0.0, %v525
        %v654 = vsub.f32 0.0, %v526
        %v655 = vsub.f32 0.0, %v527
        %v656 = vsub.f32 0.0, %v528
        %v657 = vsub.f32 0.0, %v529
        %v658 = vsub.f32 0.0, %v530
        %v659 = vsub.f32 0.0, %v531
        %v660 = vsub.f32 0.0, %v532
        %v661 = vsub.f32 0.0, %v533
        %v662 = vsub.f32 0.0, %v534
        %v663 = vsub.f32 0.0, %v535
        %v664 = vsub.f32 0.0, %v536
        %v665 = vsub.f32 0.0, %v537
        %v666 = vsub.f32 0.0, %v538
        %v667 = vsub.f32 0.0, %v539
        %v668 = vsub.f32 0.0, %v540
        %v669 = vsub.f32 0.0, %v541
        %v670 = vsub.f32 0.0, %v542
        %v671 = vsub.f32 0.0, %v543
        %v672 = vsub.f32 0.0, %v544
        %v673 = vsub.f32 0.0, %v545
        %v674 = vsub.f32 0.0, %v546
        %v675 = vsub.f32 0.0, %v547
        %v676 = vsub.f32 0.0, %v548
        %v677 = vsub.f32 0.0, %v549
        %v678 = vsub.f32 0.0, %v550
        %v679 = vsub.f32 0.0, %v551
        %v680 = vsub.f32 0.0, %v552
        %v681 = vsub.f32 0.0, %v553
        %v682 = vsub.f32 0.0, %v554
        %v683 = vsub.f32 0.0, %v555
        %v684 = vsub.f32 0.0, %v556
        %v685 = vsub.f32 0.0, %v557
        %v686 = vsub.f32 0.0, %v558
        %v687 = vsub.f32 0.0, %v559
        %v688 = vsub.f32 0.0, %v560
        %v689 = vsub.f32 0.0, %v561
        %v690 = vsub.f32 0.0, %v562
        %v691 = vsub.f32 0.0, %v563
        %v692 = vsub.f32 0.0, %v564
        %v693 = vsub.f32 0.0, %v565
        %v694 = vsub.f32 0.0, %v566
        %v695 = vsub.f32 0.0, %v567
        %v696 = vsub.f32 0.0, %v568
        %v697 = vsub.f32 0.0, %v569
        %v698 = vsub.f32 0.0, %v570
        %v699 = vsub.f32 0.0, %v571
        %v700 = vsub.f32 0.0, %v572
        %v701 = vsub.f32 0.0, %v573
        %v702 = vsub.f32 0.0, %v574
        %v703 = vsub.f32 0.0, %v575
        %v704 = vsub.f32 0.0, %v576
        %v705 = vsub.f32 0.0, %v577
        %v706 = vsub.f32 0.0, %v578
        %v707 = vsub.f32 0.0, %v579
        %v708 = vsub.f32 0.0, %v580
        %v709 = vsub.f32 0.0, %v581
        %v710 = vsub.f32 0.0, %v582
        %v711 = vsub.f32 0.0, %v583
        %v712 = vsub.f32 0.0, %v584
        %v713 = vsub.f32 0.0, %v585
        %v714 = vsub.f32 0.0, %v586
        %v715 = vsub.f32 0.0, %v587
        %v716 = vsub.f32 0.0, %v588
        %v717 = vsub.f32 0.0, %v589
        %v718 = vsub.f32 0.0, %v590
        %v719 = vsub.f32 0.0, %v591
        %v720 = vsub.f32 0.0, %v592
        %v721 = vsub.f32 0.0, %v593
        %v722 = vsub.f32 0.0, %v594
        %v723 = vsub.f32 0.0, %v595
        %v724 = vsub.f32 0.0, %v596
        %v725 = vsub.f32 0.0, %v597
        %v726 = vsub.f32 0.0, %v598
        %v727 = vsub.f32 0.0, %v599
        %v728 = vsub.f32 0.0, %v600
        %v729 = vsub.f32 0.0, %v601
        %v730 = vsub.f32 0.0, %v602
        %v731 = vsub.f32 0.0, %v603
        %v732 = vsub.f32 0.0, %v604
        %v733 = vsub.f32 0.0, %v605
        %v734 = vsub.f32 0.0, %v606
        %v735 = vsub.f32 0.0, %v607
        %v736 = vsub.f32 0.0, %v608
        %v737 = vsub.f32 0.0, %v609
        %v738 = vsub.f32 0.0, %v610
        %v739 = vsub.f32 0.0, %v611
        %v740 = vsub.f32 0.0, %v612
        %v741 = vsub.f32 0.0, %v613
        %v742 = vsub.f32 0.0, %v614
        %v743 = vmul.f32 %v615, 1.442695
        %v744 = vpow.pop %v743
        %v745 = vmul.f32 %v616, 1.442695
        %v746 = vpow.pop %v745
        %v747 = vmul.f32 %v617, 1.442695
        %v748 = vpow.pop %v747
        %v749 = vmul.f32 %v618, 1.442695
        %v750 = vpow.pop %v749
        %v751 = vmul.f32 %v619, 1.442695
        %v752 = vpow.pop %v751
        %v753 = vmul.f32 %v620, 1.442695
        %v754 = vpow.pop %v753
        %v755 = vmul.f32 %v621, 1.442695
        %v756 = vpow.pop %v755
        %v757 = vmul.f32 %v622, 1.442695
        %v758 = vpow.pop %v757
        %v759 = vmul.f32 %v623, 1.442695
        %v760 = vpow.pop %v759
        %v761 = vmul.f32 %v624, 1.442695
        %v762 = vpow.pop %v761
        %v763 = vmul.f32 %v625, 1.442695
        %v764 = vpow.pop %v763
        %v765 = vmul.f32 %v626, 1.442695
        %v766 = vpow.pop %v765
        %v767 = vmul.f32 %v627, 1.442695
        %v768 = vpow.pop %v767
        %v769 = vmul.f32 %v628, 1.442695
        %v770 = vpow.pop %v769
        %v771 = vmul.f32 %v629, 1.442695
        %v772 = vpow.pop %v771
        %v773 = vmul.f32 %v630, 1.442695
        %v774 = vpow.pop %v773
        %v775 = vmul.f32 %v631, 1.442695
        %v776 = vpow.pop %v775
        %v777 = vmul.f32 %v632, 1.442695
        %v778 = vpow.pop %v777
        %v779 = vmul.f32 %v633, 1.442695
        %v780 = vpow.pop %v779
        %v781 = vmul.f32 %v634, 1.442695
        %v782 = vpow.pop %v781
        %v783 = vmul.f32 %v635, 1.442695
        %v784 = vpow.pop %v783
        %v785 = vmul.f32 %v636, 1.442695
        %v786 = vpow.pop %v785
        %v787 = vmul.f32 %v637, 1.442695
        %v788 = vpow.pop %v787
        %v789 = vmul.f32 %v638, 1.442695
        %v790 = vpow.pop %v789
        %v791 = vmul.f32 %v639, 1.442695
        %v792 = vpow.pop %v791
        %v793 = vmul.f32 %v640, 1.442695
        %v794 = vpow.pop %v793
        %v795 = vmul.f32 %v641, 1.442695
        %v796 = vpow.pop %v795
        %v797 = vmul.f32 %v642, 1.442695
        %v798 = vpow.pop %v797
        %v799 = vmul.f32 %v643, 1.442695
        %v800 = vpow.pop %v799
        %v801 = vmul.f32 %v644, 1.442695
        %v802 = vpow.pop %v801
        %v803 = vmul.f32 %v645, 1.442695
        %v804 = vpow.pop %v803
        %v805 = vmul.f32 %v646, 1.442695
        %v806 = vpow.pop %v805
        %v807 = vmul.f32 %v647, 1.442695
        %v808 = vpow.pop %v807
        %v809 = vmul.f32 %v648, 1.442695
        %v810 = vpow.pop %v809
        %v811 = vmul.f32 %v649, 1.442695
        %v812 = vpow.pop %v811
        %v813 = vmul.f32 %v650, 1.442695
        %v814 = vpow.pop %v813
        %v815 = vmul.f32 %v651, 1.442695
        %v816 = vpow.pop %v815
        %v817 = vmul.f32 %v652, 1.442695
        %v818 = vpow.pop %v817
        %v819 = vmul.f32 %v653, 1.442695
        %v820 = vpow.pop %v819
        %v821 = vmul.f32 %v654, 1.442695
        %v822 = vpow.pop %v821
        %v823 = vmul.f32 %v655, 1.442695
        %v824 = vpow.pop %v823
        %v825 = vmul.f32 %v656, 1.442695
        %v826 = vpow.pop %v825
        %v827 = vmul.f32 %v657, 1.442695
        %v828 = vpow.pop %v827
        %v829 = vmul.f32 %v658, 1.442695
        %v830 = vpow.pop %v829
        %v831 = vmul.f32 %v659, 1.442695
        %v832 = vpow.pop %v831
        %v833 = vmul.f32 %v660, 1.442695
        %v834 = vpow.pop %v833
        %v835 = vmul.f32 %v661, 1.442695
        %v836 = vpow.pop %v835
        %v837 = vmul.f32 %v662, 1.442695
        %v838 = vpow.pop %v837
        %v839 = vmul.f32 %v663, 1.442695
        %v840 = vpow.pop %v839
        %v841 = vmul.f32 %v664, 1.442695
        %v842 = vpow.pop %v841
        %v843 = vmul.f32 %v665, 1.442695
        %v844 = vpow.pop %v843
        %v845 = vmul.f32 %v666, 1.442695
        %v846 = vpow.pop %v845
        %v847 = vmul.f32 %v667, 1.442695
        %v848 = vpow.pop %v847
        %v849 = vmul.f32 %v668, 1.442695
        %v850 = vpow.pop %v849
        %v851 = vmul.f32 %v669, 1.442695
        %v852 = vpow.pop %v851
        %v853 = vmul.f32 %v670, 1.442695
        %v854 = vpow.pop %v853
        %v855 = vmul.f32 %v671, 1.442695
        %v856 = vpow.pop %v855
        %v857 = vmul.f32 %v672, 1.442695
        %v858 = vpow.pop %v857
        %v859 = vmul.f32 %v673, 1.442695
        %v860 = vpow.pop %v859
        %v861 = vmul.f32 %v674, 1.442695
        %v862 = vpow.pop %v861
        %v863 = vmul.f32 %v675, 1.442695
        %v864 = vpow.pop %v863
        %v865 = vmul.f32 %v676, 1.442695
        %v866 = vpow.pop %v865
        %v867 = vmul.f32 %v677, 1.442695
        %v868 = vpow.pop %v867
        %v869 = vmul.f32 %v678, 1.442695
        %v870 = vpow.pop %v869
        %v871 = vmul.f32 %v679, 1.442695
        %v872 = vpow.pop %v871
        %v873 = vmul.f32 %v680, 1.442695
        %v874 = vpow.pop %v873
        %v875 = vmul.f32 %v681, 1.442695
        %v876 = vpow.pop %v875
        %v877 = vmul.f32 %v682, 1.442695
        %v878 = vpow.pop %v877
        %v879 = vmul.f32 %v683, 1.442695
        %v880 = vpow.pop %v879
        %v881 = vmul.f32 %v684, 1.442695
        %v882 = vpow.pop %v881
        %v883 = vmul.f32 %v685, 1.442695
        %v884 = vpow.pop %v883
        %v885 = vmul.f32 %v686, 1.442695
        %v886 = vpow.pop %v885
        %v887 = vmul.f32 %v687, 1.442695
        %v888 = vpow.pop %v887
        %v889 = vmul.f32 %v688, 1.442695
        %v890 = vpow.pop %v889
        %v891 = vmul.f32 %v689, 1.442695
        %v892 = vpow.pop %v891
        %v893 = vmul.f32 %v690, 1.442695
        %v894 = vpow.pop %v893
        %v895 = vmul.f32 %v691, 1.442695
        %v896 = vpow.pop %v895
        %v897 = vmul.f32 %v692, 1.442695
        %v898 = vpow.pop %v897
        %v899 = vmul.f32 %v693, 1.442695
        %v900 = vpow.pop %v899
        %v901 = vmul.f32 %v694, 1.442695
        %v902 = vpow.pop %v901
        %v903 = vmul.f32 %v695, 1.442695
        %v904 = vpow.pop %v903
        %v905 = vmul.f32 %v696, 1.442695
        %v906 = vpow.pop %v905
        %v907 = vmul.f32 %v697, 1.442695
        %v908 = vpow.pop %v907
        %v909 = vmul.f32 %v698, 1.442695
        %v910 = vpow.pop %v909
        %v911 = vmul.f32 %v699, 1.442695
        %v912 = vpow.pop %v911
        %v913 = vmul.f32 %v700, 1.442695
        %v914 = vpow.pop %v913
        %v915 = vmul.f32 %v701, 1.442695
        %v916 = vpow.pop %v915
        %v917 = vmul.f32 %v702, 1.442695
        %v918 = vpow.pop %v917
        %v919 = vmul.f32 %v703, 1.442695
        %v920 = vpow.pop %v919
        %v921 = vmul.f32 %v704, 1.442695
        %v922 = vpow.pop %v921
        %v923 = vmul.f32 %v705, 1.442695
        %v924 = vpow.pop %v923
        %v925 = vmul.f32 %v706, 1.442695
        %v926 = vpow.pop %v925
        %v927 = vmul.f32 %v707, 1.442695
        %v928 = vpow.pop %v927
        %v929 = vmul.f32 %v708, 1.442695
        %v930 = vpow.pop %v929
        %v931 = vmul.f32 %v709, 1.442695
        %v932 = vpow.pop %v931
        %v933 = vmul.f32 %v710, 1.442695
        %v934 = vpow.pop %v933
        %v935 = vmul.f32 %v711, 1.442695
        %v936 = vpow.pop %v935
        %v937 = vmul.f32 %v712, 1.442695
        %v938 = vpow.pop %v937
        %v939 = vmul.f32 %v713, 1.442695
        %v940 = vpow.pop %v939
        %v941 = vmul.f32 %v714, 1.442695
        %v942 = vpow.pop %v941
        %v943 = vmul.f32 %v715, 1.442695
        %v944 = vpow.pop %v943
        %v945 = vmul.f32 %v716, 1.442695
        %v946 = vpow.pop %v945
        %v947 = vmul.f32 %v717, 1.442695
        %v948 = vpow.pop %v947
        %v949 = vmul.f32 %v718, 1.442695
        %v950 = vpow.pop %v949
        %v951 = vmul.f32 %v719, 1.442695
        %v952 = vpow.pop %v951
        %v953 = vmul.f32 %v720, 1.442695
        %v954 = vpow.pop %v953
        %v955 = vmul.f32 %v721, 1.442695
        %v956 = vpow.pop %v955
        %v957 = vmul.f32 %v722, 1.442695
        %v958 = vpow.pop %v957
        %v959 = vmul.f32 %v723, 1.442695
        %v960 = vpow.pop %v959
        %v961 = vmul.f32 %v724, 1.442695
        %v962 = vpow.pop %v961
        %v963 = vmul.f32 %v725, 1.442695
        %v964 = vpow.pop %v963
        %v965 = vmul.f32 %v726, 1.442695
        %v966 = vpow.pop %v965
        %v967 = vmul.f32 %v727, 1.442695
        %v968 = vpow.pop %v967
        %v969 = vmul.f32 %v728, 1.442695
        %v970 = vpow.pop %v969
        %v971 = vmul.f32 %v729, 1.442695
        %v972 = vpow.pop %v971
        %v973 = vmul.f32 %v730, 1.442695
        %v974 = vpow.pop %v973
        %v975 = vmul.f32 %v731, 1.442695
        %v976 = vpow.pop %v975
        %v977 = vmul.f32 %v732, 1.442695
        %v978 = vpow.pop %v977
        %v979 = vmul.f32 %v733, 1.442695
        %v980 = vpow.pop %v979
        %v981 = vmul.f32 %v734, 1.442695
        %v982 = vpow.pop %v981
        %v983 = vmul.f32 %v735, 1.442695
        %v984 = vpow.pop %v983
        %v985 = vmul.f32 %v736, 1.442695
        %v986 = vpow.pop %v985
        %v987 = vmul.f32 %v737, 1.442695
        %v988 = vpow.pop %v987
        %v989 = vmul.f32 %v738, 1.442695
        %v990 = vpow.pop %v989
        %v991 = vmul.f32 %v739, 1.442695
        %v992 = vpow.pop %v991
        %v993 = vmul.f32 %v740, 1.442695
        %v994 = vpow.pop %v993
        %v995 = vmul.f32 %v741, 1.442695
        %v996 = vpow.pop %v995
        %v997 = vmul.f32 %v742, 1.442695
        %v998 = vpow.pop %v997
        %v999 = vand.u32 2147483647, %v359
        %v1000 = vand.u32 2147483647, %v360
        %v1001 = vand.u32 2147483647, %v361
        %v1002 = vand.u32 2147483647, %v362
        %v1003 = vand.u32 2147483647, %v363
        %v1004 = vand.u32 2147483647, %v364
        %v1005 = vand.u32 2147483647, %v365
        %v1006 = vand.u32 2147483647, %v366
        %v1007 = vand.u32 2147483647, %v367
        %v1008 = vand.u32 2147483647, %v368
        %v1009 = vand.u32 2147483647, %v369
        %v1010 = vand.u32 2147483647, %v370
        %v1011 = vand.u32 2147483647, %v371
        %v1012 = vand.u32 2147483647, %v372
        %v1013 = vand.u32 2147483647, %v373
        %v1014 = vand.u32 2147483647, %v374
        %v1015 = vand.u32 2147483647, %v375
        %v1016 = vand.u32 2147483647, %v376
        %v1017 = vand.u32 2147483647, %v377
        %v1018 = vand.u32 2147483647, %v378
        %v1019 = vand.u32 2147483647, %v379
        %v1020 = vand.u32 2147483647, %v380
        %v1021 = vand.u32 2147483647, %v381
        %v1022 = vand.u32 2147483647, %v382
        %v1023 = vand.u32 2147483647, %v383
        %v1024 = vand.u32 2147483647, %v384
        %v1025 = vand.u32 2147483647, %v385
        %v1026 = vand.u32 2147483647, %v386
        %v1027 = vand.u32 2147483647, %v387
        %v1028 = vand.u32 2147483647, %v388
        %v1029 = vand.u32 2147483647, %v389
        %v1030 = vand.u32 2147483647, %v390
        %v1031 = vand.u32 2147483647, %v391
        %v1032 = vand.u32 2147483647, %v392
        %v1033 = vand.u32 2147483647, %v393
        %v1034 = vand.u32 2147483647, %v394
        %v1035 = vand.u32 2147483647, %v395
        %v1036 = vand.u32 2147483647, %v396
        %v1037 = vand.u32 2147483647, %v397
        %v1038 = vand.u32 2147483647, %v398
        %v1039 = vand.u32 2147483647, %v399
        %v1040 = vand.u32 2147483647, %v400
        %v1041 = vand.u32 2147483647, %v401
        %v1042 = vand.u32 2147483647, %v402
        %v1043 = vand.u32 2147483647, %v403
        %v1044 = vand.u32 2147483647, %v404
        %v1045 = vand.u32 2147483647, %v405
        %v1046 = vand.u32 2147483647, %v406
        %v1047 = vand.u32 2147483647, %v407
        %v1048 = vand.u32 2147483647, %v408
        %v1049 = vand.u32 2147483647, %v409
        %v1050 = vand.u32 2147483647, %v410
        %v1051 = vand.u32 2147483647, %v411
        %v1052 = vand.u32 2147483647, %v412
        %v1053 = vand.u32 2147483647, %v413
        %v1054 = vand.u32 2147483647, %v414
        %v1055 = vand.u32 2147483647, %v415
        %v1056 = vand.u32 2147483647, %v416
        %v1057 = vand.u32 2147483647, %v417
        %v1058 = vand.u32 2147483647, %v418
        %v1059 = vand.u32 2147483647, %v419
        %v1060 = vand.u32 2147483647, %v420
        %v1061 = vand.u32 2147483647, %v421
        %v1062 = vand.u32 2147483647, %v422
        %v1063 = vand.u32 2147483647, %v423
        %v1064 = vand.u32 2147483647, %v424
        %v1065 = vand.u32 2147483647, %v425
        %v1066 = vand.u32 2147483647, %v426
        %v1067 = vand.u32 2147483647, %v427
        %v1068 = vand.u32 2147483647, %v428
        %v1069 = vand.u32 2147483647, %v429
        %v1070 = vand.u32 2147483647, %v430
        %v1071 = vand.u32 2147483647, %v431
        %v1072 = vand.u32 2147483647, %v432
        %v1073 = vand.u32 2147483647, %v433
        %v1074 = vand.u32 2147483647, %v434
        %v1075 = vand.u32 2147483647, %v435
        %v1076 = vand.u32 2147483647, %v436
        %v1077 = vand.u32 2147483647, %v437
        %v1078 = vand.u32 2147483647, %v438
        %v1079 = vand.u32 2147483647, %v439
        %v1080 = vand.u32 2147483647, %v440
        %v1081 = vand.u32 2147483647, %v441
        %v1082 = vand.u32 2147483647, %v442
        %v1083 = vand.u32 2147483647, %v443
        %v1084 = vand.u32 2147483647, %v444
        %v1085 = vand.u32 2147483647, %v445
        %v1086 = vand.u32 2147483647, %v446
        %v1087 = vand.u32 2147483647, %v447
        %v1088 = vand.u32 2147483647, %v448
        %v1089 = vand.u32 2147483647, %v449
        %v1090 = vand.u32 2147483647, %v450
        %v1091 = vand.u32 2147483647, %v451
        %v1092 = vand.u32 2147483647, %v452
        %v1093 = vand.u32 2147483647, %v453
        %v1094 = vand.u32 2147483647, %v454
        %v1095 = vand.u32 2147483647, %v455
        %v1096 = vand.u32 2147483647, %v456
        %v1097 = vand.u32 2147483647, %v457
        %v1098 = vand.u32 2147483647, %v458
        %v1099 = vand.u32 2147483647, %v459
        %v1100 = vand.u32 2147483647, %v460
        %v1101 = vand.u32 2147483647, %v461
        %v1102 = vand.u32 2147483647, %v462
        %v1103 = vand.u32 2147483647, %v463
        %v1104 = vand.u32 2147483647, %v464
        %v1105 = vand.u32 2147483647, %v465
        %v1106 = vand.u32 2147483647, %v466
        %v1107 = vand.u32 2147483647, %v467
        %v1108 = vand.u32 2147483647, %v468
        %v1109 = vand.u32 2147483647, %v469
        %v1110 = vand.u32 2147483647, %v470
        %v1111 = vand.u32 2147483647, %v471
        %v1112 = vand.u32 2147483647, %v472
        %v1113 = vand.u32 2147483647, %v473
        %v1114 = vand.u32 2147483647, %v474
        %v1115 = vand.u32 2147483647, %v475
        %v1116 = vand.u32 2147483647, %v476
        %v1117 = vand.u32 2147483647, %v477
        %v1118 = vand.u32 2147483647, %v478
        %v1119 = vand.u32 2147483647, %v479
        %v1120 = vand.u32 2147483647, %v480
        %v1121 = vand.u32 2147483647, %v481
        %v1122 = vand.u32 2147483647, %v482
        %v1123 = vand.u32 2147483647, %v483
        %v1124 = vand.u32 2147483647, %v484
        %v1125 = vand.u32 2147483647, %v485
        %v1126 = vand.u32 2147483647, %v486
        %v1127 = vsub.f32 0.0, %v999
        %v1128 = vsub.f32 0.0, %v1000
        %v1129 = vsub.f32 0.0, %v1001
        %v1130 = vsub.f32 0.0, %v1002
        %v1131 = vsub.f32 0.0, %v1003
        %v1132 = vsub.f32 0.0, %v1004
        %v1133 = vsub.f32 0.0, %v1005
        %v1134 = vsub.f32 0.0, %v1006
        %v1135 = vsub.f32 0.0, %v1007
        %v1136 = vsub.f32 0.0, %v1008
        %v1137 = vsub.f32 0.0, %v1009
        %v1138 = vsub.f32 0.0, %v1010
        %v1139 = vsub.f32 0.0, %v1011
        %v1140 = vsub.f32 0.0, %v1012
        %v1141 = vsub.f32 0.0, %v1013
        %v1142 = vsub.f32 0.0, %v1014
        %v1143 = vsub.f32 0.0, %v1015
        %v1144 = vsub.f32 0.0, %v1016
        %v1145 = vsub.f32 0.0, %v1017
        %v1146 = vsub.f32 0.0, %v1018
        %v1147 = vsub.f32 0.0, %v1019
        %v1148 = vsub.f32 0.0, %v1020
        %v1149 = vsub.f32 0.0, %v1021
        %v1150 = vsub.f32 0.0, %v1022
        %v1151 = vsub.f32 0.0, %v1023
        %v1152 = vsub.f32 0.0, %v1024
        %v1153 = vsub.f32 0.0, %v1025
        %v1154 = vsub.f32 0.0, %v1026
        %v1155 = vsub.f32 0.0, %v1027
        %v1156 = vsub.f32 0.0, %v1028
        %v1157 = vsub.f32 0.0, %v1029
        %v1158 = vsub.f32 0.0, %v1030
        %v1159 = vsub.f32 0.0, %v1031
        %v1160 = vsub.f32 0.0, %v1032
        %v1161 = vsub.f32 0.0, %v1033
        %v1162 = vsub.f32 0.0, %v1034
        %v1163 = vsub.f32 0.0, %v1035
        %v1164 = vsub.f32 0.0, %v1036
        %v1165 = vsub.f32 0.0, %v1037
        %v1166 = vsub.f32 0.0, %v1038
        %v1167 = vsub.f32 0.0, %v1039
        %v1168 = vsub.f32 0.0, %v1040
        %v1169 = vsub.f32 0.0, %v1041
        %v1170 = vsub.f32 0.0, %v1042
        %v1171 = vsub.f32 0.0, %v1043
        %v1172 = vsub.f32 0.0, %v1044
        %v1173 = vsub.f32 0.0, %v1045
        %v1174 = vsub.f32 0.0, %v1046
        %v1175 = vsub.f32 0.0, %v1047
        %v1176 = vsub.f32 0.0, %v1048
        %v1177 = vsub.f32 0.0, %v1049
        %v1178 = vsub.f32 0.0, %v1050
        %v1179 = vsub.f32 0.0, %v1051
        %v1180 = vsub.f32 0.0, %v1052
        %v1181 = vsub.f32 0.0, %v1053
        %v1182 = vsub.f32 0.0, %v1054
        %v1183 = vsub.f32 0.0, %v1055
        %v1184 = vsub.f32 0.0, %v1056
        %v1185 = vsub.f32 0.0, %v1057
        %v1186 = vsub.f32 0.0, %v1058
        %v1187 = vsub.f32 0.0, %v1059
        %v1188 = vsub.f32 0.0, %v1060
        %v1189 = vsub.f32 0.0, %v1061
        %v1190 = vsub.f32 0.0, %v1062
        %v1191 = vsub.f32 0.0, %v1063
        %v1192 = vsub.f32 0.0, %v1064
        %v1193 = vsub.f32 0.0, %v1065
        %v1194 = vsub.f32 0.0, %v1066
        %v1195 = vsub.f32 0.0, %v1067
        %v1196 = vsub.f32 0.0, %v1068
        %v1197 = vsub.f32 0.0, %v1069
        %v1198 = vsub.f32 0.0, %v1070
        %v1199 = vsub.f32 0.0, %v1071
        %v1200 = vsub.f32 0.0, %v1072
        %v1201 = vsub.f32 0.0, %v1073
        %v1202 = vsub.f32 0.0, %v1074
        %v1203 = vsub.f32 0.0, %v1075
        %v1204 = vsub.f32 0.0, %v1076
        %v1205 = vsub.f32 0.0, %v1077
        %v1206 = vsub.f32 0.0, %v1078
        %v1207 = vsub.f32 0.0, %v1079
        %v1208 = vsub.f32 0.0, %v1080
        %v1209 = vsub.f32 0.0, %v1081
        %v1210 = vsub.f32 0.0, %v1082
        %v1211 = vsub.f32 0.0, %v1083
        %v1212 = vsub.f32 0.0, %v1084
        %v1213 = vsub.f32 0.0, %v1085
        %v1214 = vsub.f32 0.0, %v1086
        %v1215 = vsub.f32 0.0, %v1087
        %v1216 = vsub.f32 0.0, %v1088
        %v1217 = vsub.f32 0.0, %v1089
        %v1218 = vsub.f32 0.0, %v1090
        %v1219 = vsub.f32 0.0, %v1091
        %v1220 = vsub.f32 0.0, %v1092
        %v1221 = vsub.f32 0.0, %v1093
        %v1222 = vsub.f32 0.0, %v1094
        %v1223 = vsub.f32 0.0, %v1095
        %v1224 = vsub.f32 0.0, %v1096
        %v1225 = vsub.f32 0.0, %v1097
        %v1226 = vsub.f32 0.0, %v1098
        %v1227 = vsub.f32 0.0, %v1099
        %v1228 = vsub.f32 0.0, %v1100
        %v1229 = vsub.f32 0.0, %v1101
        %v1230 = vsub.f32 0.0, %v1102
        %v1231 = vsub.f32 0.0, %v1103
        %v1232 = vsub.f32 0.0, %v1104
        %v1233 = vsub.f32 0.0, %v1105
        %v1234 = vsub.f32 0.0, %v1106
        %v1235 = vsub.f32 0.0, %v1107
        %v1236 = vsub.f32 0.0, %v1108
        %v1237 = vsub.f32 0.0, %v1109
        %v1238 = vsub.f32 0.0, %v1110
        %v1239 = vsub.f32 0.0, %v1111
        %v1240 = vsub.f32 0.0, %v1112
        %v1241 = vsub.f32 0.0, %v1113
        %v1242 = vsub.f32 0.0, %v1114
        %v1243 = vsub.f32 0.0, %v1115
        %v1244 = vsub.f32 0.0, %v1116
        %v1245 = vsub.f32 0.0, %v1117
        %v1246 = vsub.f32 0.0, %v1118
        %v1247 = vsub.f32 0.0, %v1119
        %v1248 = vsub.f32 0.0, %v1120
        %v1249 = vsub.f32 0.0, %v1121
        %v1250 = vsub.f32 0.0, %v1122
        %v1251 = vsub.f32 0.0, %v1123
        %v1252 = vsub.f32 0.0, %v1124
        %v1253 = vsub.f32 0.0, %v1125
        %v1254 = vsub.f32 0.0, %v1126
        %v1255 = vmul.f32 %v1127, 1.442695
        %v1256 = vpow.pop %v1255
        %v1257 = vmul.f32 %v1128, 1.442695
        %v1258 = vpow.pop %v1257
        %v1259 = vmul.f32 %v1129, 1.442695
        %v1260 = vpow.pop %v1259
        %v1261 = vmul.f32 %v1130, 1.442695
        %v1262 = vpow.pop %v1261
        %v1263 = vmul.f32 %v1131, 1.442695
        %v1264 = vpow.pop %v1263
        %v1265 = vmul.f32 %v1132, 1.442695
        %v1266 = vpow.pop %v1265
        %v1267 = vmul.f32 %v1133, 1.442695
        %v1268 = vpow.pop %v1267
        %v1269 = vmul.f32 %v1134, 1.442695
        %v1270 = vpow.pop %v1269
        %v1271 = vmul.f32 %v1135, 1.442695
        %v1272 = vpow.pop %v1271
        %v1273 = vmul.f32 %v1136, 1.442695
        %v1274 = vpow.pop %v1273
        %v1275 = vmul.f32 %v1137, 1.442695
        %v1276 = vpow.pop %v1275
        %v1277 = vmul.f32 %v1138, 1.442695
        %v1278 = vpow.pop %v1277
        %v1279 = vmul.f32 %v1139, 1.442695
        %v1280 = vpow.pop %v1279
        %v1281 = vmul.f32 %v1140, 1.442695
        %v1282 = vpow.pop %v1281
        %v1283 = vmul.f32 %v1141, 1.442695
        %v1284 = vpow.pop %v1283
        %v1285 = vmul.f32 %v1142, 1.442695
        %v1286 = vpow.pop %v1285
        %v1287 = vmul.f32 %v1143, 1.442695
        %v1288 = vpow.pop %v1287
        %v1289 = vmul.f32 %v1144, 1.442695
        %v1290 = vpow.pop %v1289
        %v1291 = vmul.f32 %v1145, 1.442695
        %v1292 = vpow.pop %v1291
        %v1293 = vmul.f32 %v1146, 1.442695
        %v1294 = vpow.pop %v1293
        %v1295 = vmul.f32 %v1147, 1.442695
        %v1296 = vpow.pop %v1295
        %v1297 = vmul.f32 %v1148, 1.442695
        %v1298 = vpow.pop %v1297
        %v1299 = vmul.f32 %v1149, 1.442695
        %v1300 = vpow.pop %v1299
        %v1301 = vmul.f32 %v1150, 1.442695
        %v1302 = vpow.pop %v1301
        %v1303 = vmul.f32 %v1151, 1.442695
        %v1304 = vpow.pop %v1303
        %v1305 = vmul.f32 %v1152, 1.442695
        %v1306 = vpow.pop %v1305
        %v1307 = vmul.f32 %v1153, 1.442695
        %v1308 = vpow.pop %v1307
        %v1309 = vmul.f32 %v1154, 1.442695
        %v1310 = vpow.pop %v1309
        %v1311 = vmul.f32 %v1155, 1.442695
        %v1312 = vpow.pop %v1311
        %v1313 = vmul.f32 %v1156, 1.442695
        %v1314 = vpow.pop %v1313
        %v1315 = vmul.f32 %v1157, 1.442695
        %v1316 = vpow.pop %v1315
        %v1317 = vmul.f32 %v1158, 1.442695
        %v1318 = vpow.pop %v1317
        %v1319 = vmul.f32 %v1159, 1.442695
        %v1320 = vpow.pop %v1319
        %v1321 = vmul.f32 %v1160, 1.442695
        %v1322 = vpow.pop %v1321
        %v1323 = vmul.f32 %v1161, 1.442695
        %v1324 = vpow.pop %v1323
        %v1325 = vmul.f32 %v1162, 1.442695
        %v1326 = vpow.pop %v1325
        %v1327 = vmul.f32 %v1163, 1.442695
        %v1328 = vpow.pop %v1327
        %v1329 = vmul.f32 %v1164, 1.442695
        %v1330 = vpow.pop %v1329
        %v1331 = vmul.f32 %v1165, 1.442695
        %v1332 = vpow.pop %v1331
        %v1333 = vmul.f32 %v1166, 1.442695
        %v1334 = vpow.pop %v1333
        %v1335 = vmul.f32 %v1167, 1.442695
        %v1336 = vpow.pop %v1335
        %v1337 = vmul.f32 %v1168, 1.442695
        %v1338 = vpow.pop %v1337
        %v1339 = vmul.f32 %v1169, 1.442695
        %v1340 = vpow.pop %v1339
        %v1341 = vmul.f32 %v1170, 1.442695
        %v1342 = vpow.pop %v1341
        %v1343 = vmul.f32 %v1171, 1.442695
        %v1344 = vpow.pop %v1343
        %v1345 = vmul.f32 %v1172, 1.442695
        %v1346 = vpow.pop %v1345
        %v1347 = vmul.f32 %v1173, 1.442695
        %v1348 = vpow.pop %v1347
        %v1349 = vmul.f32 %v1174, 1.442695
        %v1350 = vpow.pop %v1349
        %v1351 = vmul.f32 %v1175, 1.442695
        %v1352 = vpow.pop %v1351
        %v1353 = vmul.f32 %v1176, 1.442695
        %v1354 = vpow.pop %v1353
        %v1355 = vmul.f32 %v1177, 1.442695
        %v1356 = vpow.pop %v1355
        %v1357 = vmul.f32 %v1178, 1.442695
        %v1358 = vpow.pop %v1357
        %v1359 = vmul.f32 %v1179, 1.442695
        %v1360 = vpow.pop %v1359
        %v1361 = vmul.f32 %v1180, 1.442695
        %v1362 = vpow.pop %v1361
        %v1363 = vmul.f32 %v1181, 1.442695
        %v1364 = vpow.pop %v1363
        %v1365 = vmul.f32 %v1182, 1.442695
        %v1366 = vpow.pop %v1365
        %v1367 = vmul.f32 %v1183, 1.442695
        %v1368 = vpow.pop %v1367
        %v1369 = vmul.f32 %v1184, 1.442695
        %v1370 = vpow.pop %v1369
        %v1371 = vmul.f32 %v1185, 1.442695
        %v1372 = vpow.pop %v1371
        %v1373 = vmul.f32 %v1186, 1.442695
        %v1374 = vpow.pop %v1373
        %v1375 = vmul.f32 %v1187, 1.442695
        %v1376 = vpow.pop %v1375
        %v1377 = vmul.f32 %v1188, 1.442695
        %v1378 = vpow.pop %v1377
        %v1379 = vmul.f32 %v1189, 1.442695
        %v1380 = vpow.pop %v1379
        %v1381 = vmul.f32 %v1190, 1.442695
        %v1382 = vpow.pop %v1381
        %v1383 = vmul.f32 %v1191, 1.442695
        %v1384 = vpow.pop %v1383
        %v1385 = vmul.f32 %v1192, 1.442695
        %v1386 = vpow.pop %v1385
        %v1387 = vmul.f32 %v1193, 1.442695
        %v1388 = vpow.pop %v1387
        %v1389 = vmul.f32 %v1194, 1.442695
        %v1390 = vpow.pop %v1389
        %v1391 = vmul.f32 %v1195, 1.442695
        %v1392 = vpow.pop %v1391
        %v1393 = vmul.f32 %v1196, 1.442695
        %v1394 = vpow.pop %v1393
        %v1395 = vmul.f32 %v1197, 1.442695
        %v1396 = vpow.pop %v1395
        %v1397 = vmul.f32 %v1198, 1.442695
        %v1398 = vpow.pop %v1397
        %v1399 = vmul.f32 %v1199, 1.442695
        %v1400 = vpow.pop %v1399
        %v1401 = vmul.f32 %v1200, 1.442695
        %v1402 = vpow.pop %v1401
        %v1403 = vmul.f32 %v1201, 1.442695
        %v1404 = vpow.pop %v1403
        %v1405 = vmul.f32 %v1202, 1.442695
        %v1406 = vpow.pop %v1405
        %v1407 = vmul.f32 %v1203, 1.442695
        %v1408 = vpow.pop %v1407
        %v1409 = vmul.f32 %v1204, 1.442695
        %v1410 = vpow.pop %v1409
        %v1411 = vmul.f32 %v1205, 1.442695
        %v1412 = vpow.pop %v1411
        %v1413 = vmul.f32 %v1206, 1.442695
        %v1414 = vpow.pop %v1413
        %v1415 = vmul.f32 %v1207, 1.442695
        %v1416 = vpow.pop %v1415
        %v1417 = vmul.f32 %v1208, 1.442695
        %v1418 = vpow.pop %v1417
        %v1419 = vmul.f32 %v1209, 1.442695
        %v1420 = vpow.pop %v1419
        %v1421 = vmul.f32 %v1210, 1.442695
        %v1422 = vpow.pop %v1421
        %v1423 = vmul.f32 %v1211, 1.442695
        %v1424 = vpow.pop %v1423
        %v1425 = vmul.f32 %v1212, 1.442695
        %v1426 = vpow.pop %v1425
        %v1427 = vmul.f32 %v1213, 1.442695
        %v1428 = vpow.pop %v1427
        %v1429 = vmul.f32 %v1214, 1.442695
        %v1430 = vpow.pop %v1429
        %v1431 = vmul.f32 %v1215, 1.442695
        %v1432 = vpow.pop %v1431
        %v1433 = vmul.f32 %v1216, 1.442695
        %v1434 = vpow.pop %v1433
        %v1435 = vmul.f32 %v1217, 1.442695
        %v1436 = vpow.pop %v1435
        %v1437 = vmul.f32 %v1218, 1.442695
        %v1438 = vpow.pop %v1437
        %v1439 = vmul.f32 %v1219, 1.442695
        %v1440 = vpow.pop %v1439
        %v1441 = vmul.f32 %v1220, 1.442695
        %v1442 = vpow.pop %v1441
        %v1443 = vmul.f32 %v1221, 1.442695
        %v1444 = vpow.pop %v1443
        %v1445 = vmul.f32 %v1222, 1.442695
        %v1446 = vpow.pop %v1445
        %v1447 = vmul.f32 %v1223, 1.442695
        %v1448 = vpow.pop %v1447
        %v1449 = vmul.f32 %v1224, 1.442695
        %v1450 = vpow.pop %v1449
        %v1451 = vmul.f32 %v1225, 1.442695
        %v1452 = vpow.pop %v1451
        %v1453 = vmul.f32 %v1226, 1.442695
        %v1454 = vpow.pop %v1453
        %v1455 = vmul.f32 %v1227, 1.442695
        %v1456 = vpow.pop %v1455
        %v1457 = vmul.f32 %v1228, 1.442695
        %v1458 = vpow.pop %v1457
        %v1459 = vmul.f32 %v1229, 1.442695
        %v1460 = vpow.pop %v1459
        %v1461 = vmul.f32 %v1230, 1.442695
        %v1462 = vpow.pop %v1461
        %v1463 = vmul.f32 %v1231, 1.442695
        %v1464 = vpow.pop %v1463
        %v1465 = vmul.f32 %v1232, 1.442695
        %v1466 = vpow.pop %v1465
        %v1467 = vmul.f32 %v1233, 1.442695
        %v1468 = vpow.pop %v1467
        %v1469 = vmul.f32 %v1234, 1.442695
        %v1470 = vpow.pop %v1469
        %v1471 = vmul.f32 %v1235, 1.442695
        %v1472 = vpow.pop %v1471
        %v1473 = vmul.f32 %v1236, 1.442695
        %v1474 = vpow.pop %v1473
        %v1475 = vmul.f32 %v1237, 1.442695
        %v1476 = vpow.pop %v1475
        %v1477 = vmul.f32 %v1238, 1.442695
        %v1478 = vpow.pop %v1477
        %v1479 = vmul.f32 %v1239, 1.442695
        %v1480 = vpow.pop %v1479
        %v1481 = vmul.f32 %v1240, 1.442695
        %v1482 = vpow.pop %v1481
        %v1483 = vmul.f32 %v1241, 1.442695
        %v1484 = vpow.pop %v1483
        %v1485 = vmul.f32 %v1242, 1.442695
        %v1486 = vpow.pop %v1485
        %v1487 = vmul.f32 %v1243, 1.442695
        %v1488 = vpow.pop %v1487
        %v1489 = vmul.f32 %v1244, 1.442695
        %v1490 = vpow.pop %v1489
        %v1491 = vmul.f32 %v1245, 1.442695
        %v1492 = vpow.pop %v1491
        %v1493 = vmul.f32 %v1246, 1.442695
        %v1494 = vpow.pop %v1493
        %v1495 = vmul.f32 %v1247, 1.442695
        %v1496 = vpow.pop %v1495
        %v1497 = vmul.f32 %v1248, 1.442695
        %v1498 = vpow.pop %v1497
        %v1499 = vmul.f32 %v1249, 1.442695
        %v1500 = vpow.pop %v1499
        %v1501 = vmul.f32 %v1250, 1.442695
        %v1502 = vpow.pop %v1501
        %v1503 = vmul.f32 %v1251, 1.442695
        %v1504 = vpow.pop %v1503
        %v1505 = vmul.f32 %v1252, 1.442695
        %v1506 = vpow.pop %v1505
        %v1507 = vmul.f32 %v1253, 1.442695
        %v1508 = vpow.pop %v1507
        %v1509 = vmul.f32 %v1254, 1.442695
        %v1510 = vpow.pop %v1509
        %v1511 = vmax.f32 %v231, 0.0
        %v1512 = vmax.f32 %v232, 0.0
        %v1513 = vmax.f32 %v233, 0.0
        %v1514 = vmax.f32 %v234, 0.0
        %v1515 = vmax.f32 %v235, 0.0
        %v1516 = vmax.f32 %v236, 0.0
        %v1517 = vmax.f32 %v237, 0.0
        %v1518 = vmax.f32 %v238, 0.0
        %v1519 = vmax.f32 %v239, 0.0
        %v1520 = vmax.f32 %v240, 0.0
        %v1521 = vmax.f32 %v241, 0.0
        %v1522 = vmax.f32 %v242, 0.0
        %v1523 = vmax.f32 %v243, 0.0
        %v1524 = vmax.f32 %v244, 0.0
        %v1525 = vmax.f32 %v245, 0.0
        %v1526 = vmax.f32 %v246, 0.0
        %v1527 = vmax.f32 %v247, 0.0
        %v1528 = vmax.f32 %v248, 0.0
        %v1529 = vmax.f32 %v249, 0.0
        %v1530 = vmax.f32 %v250, 0.0
        %v1531 = vmax.f32 %v251, 0.0
        %v1532 = vmax.f32 %v252, 0.0
        %v1533 = vmax.f32 %v253, 0.0
        %v1534 = vmax.f32 %v254, 0.0
        %v1535 = vmax.f32 %v255, 0.0
        %v1536 = vmax.f32 %v256, 0.0
        %v1537 = vmax.f32 %v257, 0.0
        %v1538 = vmax.f32 %v258, 0.0
        %v1539 = vmax.f32 %v259, 0.0
        %v1540 = vmax.f32 %v260, 0.0
        %v1541 = vmax.f32 %v261, 0.0
        %v1542 = vmax.f32 %v262, 0.0
        %v1543 = vmax.f32 %v263, 0.0
        %v1544 = vmax.f32 %v264, 0.0
        %v1545 = vmax.f32 %v265, 0.0
        %v1546 = vmax.f32 %v266, 0.0
        %v1547 = vmax.f32 %v267, 0.0
        %v1548 = vmax.f32 %v268, 0.0
        %v1549 = vmax.f32 %v269, 0.0
        %v1550 = vmax.f32 %v270, 0.0
        %v1551 = vmax.f32 %v271, 0.0
        %v1552 = vmax.f32 %v272, 0.0
        %v1553 = vmax.f32 %v273, 0.0
        %v1554 = vmax.f32 %v274, 0.0
        %v1555 = vmax.f32 %v275, 0.0
        %v1556 = vmax.f32 %v276, 0.0
        %v1557 = vmax.f32 %v277, 0.0
        %v1558 = vmax.f32 %v278, 0.0
        %v1559 = vmax.f32 %v279, 0.0
        %v1560 = vmax.f32 %v280, 0.0
        %v1561 = vmax.f32 %v281, 0.0
        %v1562 = vmax.f32 %v282, 0.0
        %v1563 = vmax.f32 %v283, 0.0
        %v1564 = vmax.f32 %v284, 0.0
        %v1565 = vmax.f32 %v285, 0.0
        %v1566 = vmax.f32 %v286, 0.0
        %v1567 = vmax.f32 %v287, 0.0
        %v1568 = vmax.f32 %v288, 0.0
        %v1569 = vmax.f32 %v289, 0.0
        %v1570 = vmax.f32 %v290, 0.0
        %v1571 = vmax.f32 %v291, 0.0
        %v1572 = vmax.f32 %v292, 0.0
        %v1573 = vmax.f32 %v293, 0.0
        %v1574 = vmax.f32 %v294, 0.0
        %v1575 = vmax.f32 %v295, 0.0
        %v1576 = vmax.f32 %v296, 0.0
        %v1577 = vmax.f32 %v297, 0.0
        %v1578 = vmax.f32 %v298, 0.0
        %v1579 = vmax.f32 %v299, 0.0
        %v1580 = vmax.f32 %v300, 0.0
        %v1581 = vmax.f32 %v301, 0.0
        %v1582 = vmax.f32 %v302, 0.0
        %v1583 = vmax.f32 %v303, 0.0
        %v1584 = vmax.f32 %v304, 0.0
        %v1585 = vmax.f32 %v305, 0.0
        %v1586 = vmax.f32 %v306, 0.0
        %v1587 = vmax.f32 %v307, 0.0
        %v1588 = vmax.f32 %v308, 0.0
        %v1589 = vmax.f32 %v309, 0.0
        %v1590 = vmax.f32 %v310, 0.0
        %v1591 = vmax.f32 %v311, 0.0
        %v1592 = vmax.f32 %v312, 0.0
        %v1593 = vmax.f32 %v313, 0.0
        %v1594 = vmax.f32 %v314, 0.0
        %v1595 = vmax.f32 %v315, 0.0
        %v1596 = vmax.f32 %v316, 0.0
        %v1597 = vmax.f32 %v317, 0.0
        %v1598 = vmax.f32 %v318, 0.0
        %v1599 = vmax.f32 %v319, 0.0
        %v1600 = vmax.f32 %v320, 0.0
        %v1601 = vmax.f32 %v321, 0.0
        %v1602 = vmax.f32 %v322, 0.0
        %v1603 = vmax.f32 %v323, 0.0
        %v1604 = vmax.f32 %v324, 0.0
        %v1605 = vmax.f32 %v325, 0.0
        %v1606 = vmax.f32 %v326, 0.0
        %v1607 = vmax.f32 %v327, 0.0
        %v1608 = vmax.f32 %v328, 0.0
        %v1609 = vmax.f32 %v329, 0.0
        %v1610 = vmax.f32 %v330, 0.0
        %v1611 = vmax.f32 %v331, 0.0
        %v1612 = vmax.f32 %v332, 0.0
        %v1613 = vmax.f32 %v333, 0.0
        %v1614 = vmax.f32 %v334, 0.0
        %v1615 = vmax.f32 %v335, 0.0
        %v1616 = vmax.f32 %v336, 0.0
        %v1617 = vmax.f32 %v337, 0.0
        %v1618 = vmax.f32 %v338, 0.0
        %v1619 = vmax.f32 %v339, 0.0
        %v1620 = vmax.f32 %v340, 0.0
        %v1621 = vmax.f32 %v341, 0.0
        %v1622 = vmax.f32 %v342, 0.0
        %v1623 = vmax.f32 %v343, 0.0
        %v1624 = vmax.f32 %v344, 0.0
        %v1625 = vmax.f32 %v345, 0.0
        %v1626 = vmax.f32 %v346, 0.0
        %v1627 = vmax.f32 %v347, 0.0
        %v1628 = vmax.f32 %v348, 0.0
        %v1629 = vmax.f32 %v349, 0.0
        %v1630 = vmax.f32 %v350, 0.0
        %v1631 = vmax.f32 %v351, 0.0
        %v1632 = vmax.f32 %v352, 0.0
        %v1633 = vmax.f32 %v353, 0.0
        %v1634 = vmax.f32 %v354, 0.0
        %v1635 = vmax.f32 %v355, 0.0
        %v1636 = vmax.f32 %v356, 0.0
        %v1637 = vmax.f32 %v357, 0.0
        %v1638 = vmax.f32 %v358, 0.0
        %v1639 = vadd.f32 %v744, 1.0
        %v1640 = vlog2.pop %v1639
        %v1641 = vmul.f32 %v1640, 0.6931472
        %v1642 = vmul.f32 -0.5, %v744
        %v1643 = vadd.f32 %v1642, 1.0
        %v1644 = vmul.f32 %v1643, %v744
        %v1645 = vand.u32 2147483647, %v744
        %vm1646 = vcmp.lt.f32.partialorder %v1645, 0.0004427343
        %v1647 = vsel %vm1646, %v1644, %v1641
        %v1648 = vadd.f32 %v746, 1.0
        %v1649 = vlog2.pop %v1648
        %v1650 = vmul.f32 %v1649, 0.6931472
        %v1651 = vmul.f32 -0.5, %v746
        %v1652 = vadd.f32 %v1651, 1.0
        %v1653 = vmul.f32 %v1652, %v746
        %v1654 = vand.u32 2147483647, %v746
        %vm1655 = vcmp.lt.f32.partialorder %v1654, 0.0004427343
        %v1656 = vsel %vm1655, %v1653, %v1650
        %v1657 = vadd.f32 %v748, 1.0
        %v1658 = vlog2.pop %v1657
        %v1659 = vmul.f32 %v1658, 0.6931472
        %v1660 = vmul.f32 -0.5, %v748
        %v1661 = vadd.f32 %v1660, 1.0
        %v1662 = vmul.f32 %v1661, %v748
        %v1663 = vand.u32 2147483647, %v748
        %vm1664 = vcmp.lt.f32.partialorder %v1663, 0.0004427343
        %v1665 = vsel %vm1664, %v1662, %v1659
        %v1666 = vadd.f32 %v750, 1.0
        %v1667 = vlog2.pop %v1666
        %v1668 = vmul.f32 %v1667, 0.6931472
        %v1669 = vmul.f32 -0.5, %v750
        %v1670 = vadd.f32 %v1669, 1.0
        %v1671 = vmul.f32 %v1670, %v750
        %v1672 = vand.u32 2147483647, %v750
        %vm1673 = vcmp.lt.f32.partialorder %v1672, 0.0004427343
        %v1674 = vsel %vm1673, %v1671, %v1668
        %v1675 = vadd.f32 %v752, 1.0
        %v1676 = vlog2.pop %v1675
        %v1677 = vmul.f32 %v1676, 0.6931472
        %v1678 = vmul.f32 -0.5, %v752
        %v1679 = vadd.f32 %v1678, 1.0
        %v1680 = vmul.f32 %v1679, %v752
        %v1681 = vand.u32 2147483647, %v752
        %vm1682 = vcmp.lt.f32.partialorder %v1681, 0.0004427343
        %v1683 = vsel %vm1682, %v1680, %v1677
        %v1684 = vadd.f32 %v754, 1.0
        %v1685 = vlog2.pop %v1684
        %v1686 = vmul.f32 %v1685, 0.6931472
        %v1687 = vmul.f32 -0.5, %v754
        %v1688 = vadd.f32 %v1687, 1.0
        %v1689 = vmul.f32 %v1688, %v754
        %v1690 = vand.u32 2147483647, %v754
        %vm1691 = vcmp.lt.f32.partialorder %v1690, 0.0004427343
        %v1692 = vsel %vm1691, %v1689, %v1686
        %v1693 = vadd.f32 %v756, 1.0
        %v1694 = vlog2.pop %v1693
        %v1695 = vmul.f32 %v1694, 0.6931472
        %v1696 = vmul.f32 -0.5, %v756
        %v1697 = vadd.f32 %v1696, 1.0
        %v1698 = vmul.f32 %v1697, %v756
        %v1699 = vand.u32 2147483647, %v756
        %vm1700 = vcmp.lt.f32.partialorder %v1699, 0.0004427343
        %v1701 = vsel %vm1700, %v1698, %v1695
        %v1702 = vadd.f32 %v758, 1.0
        %v1703 = vlog2.pop %v1702
        %v1704 = vmul.f32 %v1703, 0.6931472
        %v1705 = vmul.f32 -0.5, %v758
        %v1706 = vadd.f32 %v1705, 1.0
        %v1707 = vmul.f32 %v1706, %v758
        %v1708 = vand.u32 2147483647, %v758
        %vm1709 = vcmp.lt.f32.partialorder %v1708, 0.0004427343
        %v1710 = vsel %vm1709, %v1707, %v1704
        %v1711 = vadd.f32 %v760, 1.0
        %v1712 = vlog2.pop %v1711
        %v1713 = vmul.f32 %v1712, 0.6931472
        %v1714 = vmul.f32 -0.5, %v760
        %v1715 = vadd.f32 %v1714, 1.0
        %v1716 = vmul.f32 %v1715, %v760
        %v1717 = vand.u32 2147483647, %v760
        %vm1718 = vcmp.lt.f32.partialorder %v1717, 0.0004427343
        %v1719 = vsel %vm1718, %v1716, %v1713
        %v1720 = vadd.f32 %v762, 1.0
        %v1721 = vlog2.pop %v1720
        %v1722 = vmul.f32 %v1721, 0.6931472
        %v1723 = vmul.f32 -0.5, %v762
        %v1724 = vadd.f32 %v1723, 1.0
        %v1725 = vmul.f32 %v1724, %v762
        %v1726 = vand.u32 2147483647, %v762
        %vm1727 = vcmp.lt.f32.partialorder %v1726, 0.0004427343
        %v1728 = vsel %vm1727, %v1725, %v1722
        %v1729 = vadd.f32 %v764, 1.0
        %v1730 = vlog2.pop %v1729
        %v1731 = vmul.f32 %v1730, 0.6931472
        %v1732 = vmul.f32 -0.5, %v764
        %v1733 = vadd.f32 %v1732, 1.0
        %v1734 = vmul.f32 %v1733, %v764
        %v1735 = vand.u32 2147483647, %v764
        %vm1736 = vcmp.lt.f32.partialorder %v1735, 0.0004427343
        %v1737 = vsel %vm1736, %v1734, %v1731
        %v1738 = vadd.f32 %v766, 1.0
        %v1739 = vlog2.pop %v1738
        %v1740 = vmul.f32 %v1739, 0.6931472
        %v1741 = vmul.f32 -0.5, %v766
        %v1742 = vadd.f32 %v1741, 1.0
        %v1743 = vmul.f32 %v1742, %v766
        %v1744 = vand.u32 2147483647, %v766
        %vm1745 = vcmp.lt.f32.partialorder %v1744, 0.0004427343
        %v1746 = vsel %vm1745, %v1743, %v1740
        %v1747 = vadd.f32 %v768, 1.0
        %v1748 = vlog2.pop %v1747
        %v1749 = vmul.f32 %v1748, 0.6931472
        %v1750 = vmul.f32 -0.5, %v768
        %v1751 = vadd.f32 %v1750, 1.0
        %v1752 = vmul.f32 %v1751, %v768
        %v1753 = vand.u32 2147483647, %v768
        %vm1754 = vcmp.lt.f32.partialorder %v1753, 0.0004427343
        %v1755 = vsel %vm1754, %v1752, %v1749
        %v1756 = vadd.f32 %v770, 1.0
        %v1757 = vlog2.pop %v1756
        %v1758 = vmul.f32 %v1757, 0.6931472
        %v1759 = vmul.f32 -0.5, %v770
        %v1760 = vadd.f32 %v1759, 1.0
        %v1761 = vmul.f32 %v1760, %v770
        %v1762 = vand.u32 2147483647, %v770
        %vm1763 = vcmp.lt.f32.partialorder %v1762, 0.0004427343
        %v1764 = vsel %vm1763, %v1761, %v1758
        %v1765 = vadd.f32 %v772, 1.0
        %v1766 = vlog2.pop %v1765
        %v1767 = vmul.f32 %v1766, 0.6931472
        %v1768 = vmul.f32 -0.5, %v772
        %v1769 = vadd.f32 %v1768, 1.0
        %v1770 = vmul.f32 %v1769, %v772
        %v1771 = vand.u32 2147483647, %v772
        %vm1772 = vcmp.lt.f32.partialorder %v1771, 0.0004427343
        %v1773 = vsel %vm1772, %v1770, %v1767
        %v1774 = vadd.f32 %v774, 1.0
        %v1775 = vlog2.pop %v1774
        %v1776 = vmul.f32 %v1775, 0.6931472
        %v1777 = vmul.f32 -0.5, %v774
        %v1778 = vadd.f32 %v1777, 1.0
        %v1779 = vmul.f32 %v1778, %v774
        %v1780 = vand.u32 2147483647, %v774
        %vm1781 = vcmp.lt.f32.partialorder %v1780, 0.0004427343
        %v1782 = vsel %vm1781, %v1779, %v1776
        %v1783 = vadd.f32 %v776, 1.0
        %v1784 = vlog2.pop %v1783
        %v1785 = vmul.f32 %v1784, 0.6931472
        %v1786 = vmul.f32 -0.5, %v776
        %v1787 = vadd.f32 %v1786, 1.0
        %v1788 = vmul.f32 %v1787, %v776
        %v1789 = vand.u32 2147483647, %v776
        %vm1790 = vcmp.lt.f32.partialorder %v1789, 0.0004427343
        %v1791 = vsel %vm1790, %v1788, %v1785
        %v1792 = vadd.f32 %v778, 1.0
        %v1793 = vlog2.pop %v1792
        %v1794 = vmul.f32 %v1793, 0.6931472
        %v1795 = vmul.f32 -0.5, %v778
        %v1796 = vadd.f32 %v1795, 1.0
        %v1797 = vmul.f32 %v1796, %v778
        %v1798 = vand.u32 2147483647, %v778
        %vm1799 = vcmp.lt.f32.partialorder %v1798, 0.0004427343
        %v1800 = vsel %vm1799, %v1797, %v1794
        %v1801 = vadd.f32 %v780, 1.0
        %v1802 = vlog2.pop %v1801
        %v1803 = vmul.f32 %v1802, 0.6931472
        %v1804 = vmul.f32 -0.5, %v780
        %v1805 = vadd.f32 %v1804, 1.0
        %v1806 = vmul.f32 %v1805, %v780
        %v1807 = vand.u32 2147483647, %v780
        %vm1808 = vcmp.lt.f32.partialorder %v1807, 0.0004427343
        %v1809 = vsel %vm1808, %v1806, %v1803
        %v1810 = vadd.f32 %v782, 1.0
        %v1811 = vlog2.pop %v1810
        %v1812 = vmul.f32 %v1811, 0.6931472
        %v1813 = vmul.f32 -0.5, %v782
        %v1814 = vadd.f32 %v1813, 1.0
        %v1815 = vmul.f32 %v1814, %v782
        %v1816 = vand.u32 2147483647, %v782
        %vm1817 = vcmp.lt.f32.partialorder %v1816, 0.0004427343
        %v1818 = vsel %vm1817, %v1815, %v1812
        %v1819 = vadd.f32 %v784, 1.0
        %v1820 = vlog2.pop %v1819
        %v1821 = vmul.f32 %v1820, 0.6931472
        %v1822 = vmul.f32 -0.5, %v784
        %v1823 = vadd.f32 %v1822, 1.0
        %v1824 = vmul.f32 %v1823, %v784
        %v1825 = vand.u32 2147483647, %v784
        %vm1826 = vcmp.lt.f32.partialorder %v1825, 0.0004427343
        %v1827 = vsel %vm1826, %v1824, %v1821
        %v1828 = vadd.f32 %v786, 1.0
        %v1829 = vlog2.pop %v1828
        %v1830 = vmul.f32 %v1829, 0.6931472
        %v1831 = vmul.f32 -0.5, %v786
        %v1832 = vadd.f32 %v1831, 1.0
        %v1833 = vmul.f32 %v1832, %v786
        %v1834 = vand.u32 2147483647, %v786
        %vm1835 = vcmp.lt.f32.partialorder %v1834, 0.0004427343
        %v1836 = vsel %vm1835, %v1833, %v1830
        %v1837 = vadd.f32 %v788, 1.0
        %v1838 = vlog2.pop %v1837
        %v1839 = vmul.f32 %v1838, 0.6931472
        %v1840 = vmul.f32 -0.5, %v788
        %v1841 = vadd.f32 %v1840, 1.0
        %v1842 = vmul.f32 %v1841, %v788
        %v1843 = vand.u32 2147483647, %v788
        %vm1844 = vcmp.lt.f32.partialorder %v1843, 0.0004427343
        %v1845 = vsel %vm1844, %v1842, %v1839
        %v1846 = vadd.f32 %v790, 1.0
        %v1847 = vlog2.pop %v1846
        %v1848 = vmul.f32 %v1847, 0.6931472
        %v1849 = vmul.f32 -0.5, %v790
        %v1850 = vadd.f32 %v1849, 1.0
        %v1851 = vmul.f32 %v1850, %v790
        %v1852 = vand.u32 2147483647, %v790
        %vm1853 = vcmp.lt.f32.partialorder %v1852, 0.0004427343
        %v1854 = vsel %vm1853, %v1851, %v1848
        %v1855 = vadd.f32 %v792, 1.0
        %v1856 = vlog2.pop %v1855
        %v1857 = vmul.f32 %v1856, 0.6931472
        %v1858 = vmul.f32 -0.5, %v792
        %v1859 = vadd.f32 %v1858, 1.0
        %v1860 = vmul.f32 %v1859, %v792
        %v1861 = vand.u32 2147483647, %v792
        %vm1862 = vcmp.lt.f32.partialorder %v1861, 0.0004427343
        %v1863 = vsel %vm1862, %v1860, %v1857
        %v1864 = vadd.f32 %v794, 1.0
        %v1865 = vlog2.pop %v1864
        %v1866 = vmul.f32 %v1865, 0.6931472
        %v1867 = vmul.f32 -0.5, %v794
        %v1868 = vadd.f32 %v1867, 1.0
        %v1869 = vmul.f32 %v1868, %v794
        %v1870 = vand.u32 2147483647, %v794
        %vm1871 = vcmp.lt.f32.partialorder %v1870, 0.0004427343
        %v1872 = vsel %vm1871, %v1869, %v1866
        %v1873 = vadd.f32 %v796, 1.0
        %v1874 = vlog2.pop %v1873
        %v1875 = vmul.f32 %v1874, 0.6931472
        %v1876 = vmul.f32 -0.5, %v796
        %v1877 = vadd.f32 %v1876, 1.0
        %v1878 = vmul.f32 %v1877, %v796
        %v1879 = vand.u32 2147483647, %v796
        %vm1880 = vcmp.lt.f32.partialorder %v1879, 0.0004427343
        %v1881 = vsel %vm1880, %v1878, %v1875
        %v1882 = vadd.f32 %v798, 1.0
        %v1883 = vlog2.pop %v1882
        %v1884 = vmul.f32 %v1883, 0.6931472
        %v1885 = vmul.f32 -0.5, %v798
        %v1886 = vadd.f32 %v1885, 1.0
        %v1887 = vmul.f32 %v1886, %v798
        %v1888 = vand.u32 2147483647, %v798
        %vm1889 = vcmp.lt.f32.partialorder %v1888, 0.0004427343
        %v1890 = vsel %vm1889, %v1887, %v1884
        %v1891 = vadd.f32 %v800, 1.0
        %v1892 = vlog2.pop %v1891
        %v1893 = vmul.f32 %v1892, 0.6931472
        %v1894 = vmul.f32 -0.5, %v800
        %v1895 = vadd.f32 %v1894, 1.0
        %v1896 = vmul.f32 %v1895, %v800
        %v1897 = vand.u32 2147483647, %v800
        %vm1898 = vcmp.lt.f32.partialorder %v1897, 0.0004427343
        %v1899 = vsel %vm1898, %v1896, %v1893
        %v1900 = vadd.f32 %v802, 1.0
        %v1901 = vlog2.pop %v1900
        %v1902 = vmul.f32 %v1901, 0.6931472
        %v1903 = vmul.f32 -0.5, %v802
        %v1904 = vadd.f32 %v1903, 1.0
        %v1905 = vmul.f32 %v1904, %v802
        %v1906 = vand.u32 2147483647, %v802
        %vm1907 = vcmp.lt.f32.partialorder %v1906, 0.0004427343
        %v1908 = vsel %vm1907, %v1905, %v1902
        %v1909 = vadd.f32 %v804, 1.0
        %v1910 = vlog2.pop %v1909
        %v1911 = vmul.f32 %v1910, 0.6931472
        %v1912 = vmul.f32 -0.5, %v804
        %v1913 = vadd.f32 %v1912, 1.0
        %v1914 = vmul.f32 %v1913, %v804
        %v1915 = vand.u32 2147483647, %v804
        %vm1916 = vcmp.lt.f32.partialorder %v1915, 0.0004427343
        %v1917 = vsel %vm1916, %v1914, %v1911
        %v1918 = vadd.f32 %v806, 1.0
        %v1919 = vlog2.pop %v1918
        %v1920 = vmul.f32 %v1919, 0.6931472
        %v1921 = vmul.f32 -0.5, %v806
        %v1922 = vadd.f32 %v1921, 1.0
        %v1923 = vmul.f32 %v1922, %v806
        %v1924 = vand.u32 2147483647, %v806
        %vm1925 = vcmp.lt.f32.partialorder %v1924, 0.0004427343
        %v1926 = vsel %vm1925, %v1923, %v1920
        %v1927 = vadd.f32 %v808, 1.0
        %v1928 = vlog2.pop %v1927
        %v1929 = vmul.f32 %v1928, 0.6931472
        %v1930 = vmul.f32 -0.5, %v808
        %v1931 = vadd.f32 %v1930, 1.0
        %v1932 = vmul.f32 %v1931, %v808
        %v1933 = vand.u32 2147483647, %v808
        %vm1934 = vcmp.lt.f32.partialorder %v1933, 0.0004427343
        %v1935 = vsel %vm1934, %v1932, %v1929
        %v1936 = vadd.f32 %v810, 1.0
        %v1937 = vlog2.pop %v1936
        %v1938 = vmul.f32 %v1937, 0.6931472
        %v1939 = vmul.f32 -0.5, %v810
        %v1940 = vadd.f32 %v1939, 1.0
        %v1941 = vmul.f32 %v1940, %v810
        %v1942 = vand.u32 2147483647, %v810
        %vm1943 = vcmp.lt.f32.partialorder %v1942, 0.0004427343
        %v1944 = vsel %vm1943, %v1941, %v1938
        %v1945 = vadd.f32 %v812, 1.0
        %v1946 = vlog2.pop %v1945
        %v1947 = vmul.f32 %v1946, 0.6931472
        %v1948 = vmul.f32 -0.5, %v812
        %v1949 = vadd.f32 %v1948, 1.0
        %v1950 = vmul.f32 %v1949, %v812
        %v1951 = vand.u32 2147483647, %v812
        %vm1952 = vcmp.lt.f32.partialorder %v1951, 0.0004427343
        %v1953 = vsel %vm1952, %v1950, %v1947
        %v1954 = vadd.f32 %v814, 1.0
        %v1955 = vlog2.pop %v1954
        %v1956 = vmul.f32 %v1955, 0.6931472
        %v1957 = vmul.f32 -0.5, %v814
        %v1958 = vadd.f32 %v1957, 1.0
        %v1959 = vmul.f32 %v1958, %v814
        %v1960 = vand.u32 2147483647, %v814
        %vm1961 = vcmp.lt.f32.partialorder %v1960, 0.0004427343
        %v1962 = vsel %vm1961, %v1959, %v1956
        %v1963 = vadd.f32 %v816, 1.0
        %v1964 = vlog2.pop %v1963
        %v1965 = vmul.f32 %v1964, 0.6931472
        %v1966 = vmul.f32 -0.5, %v816
        %v1967 = vadd.f32 %v1966, 1.0
        %v1968 = vmul.f32 %v1967, %v816
        %v1969 = vand.u32 2147483647, %v816
        %vm1970 = vcmp.lt.f32.partialorder %v1969, 0.0004427343
        %v1971 = vsel %vm1970, %v1968, %v1965
        %v1972 = vadd.f32 %v818, 1.0
        %v1973 = vlog2.pop %v1972
        %v1974 = vmul.f32 %v1973, 0.6931472
        %v1975 = vmul.f32 -0.5, %v818
        %v1976 = vadd.f32 %v1975, 1.0
        %v1977 = vmul.f32 %v1976, %v818
        %v1978 = vand.u32 2147483647, %v818
        %vm1979 = vcmp.lt.f32.partialorder %v1978, 0.0004427343
        %v1980 = vsel %vm1979, %v1977, %v1974
        %v1981 = vadd.f32 %v820, 1.0
        %v1982 = vlog2.pop %v1981
        %v1983 = vmul.f32 %v1982, 0.6931472
        %v1984 = vmul.f32 -0.5, %v820
        %v1985 = vadd.f32 %v1984, 1.0
        %v1986 = vmul.f32 %v1985, %v820
        %v1987 = vand.u32 2147483647, %v820
        %vm1988 = vcmp.lt.f32.partialorder %v1987, 0.0004427343
        %v1989 = vsel %vm1988, %v1986, %v1983
        %v1990 = vadd.f32 %v822, 1.0
        %v1991 = vlog2.pop %v1990
        %v1992 = vmul.f32 %v1991, 0.6931472
        %v1993 = vmul.f32 -0.5, %v822
        %v1994 = vadd.f32 %v1993, 1.0
        %v1995 = vmul.f32 %v1994, %v822
        %v1996 = vand.u32 2147483647, %v822
        %vm1997 = vcmp.lt.f32.partialorder %v1996, 0.0004427343
        %v1998 = vsel %vm1997, %v1995, %v1992
        %v1999 = vadd.f32 %v824, 1.0
        %v2000 = vlog2.pop %v1999
        %v2001 = vmul.f32 %v2000, 0.6931472
        %v2002 = vmul.f32 -0.5, %v824
        %v2003 = vadd.f32 %v2002, 1.0
        %v2004 = vmul.f32 %v2003, %v824
        %v2005 = vand.u32 2147483647, %v824
        %vm2006 = vcmp.lt.f32.partialorder %v2005, 0.0004427343
        %v2007 = vsel %vm2006, %v2004, %v2001
        %v2008 = vadd.f32 %v826, 1.0
        %v2009 = vlog2.pop %v2008
        %v2010 = vmul.f32 %v2009, 0.6931472
        %v2011 = vmul.f32 -0.5, %v826
        %v2012 = vadd.f32 %v2011, 1.0
        %v2013 = vmul.f32 %v2012, %v826
        %v2014 = vand.u32 2147483647, %v826
        %vm2015 = vcmp.lt.f32.partialorder %v2014, 0.0004427343
        %v2016 = vsel %vm2015, %v2013, %v2010
        %v2017 = vadd.f32 %v828, 1.0
        %v2018 = vlog2.pop %v2017
        %v2019 = vmul.f32 %v2018, 0.6931472
        %v2020 = vmul.f32 -0.5, %v828
        %v2021 = vadd.f32 %v2020, 1.0
        %v2022 = vmul.f32 %v2021, %v828
        %v2023 = vand.u32 2147483647, %v828
        %vm2024 = vcmp.lt.f32.partialorder %v2023, 0.0004427343
        %v2025 = vsel %vm2024, %v2022, %v2019
        %v2026 = vadd.f32 %v830, 1.0
        %v2027 = vlog2.pop %v2026
        %v2028 = vmul.f32 %v2027, 0.6931472
        %v2029 = vmul.f32 -0.5, %v830
        %v2030 = vadd.f32 %v2029, 1.0
        %v2031 = vmul.f32 %v2030, %v830
        %v2032 = vand.u32 2147483647, %v830
        %vm2033 = vcmp.lt.f32.partialorder %v2032, 0.0004427343
        %v2034 = vsel %vm2033, %v2031, %v2028
        %v2035 = vadd.f32 %v832, 1.0
        %v2036 = vlog2.pop %v2035
        %v2037 = vmul.f32 %v2036, 0.6931472
        %v2038 = vmul.f32 -0.5, %v832
        %v2039 = vadd.f32 %v2038, 1.0
        %v2040 = vmul.f32 %v2039, %v832
        %v2041 = vand.u32 2147483647, %v832
        %vm2042 = vcmp.lt.f32.partialorder %v2041, 0.0004427343
        %v2043 = vsel %vm2042, %v2040, %v2037
        %v2044 = vadd.f32 %v834, 1.0
        %v2045 = vlog2.pop %v2044
        %v2046 = vmul.f32 %v2045, 0.6931472
        %v2047 = vmul.f32 -0.5, %v834
        %v2048 = vadd.f32 %v2047, 1.0
        %v2049 = vmul.f32 %v2048, %v834
        %v2050 = vand.u32 2147483647, %v834
        %vm2051 = vcmp.lt.f32.partialorder %v2050, 0.0004427343
        %v2052 = vsel %vm2051, %v2049, %v2046
        %v2053 = vadd.f32 %v836, 1.0
        %v2054 = vlog2.pop %v2053
        %v2055 = vmul.f32 %v2054, 0.6931472
        %v2056 = vmul.f32 -0.5, %v836
        %v2057 = vadd.f32 %v2056, 1.0
        %v2058 = vmul.f32 %v2057, %v836
        %v2059 = vand.u32 2147483647, %v836
        %vm2060 = vcmp.lt.f32.partialorder %v2059, 0.0004427343
        %v2061 = vsel %vm2060, %v2058, %v2055
        %v2062 = vadd.f32 %v838, 1.0
        %v2063 = vlog2.pop %v2062
        %v2064 = vmul.f32 %v2063, 0.6931472
        %v2065 = vmul.f32 -0.5, %v838
        %v2066 = vadd.f32 %v2065, 1.0
        %v2067 = vmul.f32 %v2066, %v838
        %v2068 = vand.u32 2147483647, %v838
        %vm2069 = vcmp.lt.f32.partialorder %v2068, 0.0004427343
        %v2070 = vsel %vm2069, %v2067, %v2064
        %v2071 = vadd.f32 %v840, 1.0
        %v2072 = vlog2.pop %v2071
        %v2073 = vmul.f32 %v2072, 0.6931472
        %v2074 = vmul.f32 -0.5, %v840
        %v2075 = vadd.f32 %v2074, 1.0
        %v2076 = vmul.f32 %v2075, %v840
        %v2077 = vand.u32 2147483647, %v840
        %vm2078 = vcmp.lt.f32.partialorder %v2077, 0.0004427343
        %v2079 = vsel %vm2078, %v2076, %v2073
        %v2080 = vadd.f32 %v842, 1.0
        %v2081 = vlog2.pop %v2080
        %v2082 = vmul.f32 %v2081, 0.6931472
        %v2083 = vmul.f32 -0.5, %v842
        %v2084 = vadd.f32 %v2083, 1.0
        %v2085 = vmul.f32 %v2084, %v842
        %v2086 = vand.u32 2147483647, %v842
        %vm2087 = vcmp.lt.f32.partialorder %v2086, 0.0004427343
        %v2088 = vsel %vm2087, %v2085, %v2082
        %v2089 = vadd.f32 %v844, 1.0
        %v2090 = vlog2.pop %v2089
        %v2091 = vmul.f32 %v2090, 0.6931472
        %v2092 = vmul.f32 -0.5, %v844
        %v2093 = vadd.f32 %v2092, 1.0
        %v2094 = vmul.f32 %v2093, %v844
        %v2095 = vand.u32 2147483647, %v844
        %vm2096 = vcmp.lt.f32.partialorder %v2095, 0.0004427343
        %v2097 = vsel %vm2096, %v2094, %v2091
        %v2098 = vadd.f32 %v846, 1.0
        %v2099 = vlog2.pop %v2098
        %v2100 = vmul.f32 %v2099, 0.6931472
        %v2101 = vmul.f32 -0.5, %v846
        %v2102 = vadd.f32 %v2101, 1.0
        %v2103 = vmul.f32 %v2102, %v846
        %v2104 = vand.u32 2147483647, %v846
        %vm2105 = vcmp.lt.f32.partialorder %v2104, 0.0004427343
        %v2106 = vsel %vm2105, %v2103, %v2100
        %v2107 = vadd.f32 %v848, 1.0
        %v2108 = vlog2.pop %v2107
        %v2109 = vmul.f32 %v2108, 0.6931472
        %v2110 = vmul.f32 -0.5, %v848
        %v2111 = vadd.f32 %v2110, 1.0
        %v2112 = vmul.f32 %v2111, %v848
        %v2113 = vand.u32 2147483647, %v848
        %vm2114 = vcmp.lt.f32.partialorder %v2113, 0.0004427343
        %v2115 = vsel %vm2114, %v2112, %v2109
        %v2116 = vadd.f32 %v850, 1.0
        %v2117 = vlog2.pop %v2116
        %v2118 = vmul.f32 %v2117, 0.6931472
        %v2119 = vmul.f32 -0.5, %v850
        %v2120 = vadd.f32 %v2119, 1.0
        %v2121 = vmul.f32 %v2120, %v850
        %v2122 = vand.u32 2147483647, %v850
        %vm2123 = vcmp.lt.f32.partialorder %v2122, 0.0004427343
        %v2124 = vsel %vm2123, %v2121, %v2118
        %v2125 = vadd.f32 %v852, 1.0
        %v2126 = vlog2.pop %v2125
        %v2127 = vmul.f32 %v2126, 0.6931472
        %v2128 = vmul.f32 -0.5, %v852
        %v2129 = vadd.f32 %v2128, 1.0
        %v2130 = vmul.f32 %v2129, %v852
        %v2131 = vand.u32 2147483647, %v852
        %vm2132 = vcmp.lt.f32.partialorder %v2131, 0.0004427343
        %v2133 = vsel %vm2132, %v2130, %v2127
        %v2134 = vadd.f32 %v854, 1.0
        %v2135 = vlog2.pop %v2134
        %v2136 = vmul.f32 %v2135, 0.6931472
        %v2137 = vmul.f32 -0.5, %v854
        %v2138 = vadd.f32 %v2137, 1.0
        %v2139 = vmul.f32 %v2138, %v854
        %v2140 = vand.u32 2147483647, %v854
        %vm2141 = vcmp.lt.f32.partialorder %v2140, 0.0004427343
        %v2142 = vsel %vm2141, %v2139, %v2136
        %v2143 = vadd.f32 %v856, 1.0
        %v2144 = vlog2.pop %v2143
        %v2145 = vmul.f32 %v2144, 0.6931472
        %v2146 = vmul.f32 -0.5, %v856
        %v2147 = vadd.f32 %v2146, 1.0
        %v2148 = vmul.f32 %v2147, %v856
        %v2149 = vand.u32 2147483647, %v856
        %vm2150 = vcmp.lt.f32.partialorder %v2149, 0.0004427343
        %v2151 = vsel %vm2150, %v2148, %v2145
        %v2152 = vadd.f32 %v858, 1.0
        %v2153 = vlog2.pop %v2152
        %v2154 = vmul.f32 %v2153, 0.6931472
        %v2155 = vmul.f32 -0.5, %v858
        %v2156 = vadd.f32 %v2155, 1.0
        %v2157 = vmul.f32 %v2156, %v858
        %v2158 = vand.u32 2147483647, %v858
        %vm2159 = vcmp.lt.f32.partialorder %v2158, 0.0004427343
        %v2160 = vsel %vm2159, %v2157, %v2154
        %v2161 = vadd.f32 %v860, 1.0
        %v2162 = vlog2.pop %v2161
        %v2163 = vmul.f32 %v2162, 0.6931472
        %v2164 = vmul.f32 -0.5, %v860
        %v2165 = vadd.f32 %v2164, 1.0
        %v2166 = vmul.f32 %v2165, %v860
        %v2167 = vand.u32 2147483647, %v860
        %vm2168 = vcmp.lt.f32.partialorder %v2167, 0.0004427343
        %v2169 = vsel %vm2168, %v2166, %v2163
        %v2170 = vadd.f32 %v862, 1.0
        %v2171 = vlog2.pop %v2170
        %v2172 = vmul.f32 %v2171, 0.6931472
        %v2173 = vmul.f32 -0.5, %v862
        %v2174 = vadd.f32 %v2173, 1.0
        %v2175 = vmul.f32 %v2174, %v862
        %v2176 = vand.u32 2147483647, %v862
        %vm2177 = vcmp.lt.f32.partialorder %v2176, 0.0004427343
        %v2178 = vsel %vm2177, %v2175, %v2172
        %v2179 = vadd.f32 %v864, 1.0
        %v2180 = vlog2.pop %v2179
        %v2181 = vmul.f32 %v2180, 0.6931472
        %v2182 = vmul.f32 -0.5, %v864
        %v2183 = vadd.f32 %v2182, 1.0
        %v2184 = vmul.f32 %v2183, %v864
        %v2185 = vand.u32 2147483647, %v864
        %vm2186 = vcmp.lt.f32.partialorder %v2185, 0.0004427343
        %v2187 = vsel %vm2186, %v2184, %v2181
        %v2188 = vadd.f32 %v866, 1.0
        %v2189 = vlog2.pop %v2188
        %v2190 = vmul.f32 %v2189, 0.6931472
        %v2191 = vmul.f32 -0.5, %v866
        %v2192 = vadd.f32 %v2191, 1.0
        %v2193 = vmul.f32 %v2192, %v866
        %v2194 = vand.u32 2147483647, %v866
        %vm2195 = vcmp.lt.f32.partialorder %v2194, 0.0004427343
        %v2196 = vsel %vm2195, %v2193, %v2190
        %v2197 = vadd.f32 %v868, 1.0
        %v2198 = vlog2.pop %v2197
        %v2199 = vmul.f32 %v2198, 0.6931472
        %v2200 = vmul.f32 -0.5, %v868
        %v2201 = vadd.f32 %v2200, 1.0
        %v2202 = vmul.f32 %v2201, %v868
        %v2203 = vand.u32 2147483647, %v868
        %vm2204 = vcmp.lt.f32.partialorder %v2203, 0.0004427343
        %v2205 = vsel %vm2204, %v2202, %v2199
        %v2206 = vadd.f32 %v870, 1.0
        %v2207 = vlog2.pop %v2206
        %v2208 = vmul.f32 %v2207, 0.6931472
        %v2209 = vmul.f32 -0.5, %v870
        %v2210 = vadd.f32 %v2209, 1.0
        %v2211 = vmul.f32 %v2210, %v870
        %v2212 = vand.u32 2147483647, %v870
        %vm2213 = vcmp.lt.f32.partialorder %v2212, 0.0004427343
        %v2214 = vsel %vm2213, %v2211, %v2208
        %v2215 = vadd.f32 %v872, 1.0
        %v2216 = vlog2.pop %v2215
        %v2217 = vmul.f32 %v2216, 0.6931472
        %v2218 = vmul.f32 -0.5, %v872
        %v2219 = vadd.f32 %v2218, 1.0
        %v2220 = vmul.f32 %v2219, %v872
        %v2221 = vand.u32 2147483647, %v872
        %vm2222 = vcmp.lt.f32.partialorder %v2221, 0.0004427343
        %v2223 = vsel %vm2222, %v2220, %v2217
        %v2224 = vadd.f32 %v874, 1.0
        %v2225 = vlog2.pop %v2224
        %v2226 = vmul.f32 %v2225, 0.6931472
        %v2227 = vmul.f32 -0.5, %v874
        %v2228 = vadd.f32 %v2227, 1.0
        %v2229 = vmul.f32 %v2228, %v874
        %v2230 = vand.u32 2147483647, %v874
        %vm2231 = vcmp.lt.f32.partialorder %v2230, 0.0004427343
        %v2232 = vsel %vm2231, %v2229, %v2226
        %v2233 = vadd.f32 %v876, 1.0
        %v2234 = vlog2.pop %v2233
        %v2235 = vmul.f32 %v2234, 0.6931472
        %v2236 = vmul.f32 -0.5, %v876
        %v2237 = vadd.f32 %v2236, 1.0
        %v2238 = vmul.f32 %v2237, %v876
        %v2239 = vand.u32 2147483647, %v876
        %vm2240 = vcmp.lt.f32.partialorder %v2239, 0.0004427343
        %v2241 = vsel %vm2240, %v2238, %v2235
        %v2242 = vadd.f32 %v878, 1.0
        %v2243 = vlog2.pop %v2242
        %v2244 = vmul.f32 %v2243, 0.6931472
        %v2245 = vmul.f32 -0.5, %v878
        %v2246 = vadd.f32 %v2245, 1.0
        %v2247 = vmul.f32 %v2246, %v878
        %v2248 = vand.u32 2147483647, %v878
        %vm2249 = vcmp.lt.f32.partialorder %v2248, 0.0004427343
        %v2250 = vsel %vm2249, %v2247, %v2244
        %v2251 = vadd.f32 %v880, 1.0
        %v2252 = vlog2.pop %v2251
        %v2253 = vmul.f32 %v2252, 0.6931472
        %v2254 = vmul.f32 -0.5, %v880
        %v2255 = vadd.f32 %v2254, 1.0
        %v2256 = vmul.f32 %v2255, %v880
        %v2257 = vand.u32 2147483647, %v880
        %vm2258 = vcmp.lt.f32.partialorder %v2257, 0.0004427343
        %v2259 = vsel %vm2258, %v2256, %v2253
        %v2260 = vadd.f32 %v882, 1.0
        %v2261 = vlog2.pop %v2260
        %v2262 = vmul.f32 %v2261, 0.6931472
        %v2263 = vmul.f32 -0.5, %v882
        %v2264 = vadd.f32 %v2263, 1.0
        %v2265 = vmul.f32 %v2264, %v882
        %v2266 = vand.u32 2147483647, %v882
        %vm2267 = vcmp.lt.f32.partialorder %v2266, 0.0004427343
        %v2268 = vsel %vm2267, %v2265, %v2262
        %v2269 = vadd.f32 %v884, 1.0
        %v2270 = vlog2.pop %v2269
        %v2271 = vmul.f32 %v2270, 0.6931472
        %v2272 = vmul.f32 -0.5, %v884
        %v2273 = vadd.f32 %v2272, 1.0
        %v2274 = vmul.f32 %v2273, %v884
        %v2275 = vand.u32 2147483647, %v884
        %vm2276 = vcmp.lt.f32.partialorder %v2275, 0.0004427343
        %v2277 = vsel %vm2276, %v2274, %v2271
        %v2278 = vadd.f32 %v886, 1.0
        %v2279 = vlog2.pop %v2278
        %v2280 = vmul.f32 %v2279, 0.6931472
        %v2281 = vmul.f32 -0.5, %v886
        %v2282 = vadd.f32 %v2281, 1.0
        %v2283 = vmul.f32 %v2282, %v886
        %v2284 = vand.u32 2147483647, %v886
        %vm2285 = vcmp.lt.f32.partialorder %v2284, 0.0004427343
        %v2286 = vsel %vm2285, %v2283, %v2280
        %v2287 = vadd.f32 %v888, 1.0
        %v2288 = vlog2.pop %v2287
        %v2289 = vmul.f32 %v2288, 0.6931472
        %v2290 = vmul.f32 -0.5, %v888
        %v2291 = vadd.f32 %v2290, 1.0
        %v2292 = vmul.f32 %v2291, %v888
        %v2293 = vand.u32 2147483647, %v888
        %vm2294 = vcmp.lt.f32.partialorder %v2293, 0.0004427343
        %v2295 = vsel %vm2294, %v2292, %v2289
        %v2296 = vadd.f32 %v890, 1.0
        %v2297 = vlog2.pop %v2296
        %v2298 = vmul.f32 %v2297, 0.6931472
        %v2299 = vmul.f32 -0.5, %v890
        %v2300 = vadd.f32 %v2299, 1.0
        %v2301 = vmul.f32 %v2300, %v890
        %v2302 = vand.u32 2147483647, %v890
        %vm2303 = vcmp.lt.f32.partialorder %v2302, 0.0004427343
        %v2304 = vsel %vm2303, %v2301, %v2298
        %v2305 = vadd.f32 %v892, 1.0
        %v2306 = vlog2.pop %v2305
        %v2307 = vmul.f32 %v2306, 0.6931472
        %v2308 = vmul.f32 -0.5, %v892
        %v2309 = vadd.f32 %v2308, 1.0
        %v2310 = vmul.f32 %v2309, %v892
        %v2311 = vand.u32 2147483647, %v892
        %vm2312 = vcmp.lt.f32.partialorder %v2311, 0.0004427343
        %v2313 = vsel %vm2312, %v2310, %v2307
        %v2314 = vadd.f32 %v894, 1.0
        %v2315 = vlog2.pop %v2314
        %v2316 = vmul.f32 %v2315, 0.6931472
        %v2317 = vmul.f32 -0.5, %v894
        %v2318 = vadd.f32 %v2317, 1.0
        %v2319 = vmul.f32 %v2318, %v894
        %v2320 = vand.u32 2147483647, %v894
        %vm2321 = vcmp.lt.f32.partialorder %v2320, 0.0004427343
        %v2322 = vsel %vm2321, %v2319, %v2316
        %v2323 = vadd.f32 %v896, 1.0
        %v2324 = vlog2.pop %v2323
        %v2325 = vmul.f32 %v2324, 0.6931472
        %v2326 = vmul.f32 -0.5, %v896
        %v2327 = vadd.f32 %v2326, 1.0
        %v2328 = vmul.f32 %v2327, %v896
        %v2329 = vand.u32 2147483647, %v896
        %vm2330 = vcmp.lt.f32.partialorder %v2329, 0.0004427343
        %v2331 = vsel %vm2330, %v2328, %v2325
        %v2332 = vadd.f32 %v898, 1.0
        %v2333 = vlog2.pop %v2332
        %v2334 = vmul.f32 %v2333, 0.6931472
        %v2335 = vmul.f32 -0.5, %v898
        %v2336 = vadd.f32 %v2335, 1.0
        %v2337 = vmul.f32 %v2336, %v898
        %v2338 = vand.u32 2147483647, %v898
        %vm2339 = vcmp.lt.f32.partialorder %v2338, 0.0004427343
        %v2340 = vsel %vm2339, %v2337, %v2334
        %v2341 = vadd.f32 %v900, 1.0
        %v2342 = vlog2.pop %v2341
        %v2343 = vmul.f32 %v2342, 0.6931472
        %v2344 = vmul.f32 -0.5, %v900
        %v2345 = vadd.f32 %v2344, 1.0
        %v2346 = vmul.f32 %v2345, %v900
        %v2347 = vand.u32 2147483647, %v900
        %vm2348 = vcmp.lt.f32.partialorder %v2347, 0.0004427343
        %v2349 = vsel %vm2348, %v2346, %v2343
        %v2350 = vadd.f32 %v902, 1.0
        %v2351 = vlog2.pop %v2350
        %v2352 = vmul.f32 %v2351, 0.6931472
        %v2353 = vmul.f32 -0.5, %v902
        %v2354 = vadd.f32 %v2353, 1.0
        %v2355 = vmul.f32 %v2354, %v902
        %v2356 = vand.u32 2147483647, %v902
        %vm2357 = vcmp.lt.f32.partialorder %v2356, 0.0004427343
        %v2358 = vsel %vm2357, %v2355, %v2352
        %v2359 = vadd.f32 %v904, 1.0
        %v2360 = vlog2.pop %v2359
        %v2361 = vmul.f32 %v2360, 0.6931472
        %v2362 = vmul.f32 -0.5, %v904
        %v2363 = vadd.f32 %v2362, 1.0
        %v2364 = vmul.f32 %v2363, %v904
        %v2365 = vand.u32 2147483647, %v904
        %vm2366 = vcmp.lt.f32.partialorder %v2365, 0.0004427343
        %v2367 = vsel %vm2366, %v2364, %v2361
        %v2368 = vadd.f32 %v906, 1.0
        %v2369 = vlog2.pop %v2368
        %v2370 = vmul.f32 %v2369, 0.6931472
        %v2371 = vmul.f32 -0.5, %v906
        %v2372 = vadd.f32 %v2371, 1.0
        %v2373 = vmul.f32 %v2372, %v906
        %v2374 = vand.u32 2147483647, %v906
        %vm2375 = vcmp.lt.f32.partialorder %v2374, 0.0004427343
        %v2376 = vsel %vm2375, %v2373, %v2370
        %v2377 = vadd.f32 %v908, 1.0
        %v2378 = vlog2.pop %v2377
        %v2379 = vmul.f32 %v2378, 0.6931472
        %v2380 = vmul.f32 -0.5, %v908
        %v2381 = vadd.f32 %v2380, 1.0
        %v2382 = vmul.f32 %v2381, %v908
        %v2383 = vand.u32 2147483647, %v908
        %vm2384 = vcmp.lt.f32.partialorder %v2383, 0.0004427343
        %v2385 = vsel %vm2384, %v2382, %v2379
        %v2386 = vadd.f32 %v910, 1.0
        %v2387 = vlog2.pop %v2386
        %v2388 = vmul.f32 %v2387, 0.6931472
        %v2389 = vmul.f32 -0.5, %v910
        %v2390 = vadd.f32 %v2389, 1.0
        %v2391 = vmul.f32 %v2390, %v910
        %v2392 = vand.u32 2147483647, %v910
        %vm2393 = vcmp.lt.f32.partialorder %v2392, 0.0004427343
        %v2394 = vsel %vm2393, %v2391, %v2388
        %v2395 = vadd.f32 %v912, 1.0
        %v2396 = vlog2.pop %v2395
        %v2397 = vmul.f32 %v2396, 0.6931472
        %v2398 = vmul.f32 -0.5, %v912
        %v2399 = vadd.f32 %v2398, 1.0
        %v2400 = vmul.f32 %v2399, %v912
        %v2401 = vand.u32 2147483647, %v912
        %vm2402 = vcmp.lt.f32.partialorder %v2401, 0.0004427343
        %v2403 = vsel %vm2402, %v2400, %v2397
        %v2404 = vadd.f32 %v914, 1.0
        %v2405 = vlog2.pop %v2404
        %v2406 = vmul.f32 %v2405, 0.6931472
        %v2407 = vmul.f32 -0.5, %v914
        %v2408 = vadd.f32 %v2407, 1.0
        %v2409 = vmul.f32 %v2408, %v914
        %v2410 = vand.u32 2147483647, %v914
        %vm2411 = vcmp.lt.f32.partialorder %v2410, 0.0004427343
        %v2412 = vsel %vm2411, %v2409, %v2406
        %v2413 = vadd.f32 %v916, 1.0
        %v2414 = vlog2.pop %v2413
        %v2415 = vmul.f32 %v2414, 0.6931472
        %v2416 = vmul.f32 -0.5, %v916
        %v2417 = vadd.f32 %v2416, 1.0
        %v2418 = vmul.f32 %v2417, %v916
        %v2419 = vand.u32 2147483647, %v916
        %vm2420 = vcmp.lt.f32.partialorder %v2419, 0.0004427343
        %v2421 = vsel %vm2420, %v2418, %v2415
        %v2422 = vadd.f32 %v918, 1.0
        %v2423 = vlog2.pop %v2422
        %v2424 = vmul.f32 %v2423, 0.6931472
        %v2425 = vmul.f32 -0.5, %v918
        %v2426 = vadd.f32 %v2425, 1.0
        %v2427 = vmul.f32 %v2426, %v918
        %v2428 = vand.u32 2147483647, %v918
        %vm2429 = vcmp.lt.f32.partialorder %v2428, 0.0004427343
        %v2430 = vsel %vm2429, %v2427, %v2424
        %v2431 = vadd.f32 %v920, 1.0
        %v2432 = vlog2.pop %v2431
        %v2433 = vmul.f32 %v2432, 0.6931472
        %v2434 = vmul.f32 -0.5, %v920
        %v2435 = vadd.f32 %v2434, 1.0
        %v2436 = vmul.f32 %v2435, %v920
        %v2437 = vand.u32 2147483647, %v920
        %vm2438 = vcmp.lt.f32.partialorder %v2437, 0.0004427343
        %v2439 = vsel %vm2438, %v2436, %v2433
        %v2440 = vadd.f32 %v922, 1.0
        %v2441 = vlog2.pop %v2440
        %v2442 = vmul.f32 %v2441, 0.6931472
        %v2443 = vmul.f32 -0.5, %v922
        %v2444 = vadd.f32 %v2443, 1.0
        %v2445 = vmul.f32 %v2444, %v922
        %v2446 = vand.u32 2147483647, %v922
        %vm2447 = vcmp.lt.f32.partialorder %v2446, 0.0004427343
        %v2448 = vsel %vm2447, %v2445, %v2442
        %v2449 = vadd.f32 %v924, 1.0
        %v2450 = vlog2.pop %v2449
        %v2451 = vmul.f32 %v2450, 0.6931472
        %v2452 = vmul.f32 -0.5, %v924
        %v2453 = vadd.f32 %v2452, 1.0
        %v2454 = vmul.f32 %v2453, %v924
        %v2455 = vand.u32 2147483647, %v924
        %vm2456 = vcmp.lt.f32.partialorder %v2455, 0.0004427343
        %v2457 = vsel %vm2456, %v2454, %v2451
        %v2458 = vadd.f32 %v926, 1.0
        %v2459 = vlog2.pop %v2458
        %v2460 = vmul.f32 %v2459, 0.6931472
        %v2461 = vmul.f32 -0.5, %v926
        %v2462 = vadd.f32 %v2461, 1.0
        %v2463 = vmul.f32 %v2462, %v926
        %v2464 = vand.u32 2147483647, %v926
        %vm2465 = vcmp.lt.f32.partialorder %v2464, 0.0004427343
        %v2466 = vsel %vm2465, %v2463, %v2460
        %v2467 = vadd.f32 %v928, 1.0
        %v2468 = vlog2.pop %v2467
        %v2469 = vmul.f32 %v2468, 0.6931472
        %v2470 = vmul.f32 -0.5, %v928
        %v2471 = vadd.f32 %v2470, 1.0
        %v2472 = vmul.f32 %v2471, %v928
        %v2473 = vand.u32 2147483647, %v928
        %vm2474 = vcmp.lt.f32.partialorder %v2473, 0.0004427343
        %v2475 = vsel %vm2474, %v2472, %v2469
        %v2476 = vadd.f32 %v930, 1.0
        %v2477 = vlog2.pop %v2476
        %v2478 = vmul.f32 %v2477, 0.6931472
        %v2479 = vmul.f32 -0.5, %v930
        %v2480 = vadd.f32 %v2479, 1.0
        %v2481 = vmul.f32 %v2480, %v930
        %v2482 = vand.u32 2147483647, %v930
        %vm2483 = vcmp.lt.f32.partialorder %v2482, 0.0004427343
        %v2484 = vsel %vm2483, %v2481, %v2478
        %v2485 = vadd.f32 %v932, 1.0
        %v2486 = vlog2.pop %v2485
        %v2487 = vmul.f32 %v2486, 0.6931472
        %v2488 = vmul.f32 -0.5, %v932
        %v2489 = vadd.f32 %v2488, 1.0
        %v2490 = vmul.f32 %v2489, %v932
        %v2491 = vand.u32 2147483647, %v932
        %vm2492 = vcmp.lt.f32.partialorder %v2491, 0.0004427343
        %v2493 = vsel %vm2492, %v2490, %v2487
        %v2494 = vadd.f32 %v934, 1.0
        %v2495 = vlog2.pop %v2494
        %v2496 = vmul.f32 %v2495, 0.6931472
        %v2497 = vmul.f32 -0.5, %v934
        %v2498 = vadd.f32 %v2497, 1.0
        %v2499 = vmul.f32 %v2498, %v934
        %v2500 = vand.u32 2147483647, %v934
        %vm2501 = vcmp.lt.f32.partialorder %v2500, 0.0004427343
        %v2502 = vsel %vm2501, %v2499, %v2496
        %v2503 = vadd.f32 %v936, 1.0
        %v2504 = vlog2.pop %v2503
        %v2505 = vmul.f32 %v2504, 0.6931472
        %v2506 = vmul.f32 -0.5, %v936
        %v2507 = vadd.f32 %v2506, 1.0
        %v2508 = vmul.f32 %v2507, %v936
        %v2509 = vand.u32 2147483647, %v936
        %vm2510 = vcmp.lt.f32.partialorder %v2509, 0.0004427343
        %v2511 = vsel %vm2510, %v2508, %v2505
        %v2512 = vadd.f32 %v938, 1.0
        %v2513 = vlog2.pop %v2512
        %v2514 = vmul.f32 %v2513, 0.6931472
        %v2515 = vmul.f32 -0.5, %v938
        %v2516 = vadd.f32 %v2515, 1.0
        %v2517 = vmul.f32 %v2516, %v938
        %v2518 = vand.u32 2147483647, %v938
        %vm2519 = vcmp.lt.f32.partialorder %v2518, 0.0004427343
        %v2520 = vsel %vm2519, %v2517, %v2514
        %v2521 = vadd.f32 %v940, 1.0
        %v2522 = vlog2.pop %v2521
        %v2523 = vmul.f32 %v2522, 0.6931472
        %v2524 = vmul.f32 -0.5, %v940
        %v2525 = vadd.f32 %v2524, 1.0
        %v2526 = vmul.f32 %v2525, %v940
        %v2527 = vand.u32 2147483647, %v940
        %vm2528 = vcmp.lt.f32.partialorder %v2527, 0.0004427343
        %v2529 = vsel %vm2528, %v2526, %v2523
        %v2530 = vadd.f32 %v942, 1.0
        %v2531 = vlog2.pop %v2530
        %v2532 = vmul.f32 %v2531, 0.6931472
        %v2533 = vmul.f32 -0.5, %v942
        %v2534 = vadd.f32 %v2533, 1.0
        %v2535 = vmul.f32 %v2534, %v942
        %v2536 = vand.u32 2147483647, %v942
        %vm2537 = vcmp.lt.f32.partialorder %v2536, 0.0004427343
        %v2538 = vsel %vm2537, %v2535, %v2532
        %v2539 = vadd.f32 %v944, 1.0
        %v2540 = vlog2.pop %v2539
        %v2541 = vmul.f32 %v2540, 0.6931472
        %v2542 = vmul.f32 -0.5, %v944
        %v2543 = vadd.f32 %v2542, 1.0
        %v2544 = vmul.f32 %v2543, %v944
        %v2545 = vand.u32 2147483647, %v944
        %vm2546 = vcmp.lt.f32.partialorder %v2545, 0.0004427343
        %v2547 = vsel %vm2546, %v2544, %v2541
        %v2548 = vadd.f32 %v946, 1.0
        %v2549 = vlog2.pop %v2548
        %v2550 = vmul.f32 %v2549, 0.6931472
        %v2551 = vmul.f32 -0.5, %v946
        %v2552 = vadd.f32 %v2551, 1.0
        %v2553 = vmul.f32 %v2552, %v946
        %v2554 = vand.u32 2147483647, %v946
        %vm2555 = vcmp.lt.f32.partialorder %v2554, 0.0004427343
        %v2556 = vsel %vm2555, %v2553, %v2550
        %v2557 = vadd.f32 %v948, 1.0
        %v2558 = vlog2.pop %v2557
        %v2559 = vmul.f32 %v2558, 0.6931472
        %v2560 = vmul.f32 -0.5, %v948
        %v2561 = vadd.f32 %v2560, 1.0
        %v2562 = vmul.f32 %v2561, %v948
        %v2563 = vand.u32 2147483647, %v948
        %vm2564 = vcmp.lt.f32.partialorder %v2563, 0.0004427343
        %v2565 = vsel %vm2564, %v2562, %v2559
        %v2566 = vadd.f32 %v950, 1.0
        %v2567 = vlog2.pop %v2566
        %v2568 = vmul.f32 %v2567, 0.6931472
        %v2569 = vmul.f32 -0.5, %v950
        %v2570 = vadd.f32 %v2569, 1.0
        %v2571 = vmul.f32 %v2570, %v950
        %v2572 = vand.u32 2147483647, %v950
        %vm2573 = vcmp.lt.f32.partialorder %v2572, 0.0004427343
        %v2574 = vsel %vm2573, %v2571, %v2568
        %v2575 = vadd.f32 %v952, 1.0
        %v2576 = vlog2.pop %v2575
        %v2577 = vmul.f32 %v2576, 0.6931472
        %v2578 = vmul.f32 -0.5, %v952
        %v2579 = vadd.f32 %v2578, 1.0
        %v2580 = vmul.f32 %v2579, %v952
        %v2581 = vand.u32 2147483647, %v952
        %vm2582 = vcmp.lt.f32.partialorder %v2581, 0.0004427343
        %v2583 = vsel %vm2582, %v2580, %v2577
        %v2584 = vadd.f32 %v954, 1.0
        %v2585 = vlog2.pop %v2584
        %v2586 = vmul.f32 %v2585, 0.6931472
        %v2587 = vmul.f32 -0.5, %v954
        %v2588 = vadd.f32 %v2587, 1.0
        %v2589 = vmul.f32 %v2588, %v954
        %v2590 = vand.u32 2147483647, %v954
        %vm2591 = vcmp.lt.f32.partialorder %v2590, 0.0004427343
        %v2592 = vsel %vm2591, %v2589, %v2586
        %v2593 = vadd.f32 %v956, 1.0
        %v2594 = vlog2.pop %v2593
        %v2595 = vmul.f32 %v2594, 0.6931472
        %v2596 = vmul.f32 -0.5, %v956
        %v2597 = vadd.f32 %v2596, 1.0
        %v2598 = vmul.f32 %v2597, %v956
        %v2599 = vand.u32 2147483647, %v956
        %vm2600 = vcmp.lt.f32.partialorder %v2599, 0.0004427343
        %v2601 = vsel %vm2600, %v2598, %v2595
        %v2602 = vadd.f32 %v958, 1.0
        %v2603 = vlog2.pop %v2602
        %v2604 = vmul.f32 %v2603, 0.6931472
        %v2605 = vmul.f32 -0.5, %v958
        %v2606 = vadd.f32 %v2605, 1.0
        %v2607 = vmul.f32 %v2606, %v958
        %v2608 = vand.u32 2147483647, %v958
        %vm2609 = vcmp.lt.f32.partialorder %v2608, 0.0004427343
        %v2610 = vsel %vm2609, %v2607, %v2604
        %v2611 = vadd.f32 %v960, 1.0
        %v2612 = vlog2.pop %v2611
        %v2613 = vmul.f32 %v2612, 0.6931472
        %v2614 = vmul.f32 -0.5, %v960
        %v2615 = vadd.f32 %v2614, 1.0
        %v2616 = vmul.f32 %v2615, %v960
        %v2617 = vand.u32 2147483647, %v960
        %vm2618 = vcmp.lt.f32.partialorder %v2617, 0.0004427343
        %v2619 = vsel %vm2618, %v2616, %v2613
        %v2620 = vadd.f32 %v962, 1.0
        %v2621 = vlog2.pop %v2620
        %v2622 = vmul.f32 %v2621, 0.6931472
        %v2623 = vmul.f32 -0.5, %v962
        %v2624 = vadd.f32 %v2623, 1.0
        %v2625 = vmul.f32 %v2624, %v962
        %v2626 = vand.u32 2147483647, %v962
        %vm2627 = vcmp.lt.f32.partialorder %v2626, 0.0004427343
        %v2628 = vsel %vm2627, %v2625, %v2622
        %v2629 = vadd.f32 %v964, 1.0
        %v2630 = vlog2.pop %v2629
        %v2631 = vmul.f32 %v2630, 0.6931472
        %v2632 = vmul.f32 -0.5, %v964
        %v2633 = vadd.f32 %v2632, 1.0
        %v2634 = vmul.f32 %v2633, %v964
        %v2635 = vand.u32 2147483647, %v964
        %vm2636 = vcmp.lt.f32.partialorder %v2635, 0.0004427343
        %v2637 = vsel %vm2636, %v2634, %v2631
        %v2638 = vadd.f32 %v966, 1.0
        %v2639 = vlog2.pop %v2638
        %v2640 = vmul.f32 %v2639, 0.6931472
        %v2641 = vmul.f32 -0.5, %v966
        %v2642 = vadd.f32 %v2641, 1.0
        %v2643 = vmul.f32 %v2642, %v966
        %v2644 = vand.u32 2147483647, %v966
        %vm2645 = vcmp.lt.f32.partialorder %v2644, 0.0004427343
        %v2646 = vsel %vm2645, %v2643, %v2640
        %v2647 = vadd.f32 %v968, 1.0
        %v2648 = vlog2.pop %v2647
        %v2649 = vmul.f32 %v2648, 0.6931472
        %v2650 = vmul.f32 -0.5, %v968
        %v2651 = vadd.f32 %v2650, 1.0
        %v2652 = vmul.f32 %v2651, %v968
        %v2653 = vand.u32 2147483647, %v968
        %vm2654 = vcmp.lt.f32.partialorder %v2653, 0.0004427343
        %v2655 = vsel %vm2654, %v2652, %v2649
        %v2656 = vadd.f32 %v970, 1.0
        %v2657 = vlog2.pop %v2656
        %v2658 = vmul.f32 %v2657, 0.6931472
        %v2659 = vmul.f32 -0.5, %v970
        %v2660 = vadd.f32 %v2659, 1.0
        %v2661 = vmul.f32 %v2660, %v970
        %v2662 = vand.u32 2147483647, %v970
        %vm2663 = vcmp.lt.f32.partialorder %v2662, 0.0004427343
        %v2664 = vsel %vm2663, %v2661, %v2658
        %v2665 = vadd.f32 %v972, 1.0
        %v2666 = vlog2.pop %v2665
        %v2667 = vmul.f32 %v2666, 0.6931472
        %v2668 = vmul.f32 -0.5, %v972
        %v2669 = vadd.f32 %v2668, 1.0
        %v2670 = vmul.f32 %v2669, %v972
        %v2671 = vand.u32 2147483647, %v972
        %vm2672 = vcmp.lt.f32.partialorder %v2671, 0.0004427343
        %v2673 = vsel %vm2672, %v2670, %v2667
        %v2674 = vadd.f32 %v974, 1.0
        %v2675 = vlog2.pop %v2674
        %v2676 = vmul.f32 %v2675, 0.6931472
        %v2677 = vmul.f32 -0.5, %v974
        %v2678 = vadd.f32 %v2677, 1.0
        %v2679 = vmul.f32 %v2678, %v974
        %v2680 = vand.u32 2147483647, %v974
        %vm2681 = vcmp.lt.f32.partialorder %v2680, 0.0004427343
        %v2682 = vsel %vm2681, %v2679, %v2676
        %v2683 = vadd.f32 %v976, 1.0
        %v2684 = vlog2.pop %v2683
        %v2685 = vmul.f32 %v2684, 0.6931472
        %v2686 = vmul.f32 -0.5, %v976
        %v2687 = vadd.f32 %v2686, 1.0
        %v2688 = vmul.f32 %v2687, %v976
        %v2689 = vand.u32 2147483647, %v976
        %vm2690 = vcmp.lt.f32.partialorder %v2689, 0.0004427343
        %v2691 = vsel %vm2690, %v2688, %v2685
        %v2692 = vadd.f32 %v978, 1.0
        %v2693 = vlog2.pop %v2692
        %v2694 = vmul.f32 %v2693, 0.6931472
        %v2695 = vmul.f32 -0.5, %v978
        %v2696 = vadd.f32 %v2695, 1.0
        %v2697 = vmul.f32 %v2696, %v978
        %v2698 = vand.u32 2147483647, %v978
        %vm2699 = vcmp.lt.f32.partialorder %v2698, 0.0004427343
        %v2700 = vsel %vm2699, %v2697, %v2694
        %v2701 = vadd.f32 %v980, 1.0
        %v2702 = vlog2.pop %v2701
        %v2703 = vmul.f32 %v2702, 0.6931472
        %v2704 = vmul.f32 -0.5, %v980
        %v2705 = vadd.f32 %v2704, 1.0
        %v2706 = vmul.f32 %v2705, %v980
        %v2707 = vand.u32 2147483647, %v980
        %vm2708 = vcmp.lt.f32.partialorder %v2707, 0.0004427343
        %v2709 = vsel %vm2708, %v2706, %v2703
        %v2710 = vadd.f32 %v982, 1.0
        %v2711 = vlog2.pop %v2710
        %v2712 = vmul.f32 %v2711, 0.6931472
        %v2713 = vmul.f32 -0.5, %v982
        %v2714 = vadd.f32 %v2713, 1.0
        %v2715 = vmul.f32 %v2714, %v982
        %v2716 = vand.u32 2147483647, %v982
        %vm2717 = vcmp.lt.f32.partialorder %v2716, 0.0004427343
        %v2718 = vsel %vm2717, %v2715, %v2712
        %v2719 = vadd.f32 %v984, 1.0
        %v2720 = vlog2.pop %v2719
        %v2721 = vmul.f32 %v2720, 0.6931472
        %v2722 = vmul.f32 -0.5, %v984
        %v2723 = vadd.f32 %v2722, 1.0
        %v2724 = vmul.f32 %v2723, %v984
        %v2725 = vand.u32 2147483647, %v984
        %vm2726 = vcmp.lt.f32.partialorder %v2725, 0.0004427343
        %v2727 = vsel %vm2726, %v2724, %v2721
        %v2728 = vadd.f32 %v986, 1.0
        %v2729 = vlog2.pop %v2728
        %v2730 = vmul.f32 %v2729, 0.6931472
        %v2731 = vmul.f32 -0.5, %v986
        %v2732 = vadd.f32 %v2731, 1.0
        %v2733 = vmul.f32 %v2732, %v986
        %v2734 = vand.u32 2147483647, %v986
        %vm2735 = vcmp.lt.f32.partialorder %v2734, 0.0004427343
        %v2736 = vsel %vm2735, %v2733, %v2730
        %v2737 = vadd.f32 %v988, 1.0
        %v2738 = vlog2.pop %v2737
        %v2739 = vmul.f32 %v2738, 0.6931472
        %v2740 = vmul.f32 -0.5, %v988
        %v2741 = vadd.f32 %v2740, 1.0
        %v2742 = vmul.f32 %v2741, %v988
        %v2743 = vand.u32 2147483647, %v988
        %vm2744 = vcmp.lt.f32.partialorder %v2743, 0.0004427343
        %v2745 = vsel %vm2744, %v2742, %v2739
        %v2746 = vadd.f32 %v990, 1.0
        %v2747 = vlog2.pop %v2746
        %v2748 = vmul.f32 %v2747, 0.6931472
        %v2749 = vmul.f32 -0.5, %v990
        %v2750 = vadd.f32 %v2749, 1.0
        %v2751 = vmul.f32 %v2750, %v990
        %v2752 = vand.u32 2147483647, %v990
        %vm2753 = vcmp.lt.f32.partialorder %v2752, 0.0004427343
        %v2754 = vsel %vm2753, %v2751, %v2748
        %v2755 = vadd.f32 %v992, 1.0
        %v2756 = vlog2.pop %v2755
        %v2757 = vmul.f32 %v2756, 0.6931472
        %v2758 = vmul.f32 -0.5, %v992
        %v2759 = vadd.f32 %v2758, 1.0
        %v2760 = vmul.f32 %v2759, %v992
        %v2761 = vand.u32 2147483647, %v992
        %vm2762 = vcmp.lt.f32.partialorder %v2761, 0.0004427343
        %v2763 = vsel %vm2762, %v2760, %v2757
        %v2764 = vadd.f32 %v994, 1.0
        %v2765 = vlog2.pop %v2764
        %v2766 = vmul.f32 %v2765, 0.6931472
        %v2767 = vmul.f32 -0.5, %v994
        %v2768 = vadd.f32 %v2767, 1.0
        %v2769 = vmul.f32 %v2768, %v994
        %v2770 = vand.u32 2147483647, %v994
        %vm2771 = vcmp.lt.f32.partialorder %v2770, 0.0004427343
        %v2772 = vsel %vm2771, %v2769, %v2766
        %v2773 = vadd.f32 %v996, 1.0
        %v2774 = vlog2.pop %v2773
        %v2775 = vmul.f32 %v2774, 0.6931472
        %v2776 = vmul.f32 -0.5, %v996
        %v2777 = vadd.f32 %v2776, 1.0
        %v2778 = vmul.f32 %v2777, %v996
        %v2779 = vand.u32 2147483647, %v996
        %vm2780 = vcmp.lt.f32.partialorder %v2779, 0.0004427343
        %v2781 = vsel %vm2780, %v2778, %v2775
        %v2782 = vadd.f32 %v998, 1.0
        %v2783 = vlog2.pop %v2782
        %v2784 = vmul.f32 %v2783, 0.6931472
        %v2785 = vmul.f32 -0.5, %v998
        %v2786 = vadd.f32 %v2785, 1.0
        %v2787 = vmul.f32 %v2786, %v998
        %v2788 = vand.u32 2147483647, %v998
        %vm2789 = vcmp.lt.f32.partialorder %v2788, 0.0004427343
        %v2790 = vsel %vm2789, %v2787, %v2784
        %v2791 = vadd.f32 %v1511, %v1647
        %v2792 = vadd.f32 %v1512, %v1656
        %v2793 = vadd.f32 %v1513, %v1665
        %v2794 = vadd.f32 %v1514, %v1674
        %v2795 = vadd.f32 %v1515, %v1683
        %v2796 = vadd.f32 %v1516, %v1692
        %v2797 = vadd.f32 %v1517, %v1701
        %v2798 = vadd.f32 %v1518, %v1710
        %v2799 = vadd.f32 %v1519, %v1719
        %v2800 = vadd.f32 %v1520, %v1728
        %v2801 = vadd.f32 %v1521, %v1737
        %v2802 = vadd.f32 %v1522, %v1746
        %v2803 = vadd.f32 %v1523, %v1755
        %v2804 = vadd.f32 %v1524, %v1764
        %v2805 = vadd.f32 %v1525, %v1773
        %v2806 = vadd.f32 %v1526, %v1782
        %v2807 = vadd.f32 %v1527, %v1791
        %v2808 = vadd.f32 %v1528, %v1800
        %v2809 = vadd.f32 %v1529, %v1809
        %v2810 = vadd.f32 %v1530, %v1818
        %v2811 = vadd.f32 %v1531, %v1827
        %v2812 = vadd.f32 %v1532, %v1836
        %v2813 = vadd.f32 %v1533, %v1845
        %v2814 = vadd.f32 %v1534, %v1854
        %v2815 = vadd.f32 %v1535, %v1863
        %v2816 = vadd.f32 %v1536, %v1872
        %v2817 = vadd.f32 %v1537, %v1881
        %v2818 = vadd.f32 %v1538, %v1890
        %v2819 = vadd.f32 %v1539, %v1899
        %v2820 = vadd.f32 %v1540, %v1908
        %v2821 = vadd.f32 %v1541, %v1917
        %v2822 = vadd.f32 %v1542, %v1926
        %v2823 = vadd.f32 %v1543, %v1935
        %v2824 = vadd.f32 %v1544, %v1944
        %v2825 = vadd.f32 %v1545, %v1953
        %v2826 = vadd.f32 %v1546, %v1962
        %v2827 = vadd.f32 %v1547, %v1971
        %v2828 = vadd.f32 %v1548, %v1980
        %v2829 = vadd.f32 %v1549, %v1989
        %v2830 = vadd.f32 %v1550, %v1998
        %v2831 = vadd.f32 %v1551, %v2007
        %v2832 = vadd.f32 %v1552, %v2016
        %v2833 = vadd.f32 %v1553, %v2025
        %v2834 = vadd.f32 %v1554, %v2034
        %v2835 = vadd.f32 %v1555, %v2043
        %v2836 = vadd.f32 %v1556, %v2052
        %v2837 = vadd.f32 %v1557, %v2061
        %v2838 = vadd.f32 %v1558, %v2070
        %v2839 = vadd.f32 %v1559, %v2079
        %v2840 = vadd.f32 %v1560, %v2088
        %v2841 = vadd.f32 %v1561, %v2097
        %v2842 = vadd.f32 %v1562, %v2106
        %v2843 = vadd.f32 %v1563, %v2115
        %v2844 = vadd.f32 %v1564, %v2124
        %v2845 = vadd.f32 %v1565, %v2133
        %v2846 = vadd.f32 %v1566, %v2142
        %v2847 = vadd.f32 %v1567, %v2151
        %v2848 = vadd.f32 %v1568, %v2160
        %v2849 = vadd.f32 %v1569, %v2169
        %v2850 = vadd.f32 %v1570, %v2178
        %v2851 = vadd.f32 %v1571, %v2187
        %v2852 = vadd.f32 %v1572, %v2196
        %v2853 = vadd.f32 %v1573, %v2205
        %v2854 = vadd.f32 %v1574, %v2214
        %v2855 = vadd.f32 %v1575, %v2223
        %v2856 = vadd.f32 %v1576, %v2232
        %v2857 = vadd.f32 %v1577, %v2241
        %v2858 = vadd.f32 %v1578, %v2250
        %v2859 = vadd.f32 %v1579, %v2259
        %v2860 = vadd.f32 %v1580, %v2268
        %v2861 = vadd.f32 %v1581, %v2277
        %v2862 = vadd.f32 %v1582, %v2286
        %v2863 = vadd.f32 %v1583, %v2295
        %v2864 = vadd.f32 %v1584, %v2304
        %v2865 = vadd.f32 %v1585, %v2313
        %v2866 = vadd.f32 %v1586, %v2322
        %v2867 = vadd.f32 %v1587, %v2331
        %v2868 = vadd.f32 %v1588, %v2340
        %v2869 = vadd.f32 %v1589, %v2349
        %v2870 = vadd.f32 %v1590, %v2358
        %v2871 = vadd.f32 %v1591, %v2367
        %v2872 = vadd.f32 %v1592, %v2376
        %v2873 = vadd.f32 %v1593, %v2385
        %v2874 = vadd.f32 %v1594, %v2394
        %v2875 = vadd.f32 %v1595, %v2403
        %v2876 = vadd.f32 %v1596, %v2412
        %v2877 = vadd.f32 %v1597, %v2421
        %v2878 = vadd.f32 %v1598, %v2430
        %v2879 = vadd.f32 %v1599, %v2439
        %v2880 = vadd.f32 %v1600, %v2448
        %v2881 = vadd.f32 %v1601, %v2457
        %v2882 = vadd.f32 %v1602, %v2466
        %v2883 = vadd.f32 %v1603, %v2475
        %v2884 = vadd.f32 %v1604, %v2484
        %v2885 = vadd.f32 %v1605, %v2493
        %v2886 = vadd.f32 %v1606, %v2502
        %v2887 = vadd.f32 %v1607, %v2511
        %v2888 = vadd.f32 %v1608, %v2520
        %v2889 = vadd.f32 %v1609, %v2529
        %v2890 = vadd.f32 %v1610, %v2538
        %v2891 = vadd.f32 %v1611, %v2547
        %v2892 = vadd.f32 %v1612, %v2556
        %v2893 = vadd.f32 %v1613, %v2565
        %v2894 = vadd.f32 %v1614, %v2574
        %v2895 = vadd.f32 %v1615, %v2583
        %v2896 = vadd.f32 %v1616, %v2592
        %v2897 = vadd.f32 %v1617, %v2601
        %v2898 = vadd.f32 %v1618, %v2610
        %v2899 = vadd.f32 %v1619, %v2619
        %v2900 = vadd.f32 %v1620, %v2628
        %v2901 = vadd.f32 %v1621, %v2637
        %v2902 = vadd.f32 %v1622, %v2646
        %v2903 = vadd.f32 %v1623, %v2655
        %v2904 = vadd.f32 %v1624, %v2664
        %v2905 = vadd.f32 %v1625, %v2673
        %v2906 = vadd.f32 %v1626, %v2682
        %v2907 = vadd.f32 %v1627, %v2691
        %v2908 = vadd.f32 %v1628, %v2700
        %v2909 = vadd.f32 %v1629, %v2709
        %v2910 = vadd.f32 %v1630, %v2718
        %v2911 = vadd.f32 %v1631, %v2727
        %v2912 = vadd.f32 %v1632, %v2736
        %v2913 = vadd.f32 %v1633, %v2745
        %v2914 = vadd.f32 %v1634, %v2754
        %v2915 = vadd.f32 %v1635, %v2763
        %v2916 = vadd.f32 %v1636, %v2772
        %v2917 = vadd.f32 %v1637, %v2781
        %v2918 = vadd.f32 %v1638, %v2790
        %v2919 = vmax.f32 %v359, 0.0
        %v2920 = vmax.f32 %v360, 0.0
        %v2921 = vmax.f32 %v361, 0.0
        %v2922 = vmax.f32 %v362, 0.0
        %v2923 = vmax.f32 %v363, 0.0
        %v2924 = vmax.f32 %v364, 0.0
        %v2925 = vmax.f32 %v365, 0.0
        %v2926 = vmax.f32 %v366, 0.0
        %v2927 = vmax.f32 %v367, 0.0
        %v2928 = vmax.f32 %v368, 0.0
        %v2929 = vmax.f32 %v369, 0.0
        %v2930 = vmax.f32 %v370, 0.0
        %v2931 = vmax.f32 %v371, 0.0
        %v2932 = vmax.f32 %v372, 0.0
        %v2933 = vmax.f32 %v373, 0.0
        %v2934 = vmax.f32 %v374, 0.0
        %v2935 = vmax.f32 %v375, 0.0
        %v2936 = vmax.f32 %v376, 0.0
        %v2937 = vmax.f32 %v377, 0.0
        %v2938 = vmax.f32 %v378, 0.0
        %v2939 = vmax.f32 %v379, 0.0
        %v2940 = vmax.f32 %v380, 0.0
        %v2941 = vmax.f32 %v381, 0.0
        %v2942 = vmax.f32 %v382, 0.0
        %v2943 = vmax.f32 %v383, 0.0
        %v2944 = vmax.f32 %v384, 0.0
        %v2945 = vmax.f32 %v385, 0.0
        %v2946 = vmax.f32 %v386, 0.0
        %v2947 = vmax.f32 %v387, 0.0
        %v2948 = vmax.f32 %v388, 0.0
        %v2949 = vmax.f32 %v389, 0.0
        %v2950 = vmax.f32 %v390, 0.0
        %v2951 = vmax.f32 %v391, 0.0
        %v2952 = vmax.f32 %v392, 0.0
        %v2953 = vmax.f32 %v393, 0.0
        %v2954 = vmax.f32 %v394, 0.0
        %v2955 = vmax.f32 %v395, 0.0
        %v2956 = vmax.f32 %v396, 0.0
        %v2957 = vmax.f32 %v397, 0.0
        %v2958 = vmax.f32 %v398, 0.0
        %v2959 = vmax.f32 %v399, 0.0
        %v2960 = vmax.f32 %v400, 0.0
        %v2961 = vmax.f32 %v401, 0.0
        %v2962 = vmax.f32 %v402, 0.0
        %v2963 = vmax.f32 %v403, 0.0
        %v2964 = vmax.f32 %v404, 0.0
        %v2965 = vmax.f32 %v405, 0.0
        %v2966 = vmax.f32 %v406, 0.0
        %v2967 = vmax.f32 %v407, 0.0
        %v2968 = vmax.f32 %v408, 0.0
        %v2969 = vmax.f32 %v409, 0.0
        %v2970 = vmax.f32 %v410, 0.0
        %v2971 = vmax.f32 %v411, 0.0
        %v2972 = vmax.f32 %v412, 0.0
        %v2973 = vmax.f32 %v413, 0.0
        %v2974 = vmax.f32 %v414, 0.0
        %v2975 = vmax.f32 %v415, 0.0
        %v2976 = vmax.f32 %v416, 0.0
        %v2977 = vmax.f32 %v417, 0.0
        %v2978 = vmax.f32 %v418, 0.0
        %v2979 = vmax.f32 %v419, 0.0
        %v2980 = vmax.f32 %v420, 0.0
        %v2981 = vmax.f32 %v421, 0.0
        %v2982 = vmax.f32 %v422, 0.0
        %v2983 = vmax.f32 %v423, 0.0
        %v2984 = vmax.f32 %v424, 0.0
        %v2985 = vmax.f32 %v425, 0.0
        %v2986 = vmax.f32 %v426, 0.0
        %v2987 = vmax.f32 %v427, 0.0
        %v2988 = vmax.f32 %v428, 0.0
        %v2989 = vmax.f32 %v429, 0.0
        %v2990 = vmax.f32 %v430, 0.0
        %v2991 = vmax.f32 %v431, 0.0
        %v2992 = vmax.f32 %v432, 0.0
        %v2993 = vmax.f32 %v433, 0.0
        %v2994 = vmax.f32 %v434, 0.0
        %v2995 = vmax.f32 %v435, 0.0
        %v2996 = vmax.f32 %v436, 0.0
        %v2997 = vmax.f32 %v437, 0.0
        %v2998 = vmax.f32 %v438, 0.0
        %v2999 = vmax.f32 %v439, 0.0
        %v3000 = vmax.f32 %v440, 0.0
        %v3001 = vmax.f32 %v441, 0.0
        %v3002 = vmax.f32 %v442, 0.0
        %v3003 = vmax.f32 %v443, 0.0
        %v3004 = vmax.f32 %v444, 0.0
        %v3005 = vmax.f32 %v445, 0.0
        %v3006 = vmax.f32 %v446, 0.0
        %v3007 = vmax.f32 %v447, 0.0
        %v3008 = vmax.f32 %v448, 0.0
        %v3009 = vmax.f32 %v449, 0.0
        %v3010 = vmax.f32 %v450, 0.0
        %v3011 = vmax.f32 %v451, 0.0
        %v3012 = vmax.f32 %v452, 0.0
        %v3013 = vmax.f32 %v453, 0.0
        %v3014 = vmax.f32 %v454, 0.0
        %v3015 = vmax.f32 %v455, 0.0
        %v3016 = vmax.f32 %v456, 0.0
        %v3017 = vmax.f32 %v457, 0.0
        %v3018 = vmax.f32 %v458, 0.0
        %v3019 = vmax.f32 %v459, 0.0
        %v3020 = vmax.f32 %v460, 0.0
        %v3021 = vmax.f32 %v461, 0.0
        %v3022 = vmax.f32 %v462, 0.0
        %v3023 = vmax.f32 %v463, 0.0
        %v3024 = vmax.f32 %v464, 0.0
        %v3025 = vmax.f32 %v465, 0.0
        %v3026 = vmax.f32 %v466, 0.0
        %v3027 = vmax.f32 %v467, 0.0
        %v3028 = vmax.f32 %v468, 0.0
        %v3029 = vmax.f32 %v469, 0.0
        %v3030 = vmax.f32 %v470, 0.0
        %v3031 = vmax.f32 %v471, 0.0
        %v3032 = vmax.f32 %v472, 0.0
        %v3033 = vmax.f32 %v473, 0.0
        %v3034 = vmax.f32 %v474, 0.0
        %v3035 = vmax.f32 %v475, 0.0
        %v3036 = vmax.f32 %v476, 0.0
        %v3037 = vmax.f32 %v477, 0.0
        %v3038 = vmax.f32 %v478, 0.0
        %v3039 = vmax.f32 %v479, 0.0
        %v3040 = vmax.f32 %v480, 0.0
        %v3041 = vmax.f32 %v481, 0.0
        %v3042 = vmax.f32 %v482, 0.0
        %v3043 = vmax.f32 %v483, 0.0
        %v3044 = vmax.f32 %v484, 0.0
        %v3045 = vmax.f32 %v485, 0.0
        %v3046 = vmax.f32 %v486, 0.0
        %v3047 = vadd.f32 %v1256, 1.0
        %v3048 = vlog2.pop %v3047
        %v3049 = vmul.f32 %v3048, 0.6931472
        %v3050 = vmul.f32 -0.5, %v1256
        %v3051 = vadd.f32 %v3050, 1.0
        %v3052 = vmul.f32 %v3051, %v1256
        %v3053 = vand.u32 2147483647, %v1256
        %vm3054 = vcmp.lt.f32.partialorder %v3053, 0.0004427343
        %v3055 = vsel %vm3054, %v3052, %v3049
        %v3056 = vadd.f32 %v1258, 1.0
        %v3057 = vlog2.pop %v3056
        %v3058 = vmul.f32 %v3057, 0.6931472
        %v3059 = vmul.f32 -0.5, %v1258
        %v3060 = vadd.f32 %v3059, 1.0
        %v3061 = vmul.f32 %v3060, %v1258
        %v3062 = vand.u32 2147483647, %v1258
        %vm3063 = vcmp.lt.f32.partialorder %v3062, 0.0004427343
        %v3064 = vsel %vm3063, %v3061, %v3058
        %v3065 = vadd.f32 %v1260, 1.0
        %v3066 = vlog2.pop %v3065
        %v3067 = vmul.f32 %v3066, 0.6931472
        %v3068 = vmul.f32 -0.5, %v1260
        %v3069 = vadd.f32 %v3068, 1.0
        %v3070 = vmul.f32 %v3069, %v1260
        %v3071 = vand.u32 2147483647, %v1260
        %vm3072 = vcmp.lt.f32.partialorder %v3071, 0.0004427343
        %v3073 = vsel %vm3072, %v3070, %v3067
        %v3074 = vadd.f32 %v1262, 1.0
        %v3075 = vlog2.pop %v3074
        %v3076 = vmul.f32 %v3075, 0.6931472
        %v3077 = vmul.f32 -0.5, %v1262
        %v3078 = vadd.f32 %v3077, 1.0
        %v3079 = vmul.f32 %v3078, %v1262
        %v3080 = vand.u32 2147483647, %v1262
        %vm3081 = vcmp.lt.f32.partialorder %v3080, 0.0004427343
        %v3082 = vsel %vm3081, %v3079, %v3076
        %v3083 = vadd.f32 %v1264, 1.0
        %v3084 = vlog2.pop %v3083
        %v3085 = vmul.f32 %v3084, 0.6931472
        %v3086 = vmul.f32 -0.5, %v1264
        %v3087 = vadd.f32 %v3086, 1.0
        %v3088 = vmul.f32 %v3087, %v1264
        %v3089 = vand.u32 2147483647, %v1264
        %vm3090 = vcmp.lt.f32.partialorder %v3089, 0.0004427343
        %v3091 = vsel %vm3090, %v3088, %v3085
        %v3092 = vadd.f32 %v1266, 1.0
        %v3093 = vlog2.pop %v3092
        %v3094 = vmul.f32 %v3093, 0.6931472
        %v3095 = vmul.f32 -0.5, %v1266
        %v3096 = vadd.f32 %v3095, 1.0
        %v3097 = vmul.f32 %v3096, %v1266
        %v3098 = vand.u32 2147483647, %v1266
        %vm3099 = vcmp.lt.f32.partialorder %v3098, 0.0004427343
        %v3100 = vsel %vm3099, %v3097, %v3094
        %v3101 = vadd.f32 %v1268, 1.0
        %v3102 = vlog2.pop %v3101
        %v3103 = vmul.f32 %v3102, 0.6931472
        %v3104 = vmul.f32 -0.5, %v1268
        %v3105 = vadd.f32 %v3104, 1.0
        %v3106 = vmul.f32 %v3105, %v1268
        %v3107 = vand.u32 2147483647, %v1268
        %vm3108 = vcmp.lt.f32.partialorder %v3107, 0.0004427343
        %v3109 = vsel %vm3108, %v3106, %v3103
        %v3110 = vadd.f32 %v1270, 1.0
        %v3111 = vlog2.pop %v3110
        %v3112 = vmul.f32 %v3111, 0.6931472
        %v3113 = vmul.f32 -0.5, %v1270
        %v3114 = vadd.f32 %v3113, 1.0
        %v3115 = vmul.f32 %v3114, %v1270
        %v3116 = vand.u32 2147483647, %v1270
        %vm3117 = vcmp.lt.f32.partialorder %v3116, 0.0004427343
        %v3118 = vsel %vm3117, %v3115, %v3112
        %v3119 = vadd.f32 %v1272, 1.0
        %v3120 = vlog2.pop %v3119
        %v3121 = vmul.f32 %v3120, 0.6931472
        %v3122 = vmul.f32 -0.5, %v1272
        %v3123 = vadd.f32 %v3122, 1.0
        %v3124 = vmul.f32 %v3123, %v1272
        %v3125 = vand.u32 2147483647, %v1272
        %vm3126 = vcmp.lt.f32.partialorder %v3125, 0.0004427343
        %v3127 = vsel %vm3126, %v3124, %v3121
        %v3128 = vadd.f32 %v1274, 1.0
        %v3129 = vlog2.pop %v3128
        %v3130 = vmul.f32 %v3129, 0.6931472
        %v3131 = vmul.f32 -0.5, %v1274
        %v3132 = vadd.f32 %v3131, 1.0
        %v3133 = vmul.f32 %v3132, %v1274
        %v3134 = vand.u32 2147483647, %v1274
        %vm3135 = vcmp.lt.f32.partialorder %v3134, 0.0004427343
        %v3136 = vsel %vm3135, %v3133, %v3130
        %v3137 = vadd.f32 %v1276, 1.0
        %v3138 = vlog2.pop %v3137
        %v3139 = vmul.f32 %v3138, 0.6931472
        %v3140 = vmul.f32 -0.5, %v1276
        %v3141 = vadd.f32 %v3140, 1.0
        %v3142 = vmul.f32 %v3141, %v1276
        %v3143 = vand.u32 2147483647, %v1276
        %vm3144 = vcmp.lt.f32.partialorder %v3143, 0.0004427343
        %v3145 = vsel %vm3144, %v3142, %v3139
        %v3146 = vadd.f32 %v1278, 1.0
        %v3147 = vlog2.pop %v3146
        %v3148 = vmul.f32 %v3147, 0.6931472
        %v3149 = vmul.f32 -0.5, %v1278
        %v3150 = vadd.f32 %v3149, 1.0
        %v3151 = vmul.f32 %v3150, %v1278
        %v3152 = vand.u32 2147483647, %v1278
        %vm3153 = vcmp.lt.f32.partialorder %v3152, 0.0004427343
        %v3154 = vsel %vm3153, %v3151, %v3148
        %v3155 = vadd.f32 %v1280, 1.0
        %v3156 = vlog2.pop %v3155
        %v3157 = vmul.f32 %v3156, 0.6931472
        %v3158 = vmul.f32 -0.5, %v1280
        %v3159 = vadd.f32 %v3158, 1.0
        %v3160 = vmul.f32 %v3159, %v1280
        %v3161 = vand.u32 2147483647, %v1280
        %vm3162 = vcmp.lt.f32.partialorder %v3161, 0.0004427343
        %v3163 = vsel %vm3162, %v3160, %v3157
        %v3164 = vadd.f32 %v1282, 1.0
        %v3165 = vlog2.pop %v3164
        %v3166 = vmul.f32 %v3165, 0.6931472
        %v3167 = vmul.f32 -0.5, %v1282
        %v3168 = vadd.f32 %v3167, 1.0
        %v3169 = vmul.f32 %v3168, %v1282
        %v3170 = vand.u32 2147483647, %v1282
        %vm3171 = vcmp.lt.f32.partialorder %v3170, 0.0004427343
        %v3172 = vsel %vm3171, %v3169, %v3166
        %v3173 = vadd.f32 %v1284, 1.0
        %v3174 = vlog2.pop %v3173
        %v3175 = vmul.f32 %v3174, 0.6931472
        %v3176 = vmul.f32 -0.5, %v1284
        %v3177 = vadd.f32 %v3176, 1.0
        %v3178 = vmul.f32 %v3177, %v1284
        %v3179 = vand.u32 2147483647, %v1284
        %vm3180 = vcmp.lt.f32.partialorder %v3179, 0.0004427343
        %v3181 = vsel %vm3180, %v3178, %v3175
        %v3182 = vadd.f32 %v1286, 1.0
        %v3183 = vlog2.pop %v3182
        %v3184 = vmul.f32 %v3183, 0.6931472
        %v3185 = vmul.f32 -0.5, %v1286
        %v3186 = vadd.f32 %v3185, 1.0
        %v3187 = vmul.f32 %v3186, %v1286
        %v3188 = vand.u32 2147483647, %v1286
        %vm3189 = vcmp.lt.f32.partialorder %v3188, 0.0004427343
        %v3190 = vsel %vm3189, %v3187, %v3184
        %v3191 = vadd.f32 %v1288, 1.0
        %v3192 = vlog2.pop %v3191
        %v3193 = vmul.f32 %v3192, 0.6931472
        %v3194 = vmul.f32 -0.5, %v1288
        %v3195 = vadd.f32 %v3194, 1.0
        %v3196 = vmul.f32 %v3195, %v1288
        %v3197 = vand.u32 2147483647, %v1288
        %vm3198 = vcmp.lt.f32.partialorder %v3197, 0.0004427343
        %v3199 = vsel %vm3198, %v3196, %v3193
        %v3200 = vadd.f32 %v1290, 1.0
        %v3201 = vlog2.pop %v3200
        %v3202 = vmul.f32 %v3201, 0.6931472
        %v3203 = vmul.f32 -0.5, %v1290
        %v3204 = vadd.f32 %v3203, 1.0
        %v3205 = vmul.f32 %v3204, %v1290
        %v3206 = vand.u32 2147483647, %v1290
        %vm3207 = vcmp.lt.f32.partialorder %v3206, 0.0004427343
        %v3208 = vsel %vm3207, %v3205, %v3202
        %v3209 = vadd.f32 %v1292, 1.0
        %v3210 = vlog2.pop %v3209
        %v3211 = vmul.f32 %v3210, 0.6931472
        %v3212 = vmul.f32 -0.5, %v1292
        %v3213 = vadd.f32 %v3212, 1.0
        %v3214 = vmul.f32 %v3213, %v1292
        %v3215 = vand.u32 2147483647, %v1292
        %vm3216 = vcmp.lt.f32.partialorder %v3215, 0.0004427343
        %v3217 = vsel %vm3216, %v3214, %v3211
        %v3218 = vadd.f32 %v1294, 1.0
        %v3219 = vlog2.pop %v3218
        %v3220 = vmul.f32 %v3219, 0.6931472
        %v3221 = vmul.f32 -0.5, %v1294
        %v3222 = vadd.f32 %v3221, 1.0
        %v3223 = vmul.f32 %v3222, %v1294
        %v3224 = vand.u32 2147483647, %v1294
        %vm3225 = vcmp.lt.f32.partialorder %v3224, 0.0004427343
        %v3226 = vsel %vm3225, %v3223, %v3220
        %v3227 = vadd.f32 %v1296, 1.0
        %v3228 = vlog2.pop %v3227
        %v3229 = vmul.f32 %v3228, 0.6931472
        %v3230 = vmul.f32 -0.5, %v1296
        %v3231 = vadd.f32 %v3230, 1.0
        %v3232 = vmul.f32 %v3231, %v1296
        %v3233 = vand.u32 2147483647, %v1296
        %vm3234 = vcmp.lt.f32.partialorder %v3233, 0.0004427343
        %v3235 = vsel %vm3234, %v3232, %v3229
        %v3236 = vadd.f32 %v1298, 1.0
        %v3237 = vlog2.pop %v3236
        %v3238 = vmul.f32 %v3237, 0.6931472
        %v3239 = vmul.f32 -0.5, %v1298
        %v3240 = vadd.f32 %v3239, 1.0
        %v3241 = vmul.f32 %v3240, %v1298
        %v3242 = vand.u32 2147483647, %v1298
        %vm3243 = vcmp.lt.f32.partialorder %v3242, 0.0004427343
        %v3244 = vsel %vm3243, %v3241, %v3238
        %v3245 = vadd.f32 %v1300, 1.0
        %v3246 = vlog2.pop %v3245
        %v3247 = vmul.f32 %v3246, 0.6931472
        %v3248 = vmul.f32 -0.5, %v1300
        %v3249 = vadd.f32 %v3248, 1.0
        %v3250 = vmul.f32 %v3249, %v1300
        %v3251 = vand.u32 2147483647, %v1300
        %vm3252 = vcmp.lt.f32.partialorder %v3251, 0.0004427343
        %v3253 = vsel %vm3252, %v3250, %v3247
        %v3254 = vadd.f32 %v1302, 1.0
        %v3255 = vlog2.pop %v3254
        %v3256 = vmul.f32 %v3255, 0.6931472
        %v3257 = vmul.f32 -0.5, %v1302
        %v3258 = vadd.f32 %v3257, 1.0
        %v3259 = vmul.f32 %v3258, %v1302
        %v3260 = vand.u32 2147483647, %v1302
        %vm3261 = vcmp.lt.f32.partialorder %v3260, 0.0004427343
        %v3262 = vsel %vm3261, %v3259, %v3256
        %v3263 = vadd.f32 %v1304, 1.0
        %v3264 = vlog2.pop %v3263
        %v3265 = vmul.f32 %v3264, 0.6931472
        %v3266 = vmul.f32 -0.5, %v1304
        %v3267 = vadd.f32 %v3266, 1.0
        %v3268 = vmul.f32 %v3267, %v1304
        %v3269 = vand.u32 2147483647, %v1304
        %vm3270 = vcmp.lt.f32.partialorder %v3269, 0.0004427343
        %v3271 = vsel %vm3270, %v3268, %v3265
        %v3272 = vadd.f32 %v1306, 1.0
        %v3273 = vlog2.pop %v3272
        %v3274 = vmul.f32 %v3273, 0.6931472
        %v3275 = vmul.f32 -0.5, %v1306
        %v3276 = vadd.f32 %v3275, 1.0
        %v3277 = vmul.f32 %v3276, %v1306
        %v3278 = vand.u32 2147483647, %v1306
        %vm3279 = vcmp.lt.f32.partialorder %v3278, 0.0004427343
        %v3280 = vsel %vm3279, %v3277, %v3274
        %v3281 = vadd.f32 %v1308, 1.0
        %v3282 = vlog2.pop %v3281
        %v3283 = vmul.f32 %v3282, 0.6931472
        %v3284 = vmul.f32 -0.5, %v1308
        %v3285 = vadd.f32 %v3284, 1.0
        %v3286 = vmul.f32 %v3285, %v1308
        %v3287 = vand.u32 2147483647, %v1308
        %vm3288 = vcmp.lt.f32.partialorder %v3287, 0.0004427343
        %v3289 = vsel %vm3288, %v3286, %v3283
        %v3290 = vadd.f32 %v1310, 1.0
        %v3291 = vlog2.pop %v3290
        %v3292 = vmul.f32 %v3291, 0.6931472
        %v3293 = vmul.f32 -0.5, %v1310
        %v3294 = vadd.f32 %v3293, 1.0
        %v3295 = vmul.f32 %v3294, %v1310
        %v3296 = vand.u32 2147483647, %v1310
        %vm3297 = vcmp.lt.f32.partialorder %v3296, 0.0004427343
        %v3298 = vsel %vm3297, %v3295, %v3292
        %v3299 = vadd.f32 %v1312, 1.0
        %v3300 = vlog2.pop %v3299
        %v3301 = vmul.f32 %v3300, 0.6931472
        %v3302 = vmul.f32 -0.5, %v1312
        %v3303 = vadd.f32 %v3302, 1.0
        %v3304 = vmul.f32 %v3303, %v1312
        %v3305 = vand.u32 2147483647, %v1312
        %vm3306 = vcmp.lt.f32.partialorder %v3305, 0.0004427343
        %v3307 = vsel %vm3306, %v3304, %v3301
        %v3308 = vadd.f32 %v1314, 1.0
        %v3309 = vlog2.pop %v3308
        %v3310 = vmul.f32 %v3309, 0.6931472
        %v3311 = vmul.f32 -0.5, %v1314
        %v3312 = vadd.f32 %v3311, 1.0
        %v3313 = vmul.f32 %v3312, %v1314
        %v3314 = vand.u32 2147483647, %v1314
        %vm3315 = vcmp.lt.f32.partialorder %v3314, 0.0004427343
        %v3316 = vsel %vm3315, %v3313, %v3310
        %v3317 = vadd.f32 %v1316, 1.0
        %v3318 = vlog2.pop %v3317
        %v3319 = vmul.f32 %v3318, 0.6931472
        %v3320 = vmul.f32 -0.5, %v1316
        %v3321 = vadd.f32 %v3320, 1.0
        %v3322 = vmul.f32 %v3321, %v1316
        %v3323 = vand.u32 2147483647, %v1316
        %vm3324 = vcmp.lt.f32.partialorder %v3323, 0.0004427343
        %v3325 = vsel %vm3324, %v3322, %v3319
        %v3326 = vadd.f32 %v1318, 1.0
        %v3327 = vlog2.pop %v3326
        %v3328 = vmul.f32 %v3327, 0.6931472
        %v3329 = vmul.f32 -0.5, %v1318
        %v3330 = vadd.f32 %v3329, 1.0
        %v3331 = vmul.f32 %v3330, %v1318
        %v3332 = vand.u32 2147483647, %v1318
        %vm3333 = vcmp.lt.f32.partialorder %v3332, 0.0004427343
        %v3334 = vsel %vm3333, %v3331, %v3328
        %v3335 = vadd.f32 %v1320, 1.0
        %v3336 = vlog2.pop %v3335
        %v3337 = vmul.f32 %v3336, 0.6931472
        %v3338 = vmul.f32 -0.5, %v1320
        %v3339 = vadd.f32 %v3338, 1.0
        %v3340 = vmul.f32 %v3339, %v1320
        %v3341 = vand.u32 2147483647, %v1320
        %vm3342 = vcmp.lt.f32.partialorder %v3341, 0.0004427343
        %v3343 = vsel %vm3342, %v3340, %v3337
        %v3344 = vadd.f32 %v1322, 1.0
        %v3345 = vlog2.pop %v3344
        %v3346 = vmul.f32 %v3345, 0.6931472
        %v3347 = vmul.f32 -0.5, %v1322
        %v3348 = vadd.f32 %v3347, 1.0
        %v3349 = vmul.f32 %v3348, %v1322
        %v3350 = vand.u32 2147483647, %v1322
        %vm3351 = vcmp.lt.f32.partialorder %v3350, 0.0004427343
        %v3352 = vsel %vm3351, %v3349, %v3346
        %v3353 = vadd.f32 %v1324, 1.0
        %v3354 = vlog2.pop %v3353
        %v3355 = vmul.f32 %v3354, 0.6931472
        %v3356 = vmul.f32 -0.5, %v1324
        %v3357 = vadd.f32 %v3356, 1.0
        %v3358 = vmul.f32 %v3357, %v1324
        %v3359 = vand.u32 2147483647, %v1324
        %vm3360 = vcmp.lt.f32.partialorder %v3359, 0.0004427343
        %v3361 = vsel %vm3360, %v3358, %v3355
        %v3362 = vadd.f32 %v1326, 1.0
        %v3363 = vlog2.pop %v3362
        %v3364 = vmul.f32 %v3363, 0.6931472
        %v3365 = vmul.f32 -0.5, %v1326
        %v3366 = vadd.f32 %v3365, 1.0
        %v3367 = vmul.f32 %v3366, %v1326
        %v3368 = vand.u32 2147483647, %v1326
        %vm3369 = vcmp.lt.f32.partialorder %v3368, 0.0004427343
        %v3370 = vsel %vm3369, %v3367, %v3364
        %v3371 = vadd.f32 %v1328, 1.0
        %v3372 = vlog2.pop %v3371
        %v3373 = vmul.f32 %v3372, 0.6931472
        %v3374 = vmul.f32 -0.5, %v1328
        %v3375 = vadd.f32 %v3374, 1.0
        %v3376 = vmul.f32 %v3375, %v1328
        %v3377 = vand.u32 2147483647, %v1328
        %vm3378 = vcmp.lt.f32.partialorder %v3377, 0.0004427343
        %v3379 = vsel %vm3378, %v3376, %v3373
        %v3380 = vadd.f32 %v1330, 1.0
        %v3381 = vlog2.pop %v3380
        %v3382 = vmul.f32 %v3381, 0.6931472
        %v3383 = vmul.f32 -0.5, %v1330
        %v3384 = vadd.f32 %v3383, 1.0
        %v3385 = vmul.f32 %v3384, %v1330
        %v3386 = vand.u32 2147483647, %v1330
        %vm3387 = vcmp.lt.f32.partialorder %v3386, 0.0004427343
        %v3388 = vsel %vm3387, %v3385, %v3382
        %v3389 = vadd.f32 %v1332, 1.0
        %v3390 = vlog2.pop %v3389
        %v3391 = vmul.f32 %v3390, 0.6931472
        %v3392 = vmul.f32 -0.5, %v1332
        %v3393 = vadd.f32 %v3392, 1.0
        %v3394 = vmul.f32 %v3393, %v1332
        %v3395 = vand.u32 2147483647, %v1332
        %vm3396 = vcmp.lt.f32.partialorder %v3395, 0.0004427343
        %v3397 = vsel %vm3396, %v3394, %v3391
        %v3398 = vadd.f32 %v1334, 1.0
        %v3399 = vlog2.pop %v3398
        %v3400 = vmul.f32 %v3399, 0.6931472
        %v3401 = vmul.f32 -0.5, %v1334
        %v3402 = vadd.f32 %v3401, 1.0
        %v3403 = vmul.f32 %v3402, %v1334
        %v3404 = vand.u32 2147483647, %v1334
        %vm3405 = vcmp.lt.f32.partialorder %v3404, 0.0004427343
        %v3406 = vsel %vm3405, %v3403, %v3400
        %v3407 = vadd.f32 %v1336, 1.0
        %v3408 = vlog2.pop %v3407
        %v3409 = vmul.f32 %v3408, 0.6931472
        %v3410 = vmul.f32 -0.5, %v1336
        %v3411 = vadd.f32 %v3410, 1.0
        %v3412 = vmul.f32 %v3411, %v1336
        %v3413 = vand.u32 2147483647, %v1336
        %vm3414 = vcmp.lt.f32.partialorder %v3413, 0.0004427343
        %v3415 = vsel %vm3414, %v3412, %v3409
        %v3416 = vadd.f32 %v1338, 1.0
        %v3417 = vlog2.pop %v3416
        %v3418 = vmul.f32 %v3417, 0.6931472
        %v3419 = vmul.f32 -0.5, %v1338
        %v3420 = vadd.f32 %v3419, 1.0
        %v3421 = vmul.f32 %v3420, %v1338
        %v3422 = vand.u32 2147483647, %v1338
        %vm3423 = vcmp.lt.f32.partialorder %v3422, 0.0004427343
        %v3424 = vsel %vm3423, %v3421, %v3418
        %v3425 = vadd.f32 %v1340, 1.0
        %v3426 = vlog2.pop %v3425
        %v3427 = vmul.f32 %v3426, 0.6931472
        %v3428 = vmul.f32 -0.5, %v1340
        %v3429 = vadd.f32 %v3428, 1.0
        %v3430 = vmul.f32 %v3429, %v1340
        %v3431 = vand.u32 2147483647, %v1340
        %vm3432 = vcmp.lt.f32.partialorder %v3431, 0.0004427343
        %v3433 = vsel %vm3432, %v3430, %v3427
        %v3434 = vadd.f32 %v1342, 1.0
        %v3435 = vlog2.pop %v3434
        %v3436 = vmul.f32 %v3435, 0.6931472
        %v3437 = vmul.f32 -0.5, %v1342
        %v3438 = vadd.f32 %v3437, 1.0
        %v3439 = vmul.f32 %v3438, %v1342
        %v3440 = vand.u32 2147483647, %v1342
        %vm3441 = vcmp.lt.f32.partialorder %v3440, 0.0004427343
        %v3442 = vsel %vm3441, %v3439, %v3436
        %v3443 = vadd.f32 %v1344, 1.0
        %v3444 = vlog2.pop %v3443
        %v3445 = vmul.f32 %v3444, 0.6931472
        %v3446 = vmul.f32 -0.5, %v1344
        %v3447 = vadd.f32 %v3446, 1.0
        %v3448 = vmul.f32 %v3447, %v1344
        %v3449 = vand.u32 2147483647, %v1344
        %vm3450 = vcmp.lt.f32.partialorder %v3449, 0.0004427343
        %v3451 = vsel %vm3450, %v3448, %v3445
        %v3452 = vadd.f32 %v1346, 1.0
        %v3453 = vlog2.pop %v3452
        %v3454 = vmul.f32 %v3453, 0.6931472
        %v3455 = vmul.f32 -0.5, %v1346
        %v3456 = vadd.f32 %v3455, 1.0
        %v3457 = vmul.f32 %v3456, %v1346
        %v3458 = vand.u32 2147483647, %v1346
        %vm3459 = vcmp.lt.f32.partialorder %v3458, 0.0004427343
        %v3460 = vsel %vm3459, %v3457, %v3454
        %v3461 = vadd.f32 %v1348, 1.0
        %v3462 = vlog2.pop %v3461
        %v3463 = vmul.f32 %v3462, 0.6931472
        %v3464 = vmul.f32 -0.5, %v1348
        %v3465 = vadd.f32 %v3464, 1.0
        %v3466 = vmul.f32 %v3465, %v1348
        %v3467 = vand.u32 2147483647, %v1348
        %vm3468 = vcmp.lt.f32.partialorder %v3467, 0.0004427343
        %v3469 = vsel %vm3468, %v3466, %v3463
        %v3470 = vadd.f32 %v1350, 1.0
        %v3471 = vlog2.pop %v3470
        %v3472 = vmul.f32 %v3471, 0.6931472
        %v3473 = vmul.f32 -0.5, %v1350
        %v3474 = vadd.f32 %v3473, 1.0
        %v3475 = vmul.f32 %v3474, %v1350
        %v3476 = vand.u32 2147483647, %v1350
        %vm3477 = vcmp.lt.f32.partialorder %v3476, 0.0004427343
        %v3478 = vsel %vm3477, %v3475, %v3472
        %v3479 = vadd.f32 %v1352, 1.0
        %v3480 = vlog2.pop %v3479
        %v3481 = vmul.f32 %v3480, 0.6931472
        %v3482 = vmul.f32 -0.5, %v1352
        %v3483 = vadd.f32 %v3482, 1.0
        %v3484 = vmul.f32 %v3483, %v1352
        %v3485 = vand.u32 2147483647, %v1352
        %vm3486 = vcmp.lt.f32.partialorder %v3485, 0.0004427343
        %v3487 = vsel %vm3486, %v3484, %v3481
        %v3488 = vadd.f32 %v1354, 1.0
        %v3489 = vlog2.pop %v3488
        %v3490 = vmul.f32 %v3489, 0.6931472
        %v3491 = vmul.f32 -0.5, %v1354
        %v3492 = vadd.f32 %v3491, 1.0
        %v3493 = vmul.f32 %v3492, %v1354
        %v3494 = vand.u32 2147483647, %v1354
        %vm3495 = vcmp.lt.f32.partialorder %v3494, 0.0004427343
        %v3496 = vsel %vm3495, %v3493, %v3490
        %v3497 = vadd.f32 %v1356, 1.0
        %v3498 = vlog2.pop %v3497
        %v3499 = vmul.f32 %v3498, 0.6931472
        %v3500 = vmul.f32 -0.5, %v1356
        %v3501 = vadd.f32 %v3500, 1.0
        %v3502 = vmul.f32 %v3501, %v1356
        %v3503 = vand.u32 2147483647, %v1356
        %vm3504 = vcmp.lt.f32.partialorder %v3503, 0.0004427343
        %v3505 = vsel %vm3504, %v3502, %v3499
        %v3506 = vadd.f32 %v1358, 1.0
        %v3507 = vlog2.pop %v3506
        %v3508 = vmul.f32 %v3507, 0.6931472
        %v3509 = vmul.f32 -0.5, %v1358
        %v3510 = vadd.f32 %v3509, 1.0
        %v3511 = vmul.f32 %v3510, %v1358
        %v3512 = vand.u32 2147483647, %v1358
        %vm3513 = vcmp.lt.f32.partialorder %v3512, 0.0004427343
        %v3514 = vsel %vm3513, %v3511, %v3508
        %v3515 = vadd.f32 %v1360, 1.0
        %v3516 = vlog2.pop %v3515
        %v3517 = vmul.f32 %v3516, 0.6931472
        %v3518 = vmul.f32 -0.5, %v1360
        %v3519 = vadd.f32 %v3518, 1.0
        %v3520 = vmul.f32 %v3519, %v1360
        %v3521 = vand.u32 2147483647, %v1360
        %vm3522 = vcmp.lt.f32.partialorder %v3521, 0.0004427343
        %v3523 = vsel %vm3522, %v3520, %v3517
        %v3524 = vadd.f32 %v1362, 1.0
        %v3525 = vlog2.pop %v3524
        %v3526 = vmul.f32 %v3525, 0.6931472
        %v3527 = vmul.f32 -0.5, %v1362
        %v3528 = vadd.f32 %v3527, 1.0
        %v3529 = vmul.f32 %v3528, %v1362
        %v3530 = vand.u32 2147483647, %v1362
        %vm3531 = vcmp.lt.f32.partialorder %v3530, 0.0004427343
        %v3532 = vsel %vm3531, %v3529, %v3526
        %v3533 = vadd.f32 %v1364, 1.0
        %v3534 = vlog2.pop %v3533
        %v3535 = vmul.f32 %v3534, 0.6931472
        %v3536 = vmul.f32 -0.5, %v1364
        %v3537 = vadd.f32 %v3536, 1.0
        %v3538 = vmul.f32 %v3537, %v1364
        %v3539 = vand.u32 2147483647, %v1364
        %vm3540 = vcmp.lt.f32.partialorder %v3539, 0.0004427343
        %v3541 = vsel %vm3540, %v3538, %v3535
        %v3542 = vadd.f32 %v1366, 1.0
        %v3543 = vlog2.pop %v3542
        %v3544 = vmul.f32 %v3543, 0.6931472
        %v3545 = vmul.f32 -0.5, %v1366
        %v3546 = vadd.f32 %v3545, 1.0
        %v3547 = vmul.f32 %v3546, %v1366
        %v3548 = vand.u32 2147483647, %v1366
        %vm3549 = vcmp.lt.f32.partialorder %v3548, 0.0004427343
        %v3550 = vsel %vm3549, %v3547, %v3544
        %v3551 = vadd.f32 %v1368, 1.0
        %v3552 = vlog2.pop %v3551
        %v3553 = vmul.f32 %v3552, 0.6931472
        %v3554 = vmul.f32 -0.5, %v1368
        %v3555 = vadd.f32 %v3554, 1.0
        %v3556 = vmul.f32 %v3555, %v1368
        %v3557 = vand.u32 2147483647, %v1368
        %vm3558 = vcmp.lt.f32.partialorder %v3557, 0.0004427343
        %v3559 = vsel %vm3558, %v3556, %v3553
        %v3560 = vadd.f32 %v1370, 1.0
        %v3561 = vlog2.pop %v3560
        %v3562 = vmul.f32 %v3561, 0.6931472
        %v3563 = vmul.f32 -0.5, %v1370
        %v3564 = vadd.f32 %v3563, 1.0
        %v3565 = vmul.f32 %v3564, %v1370
        %v3566 = vand.u32 2147483647, %v1370
        %vm3567 = vcmp.lt.f32.partialorder %v3566, 0.0004427343
        %v3568 = vsel %vm3567, %v3565, %v3562
        %v3569 = vadd.f32 %v1372, 1.0
        %v3570 = vlog2.pop %v3569
        %v3571 = vmul.f32 %v3570, 0.6931472
        %v3572 = vmul.f32 -0.5, %v1372
        %v3573 = vadd.f32 %v3572, 1.0
        %v3574 = vmul.f32 %v3573, %v1372
        %v3575 = vand.u32 2147483647, %v1372
        %vm3576 = vcmp.lt.f32.partialorder %v3575, 0.0004427343
        %v3577 = vsel %vm3576, %v3574, %v3571
        %v3578 = vadd.f32 %v1374, 1.0
        %v3579 = vlog2.pop %v3578
        %v3580 = vmul.f32 %v3579, 0.6931472
        %v3581 = vmul.f32 -0.5, %v1374
        %v3582 = vadd.f32 %v3581, 1.0
        %v3583 = vmul.f32 %v3582, %v1374
        %v3584 = vand.u32 2147483647, %v1374
        %vm3585 = vcmp.lt.f32.partialorder %v3584, 0.0004427343
        %v3586 = vsel %vm3585, %v3583, %v3580
        %v3587 = vadd.f32 %v1376, 1.0
        %v3588 = vlog2.pop %v3587
        %v3589 = vmul.f32 %v3588, 0.6931472
        %v3590 = vmul.f32 -0.5, %v1376
        %v3591 = vadd.f32 %v3590, 1.0
        %v3592 = vmul.f32 %v3591, %v1376
        %v3593 = vand.u32 2147483647, %v1376
        %vm3594 = vcmp.lt.f32.partialorder %v3593, 0.0004427343
        %v3595 = vsel %vm3594, %v3592, %v3589
        %v3596 = vadd.f32 %v1378, 1.0
        %v3597 = vlog2.pop %v3596
        %v3598 = vmul.f32 %v3597, 0.6931472
        %v3599 = vmul.f32 -0.5, %v1378
        %v3600 = vadd.f32 %v3599, 1.0
        %v3601 = vmul.f32 %v3600, %v1378
        %v3602 = vand.u32 2147483647, %v1378
        %vm3603 = vcmp.lt.f32.partialorder %v3602, 0.0004427343
        %v3604 = vsel %vm3603, %v3601, %v3598
        %v3605 = vadd.f32 %v1380, 1.0
        %v3606 = vlog2.pop %v3605
        %v3607 = vmul.f32 %v3606, 0.6931472
        %v3608 = vmul.f32 -0.5, %v1380
        %v3609 = vadd.f32 %v3608, 1.0
        %v3610 = vmul.f32 %v3609, %v1380
        %v3611 = vand.u32 2147483647, %v1380
        %vm3612 = vcmp.lt.f32.partialorder %v3611, 0.0004427343
        %v3613 = vsel %vm3612, %v3610, %v3607
        %v3614 = vadd.f32 %v1382, 1.0
        %v3615 = vlog2.pop %v3614
        %v3616 = vmul.f32 %v3615, 0.6931472
        %v3617 = vmul.f32 -0.5, %v1382
        %v3618 = vadd.f32 %v3617, 1.0
        %v3619 = vmul.f32 %v3618, %v1382
        %v3620 = vand.u32 2147483647, %v1382
        %vm3621 = vcmp.lt.f32.partialorder %v3620, 0.0004427343
        %v3622 = vsel %vm3621, %v3619, %v3616
        %v3623 = vadd.f32 %v1384, 1.0
        %v3624 = vlog2.pop %v3623
        %v3625 = vmul.f32 %v3624, 0.6931472
        %v3626 = vmul.f32 -0.5, %v1384
        %v3627 = vadd.f32 %v3626, 1.0
        %v3628 = vmul.f32 %v3627, %v1384
        %v3629 = vand.u32 2147483647, %v1384
        %vm3630 = vcmp.lt.f32.partialorder %v3629, 0.0004427343
        %v3631 = vsel %vm3630, %v3628, %v3625
        %v3632 = vadd.f32 %v1386, 1.0
        %v3633 = vlog2.pop %v3632
        %v3634 = vmul.f32 %v3633, 0.6931472
        %v3635 = vmul.f32 -0.5, %v1386
        %v3636 = vadd.f32 %v3635, 1.0
        %v3637 = vmul.f32 %v3636, %v1386
        %v3638 = vand.u32 2147483647, %v1386
        %vm3639 = vcmp.lt.f32.partialorder %v3638, 0.0004427343
        %v3640 = vsel %vm3639, %v3637, %v3634
        %v3641 = vadd.f32 %v1388, 1.0
        %v3642 = vlog2.pop %v3641
        %v3643 = vmul.f32 %v3642, 0.6931472
        %v3644 = vmul.f32 -0.5, %v1388
        %v3645 = vadd.f32 %v3644, 1.0
        %v3646 = vmul.f32 %v3645, %v1388
        %v3647 = vand.u32 2147483647, %v1388
        %vm3648 = vcmp.lt.f32.partialorder %v3647, 0.0004427343
        %v3649 = vsel %vm3648, %v3646, %v3643
        %v3650 = vadd.f32 %v1390, 1.0
        %v3651 = vlog2.pop %v3650
        %v3652 = vmul.f32 %v3651, 0.6931472
        %v3653 = vmul.f32 -0.5, %v1390
        %v3654 = vadd.f32 %v3653, 1.0
        %v3655 = vmul.f32 %v3654, %v1390
        %v3656 = vand.u32 2147483647, %v1390
        %vm3657 = vcmp.lt.f32.partialorder %v3656, 0.0004427343
        %v3658 = vsel %vm3657, %v3655, %v3652
        %v3659 = vadd.f32 %v1392, 1.0
        %v3660 = vlog2.pop %v3659
        %v3661 = vmul.f32 %v3660, 0.6931472
        %v3662 = vmul.f32 -0.5, %v1392
        %v3663 = vadd.f32 %v3662, 1.0
        %v3664 = vmul.f32 %v3663, %v1392
        %v3665 = vand.u32 2147483647, %v1392
        %vm3666 = vcmp.lt.f32.partialorder %v3665, 0.0004427343
        %v3667 = vsel %vm3666, %v3664, %v3661
        %v3668 = vadd.f32 %v1394, 1.0
        %v3669 = vlog2.pop %v3668
        %v3670 = vmul.f32 %v3669, 0.6931472
        %v3671 = vmul.f32 -0.5, %v1394
        %v3672 = vadd.f32 %v3671, 1.0
        %v3673 = vmul.f32 %v3672, %v1394
        %v3674 = vand.u32 2147483647, %v1394
        %vm3675 = vcmp.lt.f32.partialorder %v3674, 0.0004427343
        %v3676 = vsel %vm3675, %v3673, %v3670
        %v3677 = vadd.f32 %v1396, 1.0
        %v3678 = vlog2.pop %v3677
        %v3679 = vmul.f32 %v3678, 0.6931472
        %v3680 = vmul.f32 -0.5, %v1396
        %v3681 = vadd.f32 %v3680, 1.0
        %v3682 = vmul.f32 %v3681, %v1396
        %v3683 = vand.u32 2147483647, %v1396
        %vm3684 = vcmp.lt.f32.partialorder %v3683, 0.0004427343
        %v3685 = vsel %vm3684, %v3682, %v3679
        %v3686 = vadd.f32 %v1398, 1.0
        %v3687 = vlog2.pop %v3686
        %v3688 = vmul.f32 %v3687, 0.6931472
        %v3689 = vmul.f32 -0.5, %v1398
        %v3690 = vadd.f32 %v3689, 1.0
        %v3691 = vmul.f32 %v3690, %v1398
        %v3692 = vand.u32 2147483647, %v1398
        %vm3693 = vcmp.lt.f32.partialorder %v3692, 0.0004427343
        %v3694 = vsel %vm3693, %v3691, %v3688
        %v3695 = vadd.f32 %v1400, 1.0
        %v3696 = vlog2.pop %v3695
        %v3697 = vmul.f32 %v3696, 0.6931472
        %v3698 = vmul.f32 -0.5, %v1400
        %v3699 = vadd.f32 %v3698, 1.0
        %v3700 = vmul.f32 %v3699, %v1400
        %v3701 = vand.u32 2147483647, %v1400
        %vm3702 = vcmp.lt.f32.partialorder %v3701, 0.0004427343
        %v3703 = vsel %vm3702, %v3700, %v3697
        %v3704 = vadd.f32 %v1402, 1.0
        %v3705 = vlog2.pop %v3704
        %v3706 = vmul.f32 %v3705, 0.6931472
        %v3707 = vmul.f32 -0.5, %v1402
        %v3708 = vadd.f32 %v3707, 1.0
        %v3709 = vmul.f32 %v3708, %v1402
        %v3710 = vand.u32 2147483647, %v1402
        %vm3711 = vcmp.lt.f32.partialorder %v3710, 0.0004427343
        %v3712 = vsel %vm3711, %v3709, %v3706
        %v3713 = vadd.f32 %v1404, 1.0
        %v3714 = vlog2.pop %v3713
        %v3715 = vmul.f32 %v3714, 0.6931472
        %v3716 = vmul.f32 -0.5, %v1404
        %v3717 = vadd.f32 %v3716, 1.0
        %v3718 = vmul.f32 %v3717, %v1404
        %v3719 = vand.u32 2147483647, %v1404
        %vm3720 = vcmp.lt.f32.partialorder %v3719, 0.0004427343
        %v3721 = vsel %vm3720, %v3718, %v3715
        %v3722 = vadd.f32 %v1406, 1.0
        %v3723 = vlog2.pop %v3722
        %v3724 = vmul.f32 %v3723, 0.6931472
        %v3725 = vmul.f32 -0.5, %v1406
        %v3726 = vadd.f32 %v3725, 1.0
        %v3727 = vmul.f32 %v3726, %v1406
        %v3728 = vand.u32 2147483647, %v1406
        %vm3729 = vcmp.lt.f32.partialorder %v3728, 0.0004427343
        %v3730 = vsel %vm3729, %v3727, %v3724
        %v3731 = vadd.f32 %v1408, 1.0
        %v3732 = vlog2.pop %v3731
        %v3733 = vmul.f32 %v3732, 0.6931472
        %v3734 = vmul.f32 -0.5, %v1408
        %v3735 = vadd.f32 %v3734, 1.0
        %v3736 = vmul.f32 %v3735, %v1408
        %v3737 = vand.u32 2147483647, %v1408
        %vm3738 = vcmp.lt.f32.partialorder %v3737, 0.0004427343
        %v3739 = vsel %vm3738, %v3736, %v3733
        %v3740 = vadd.f32 %v1410, 1.0
        %v3741 = vlog2.pop %v3740
        %v3742 = vmul.f32 %v3741, 0.6931472
        %v3743 = vmul.f32 -0.5, %v1410
        %v3744 = vadd.f32 %v3743, 1.0
        %v3745 = vmul.f32 %v3744, %v1410
        %v3746 = vand.u32 2147483647, %v1410
        %vm3747 = vcmp.lt.f32.partialorder %v3746, 0.0004427343
        %v3748 = vsel %vm3747, %v3745, %v3742
        %v3749 = vadd.f32 %v1412, 1.0
        %v3750 = vlog2.pop %v3749
        %v3751 = vmul.f32 %v3750, 0.6931472
        %v3752 = vmul.f32 -0.5, %v1412
        %v3753 = vadd.f32 %v3752, 1.0
        %v3754 = vmul.f32 %v3753, %v1412
        %v3755 = vand.u32 2147483647, %v1412
        %vm3756 = vcmp.lt.f32.partialorder %v3755, 0.0004427343
        %v3757 = vsel %vm3756, %v3754, %v3751
        %v3758 = vadd.f32 %v1414, 1.0
        %v3759 = vlog2.pop %v3758
        %v3760 = vmul.f32 %v3759, 0.6931472
        %v3761 = vmul.f32 -0.5, %v1414
        %v3762 = vadd.f32 %v3761, 1.0
        %v3763 = vmul.f32 %v3762, %v1414
        %v3764 = vand.u32 2147483647, %v1414
        %vm3765 = vcmp.lt.f32.partialorder %v3764, 0.0004427343
        %v3766 = vsel %vm3765, %v3763, %v3760
        %v3767 = vadd.f32 %v1416, 1.0
        %v3768 = vlog2.pop %v3767
        %v3769 = vmul.f32 %v3768, 0.6931472
        %v3770 = vmul.f32 -0.5, %v1416
        %v3771 = vadd.f32 %v3770, 1.0
        %v3772 = vmul.f32 %v3771, %v1416
        %v3773 = vand.u32 2147483647, %v1416
        %vm3774 = vcmp.lt.f32.partialorder %v3773, 0.0004427343
        %v3775 = vsel %vm3774, %v3772, %v3769
        %v3776 = vadd.f32 %v1418, 1.0
        %v3777 = vlog2.pop %v3776
        %v3778 = vmul.f32 %v3777, 0.6931472
        %v3779 = vmul.f32 -0.5, %v1418
        %v3780 = vadd.f32 %v3779, 1.0
        %v3781 = vmul.f32 %v3780, %v1418
        %v3782 = vand.u32 2147483647, %v1418
        %vm3783 = vcmp.lt.f32.partialorder %v3782, 0.0004427343
        %v3784 = vsel %vm3783, %v3781, %v3778
        %v3785 = vadd.f32 %v1420, 1.0
        %v3786 = vlog2.pop %v3785
        %v3787 = vmul.f32 %v3786, 0.6931472
        %v3788 = vmul.f32 -0.5, %v1420
        %v3789 = vadd.f32 %v3788, 1.0
        %v3790 = vmul.f32 %v3789, %v1420
        %v3791 = vand.u32 2147483647, %v1420
        %vm3792 = vcmp.lt.f32.partialorder %v3791, 0.0004427343
        %v3793 = vsel %vm3792, %v3790, %v3787
        %v3794 = vadd.f32 %v1422, 1.0
        %v3795 = vlog2.pop %v3794
        %v3796 = vmul.f32 %v3795, 0.6931472
        %v3797 = vmul.f32 -0.5, %v1422
        %v3798 = vadd.f32 %v3797, 1.0
        %v3799 = vmul.f32 %v3798, %v1422
        %v3800 = vand.u32 2147483647, %v1422
        %vm3801 = vcmp.lt.f32.partialorder %v3800, 0.0004427343
        %v3802 = vsel %vm3801, %v3799, %v3796
        %v3803 = vadd.f32 %v1424, 1.0
        %v3804 = vlog2.pop %v3803
        %v3805 = vmul.f32 %v3804, 0.6931472
        %v3806 = vmul.f32 -0.5, %v1424
        %v3807 = vadd.f32 %v3806, 1.0
        %v3808 = vmul.f32 %v3807, %v1424
        %v3809 = vand.u32 2147483647, %v1424
        %vm3810 = vcmp.lt.f32.partialorder %v3809, 0.0004427343
        %v3811 = vsel %vm3810, %v3808, %v3805
        %v3812 = vadd.f32 %v1426, 1.0
        %v3813 = vlog2.pop %v3812
        %v3814 = vmul.f32 %v3813, 0.6931472
        %v3815 = vmul.f32 -0.5, %v1426
        %v3816 = vadd.f32 %v3815, 1.0
        %v3817 = vmul.f32 %v3816, %v1426
        %v3818 = vand.u32 2147483647, %v1426
        %vm3819 = vcmp.lt.f32.partialorder %v3818, 0.0004427343
        %v3820 = vsel %vm3819, %v3817, %v3814
        %v3821 = vadd.f32 %v1428, 1.0
        %v3822 = vlog2.pop %v3821
        %v3823 = vmul.f32 %v3822, 0.6931472
        %v3824 = vmul.f32 -0.5, %v1428
        %v3825 = vadd.f32 %v3824, 1.0
        %v3826 = vmul.f32 %v3825, %v1428
        %v3827 = vand.u32 2147483647, %v1428
        %vm3828 = vcmp.lt.f32.partialorder %v3827, 0.0004427343
        %v3829 = vsel %vm3828, %v3826, %v3823
        %v3830 = vadd.f32 %v1430, 1.0
        %v3831 = vlog2.pop %v3830
        %v3832 = vmul.f32 %v3831, 0.6931472
        %v3833 = vmul.f32 -0.5, %v1430
        %v3834 = vadd.f32 %v3833, 1.0
        %v3835 = vmul.f32 %v3834, %v1430
        %v3836 = vand.u32 2147483647, %v1430
        %vm3837 = vcmp.lt.f32.partialorder %v3836, 0.0004427343
        %v3838 = vsel %vm3837, %v3835, %v3832
        %v3839 = vadd.f32 %v1432, 1.0
        %v3840 = vlog2.pop %v3839
        %v3841 = vmul.f32 %v3840, 0.6931472
        %v3842 = vmul.f32 -0.5, %v1432
        %v3843 = vadd.f32 %v3842, 1.0
        %v3844 = vmul.f32 %v3843, %v1432
        %v3845 = vand.u32 2147483647, %v1432
        %vm3846 = vcmp.lt.f32.partialorder %v3845, 0.0004427343
        %v3847 = vsel %vm3846, %v3844, %v3841
        %v3848 = vadd.f32 %v1434, 1.0
        %v3849 = vlog2.pop %v3848
        %v3850 = vmul.f32 %v3849, 0.6931472
        %v3851 = vmul.f32 -0.5, %v1434
        %v3852 = vadd.f32 %v3851, 1.0
        %v3853 = vmul.f32 %v3852, %v1434
        %v3854 = vand.u32 2147483647, %v1434
        %vm3855 = vcmp.lt.f32.partialorder %v3854, 0.0004427343
        %v3856 = vsel %vm3855, %v3853, %v3850
        %v3857 = vadd.f32 %v1436, 1.0
        %v3858 = vlog2.pop %v3857
        %v3859 = vmul.f32 %v3858, 0.6931472
        %v3860 = vmul.f32 -0.5, %v1436
        %v3861 = vadd.f32 %v3860, 1.0
        %v3862 = vmul.f32 %v3861, %v1436
        %v3863 = vand.u32 2147483647, %v1436
        %vm3864 = vcmp.lt.f32.partialorder %v3863, 0.0004427343
        %v3865 = vsel %vm3864, %v3862, %v3859
        %v3866 = vadd.f32 %v1438, 1.0
        %v3867 = vlog2.pop %v3866
        %v3868 = vmul.f32 %v3867, 0.6931472
        %v3869 = vmul.f32 -0.5, %v1438
        %v3870 = vadd.f32 %v3869, 1.0
        %v3871 = vmul.f32 %v3870, %v1438
        %v3872 = vand.u32 2147483647, %v1438
        %vm3873 = vcmp.lt.f32.partialorder %v3872, 0.0004427343
        %v3874 = vsel %vm3873, %v3871, %v3868
        %v3875 = vadd.f32 %v1440, 1.0
        %v3876 = vlog2.pop %v3875
        %v3877 = vmul.f32 %v3876, 0.6931472
        %v3878 = vmul.f32 -0.5, %v1440
        %v3879 = vadd.f32 %v3878, 1.0
        %v3880 = vmul.f32 %v3879, %v1440
        %v3881 = vand.u32 2147483647, %v1440
        %vm3882 = vcmp.lt.f32.partialorder %v3881, 0.0004427343
        %v3883 = vsel %vm3882, %v3880, %v3877
        %v3884 = vadd.f32 %v1442, 1.0
        %v3885 = vlog2.pop %v3884
        %v3886 = vmul.f32 %v3885, 0.6931472
        %v3887 = vmul.f32 -0.5, %v1442
        %v3888 = vadd.f32 %v3887, 1.0
        %v3889 = vmul.f32 %v3888, %v1442
        %v3890 = vand.u32 2147483647, %v1442
        %vm3891 = vcmp.lt.f32.partialorder %v3890, 0.0004427343
        %v3892 = vsel %vm3891, %v3889, %v3886
        %v3893 = vadd.f32 %v1444, 1.0
        %v3894 = vlog2.pop %v3893
        %v3895 = vmul.f32 %v3894, 0.6931472
        %v3896 = vmul.f32 -0.5, %v1444
        %v3897 = vadd.f32 %v3896, 1.0
        %v3898 = vmul.f32 %v3897, %v1444
        %v3899 = vand.u32 2147483647, %v1444
        %vm3900 = vcmp.lt.f32.partialorder %v3899, 0.0004427343
        %v3901 = vsel %vm3900, %v3898, %v3895
        %v3902 = vadd.f32 %v1446, 1.0
        %v3903 = vlog2.pop %v3902
        %v3904 = vmul.f32 %v3903, 0.6931472
        %v3905 = vmul.f32 -0.5, %v1446
        %v3906 = vadd.f32 %v3905, 1.0
        %v3907 = vmul.f32 %v3906, %v1446
        %v3908 = vand.u32 2147483647, %v1446
        %vm3909 = vcmp.lt.f32.partialorder %v3908, 0.0004427343
        %v3910 = vsel %vm3909, %v3907, %v3904
        %v3911 = vadd.f32 %v1448, 1.0
        %v3912 = vlog2.pop %v3911
        %v3913 = vmul.f32 %v3912, 0.6931472
        %v3914 = vmul.f32 -0.5, %v1448
        %v3915 = vadd.f32 %v3914, 1.0
        %v3916 = vmul.f32 %v3915, %v1448
        %v3917 = vand.u32 2147483647, %v1448
        %vm3918 = vcmp.lt.f32.partialorder %v3917, 0.0004427343
        %v3919 = vsel %vm3918, %v3916, %v3913
        %v3920 = vadd.f32 %v1450, 1.0
        %v3921 = vlog2.pop %v3920
        %v3922 = vmul.f32 %v3921, 0.6931472
        %v3923 = vmul.f32 -0.5, %v1450
        %v3924 = vadd.f32 %v3923, 1.0
        %v3925 = vmul.f32 %v3924, %v1450
        %v3926 = vand.u32 2147483647, %v1450
        %vm3927 = vcmp.lt.f32.partialorder %v3926, 0.0004427343
        %v3928 = vsel %vm3927, %v3925, %v3922
        %v3929 = vadd.f32 %v1452, 1.0
        %v3930 = vlog2.pop %v3929
        %v3931 = vmul.f32 %v3930, 0.6931472
        %v3932 = vmul.f32 -0.5, %v1452
        %v3933 = vadd.f32 %v3932, 1.0
        %v3934 = vmul.f32 %v3933, %v1452
        %v3935 = vand.u32 2147483647, %v1452
        %vm3936 = vcmp.lt.f32.partialorder %v3935, 0.0004427343
        %v3937 = vsel %vm3936, %v3934, %v3931
        %v3938 = vadd.f32 %v1454, 1.0
        %v3939 = vlog2.pop %v3938
        %v3940 = vmul.f32 %v3939, 0.6931472
        %v3941 = vmul.f32 -0.5, %v1454
        %v3942 = vadd.f32 %v3941, 1.0
        %v3943 = vmul.f32 %v3942, %v1454
        %v3944 = vand.u32 2147483647, %v1454
        %vm3945 = vcmp.lt.f32.partialorder %v3944, 0.0004427343
        %v3946 = vsel %vm3945, %v3943, %v3940
        %v3947 = vadd.f32 %v1456, 1.0
        %v3948 = vlog2.pop %v3947
        %v3949 = vmul.f32 %v3948, 0.6931472
        %v3950 = vmul.f32 -0.5, %v1456
        %v3951 = vadd.f32 %v3950, 1.0
        %v3952 = vmul.f32 %v3951, %v1456
        %v3953 = vand.u32 2147483647, %v1456
        %vm3954 = vcmp.lt.f32.partialorder %v3953, 0.0004427343
        %v3955 = vsel %vm3954, %v3952, %v3949
        %v3956 = vadd.f32 %v1458, 1.0
        %v3957 = vlog2.pop %v3956
        %v3958 = vmul.f32 %v3957, 0.6931472
        %v3959 = vmul.f32 -0.5, %v1458
        %v3960 = vadd.f32 %v3959, 1.0
        %v3961 = vmul.f32 %v3960, %v1458
        %v3962 = vand.u32 2147483647, %v1458
        %vm3963 = vcmp.lt.f32.partialorder %v3962, 0.0004427343
        %v3964 = vsel %vm3963, %v3961, %v3958
        %v3965 = vadd.f32 %v1460, 1.0
        %v3966 = vlog2.pop %v3965
        %v3967 = vmul.f32 %v3966, 0.6931472
        %v3968 = vmul.f32 -0.5, %v1460
        %v3969 = vadd.f32 %v3968, 1.0
        %v3970 = vmul.f32 %v3969, %v1460
        %v3971 = vand.u32 2147483647, %v1460
        %vm3972 = vcmp.lt.f32.partialorder %v3971, 0.0004427343
        %v3973 = vsel %vm3972, %v3970, %v3967
        %v3974 = vadd.f32 %v1462, 1.0
        %v3975 = vlog2.pop %v3974
        %v3976 = vmul.f32 %v3975, 0.6931472
        %v3977 = vmul.f32 -0.5, %v1462
        %v3978 = vadd.f32 %v3977, 1.0
        %v3979 = vmul.f32 %v3978, %v1462
        %v3980 = vand.u32 2147483647, %v1462
        %vm3981 = vcmp.lt.f32.partialorder %v3980, 0.0004427343
        %v3982 = vsel %vm3981, %v3979, %v3976
        %v3983 = vadd.f32 %v1464, 1.0
        %v3984 = vlog2.pop %v3983
        %v3985 = vmul.f32 %v3984, 0.6931472
        %v3986 = vmul.f32 -0.5, %v1464
        %v3987 = vadd.f32 %v3986, 1.0
        %v3988 = vmul.f32 %v3987, %v1464
        %v3989 = vand.u32 2147483647, %v1464
        %vm3990 = vcmp.lt.f32.partialorder %v3989, 0.0004427343
        %v3991 = vsel %vm3990, %v3988, %v3985
        %v3992 = vadd.f32 %v1466, 1.0
        %v3993 = vlog2.pop %v3992
        %v3994 = vmul.f32 %v3993, 0.6931472
        %v3995 = vmul.f32 -0.5, %v1466
        %v3996 = vadd.f32 %v3995, 1.0
        %v3997 = vmul.f32 %v3996, %v1466
        %v3998 = vand.u32 2147483647, %v1466
        %vm3999 = vcmp.lt.f32.partialorder %v3998, 0.0004427343
        %v4000 = vsel %vm3999, %v3997, %v3994
        %v4001 = vadd.f32 %v1468, 1.0
        %v4002 = vlog2.pop %v4001
        %v4003 = vmul.f32 %v4002, 0.6931472
        %v4004 = vmul.f32 -0.5, %v1468
        %v4005 = vadd.f32 %v4004, 1.0
        %v4006 = vmul.f32 %v4005, %v1468
        %v4007 = vand.u32 2147483647, %v1468
        %vm4008 = vcmp.lt.f32.partialorder %v4007, 0.0004427343
        %v4009 = vsel %vm4008, %v4006, %v4003
        %v4010 = vadd.f32 %v1470, 1.0
        %v4011 = vlog2.pop %v4010
        %v4012 = vmul.f32 %v4011, 0.6931472
        %v4013 = vmul.f32 -0.5, %v1470
        %v4014 = vadd.f32 %v4013, 1.0
        %v4015 = vmul.f32 %v4014, %v1470
        %v4016 = vand.u32 2147483647, %v1470
        %vm4017 = vcmp.lt.f32.partialorder %v4016, 0.0004427343
        %v4018 = vsel %vm4017, %v4015, %v4012
        %v4019 = vadd.f32 %v1472, 1.0
        %v4020 = vlog2.pop %v4019
        %v4021 = vmul.f32 %v4020, 0.6931472
        %v4022 = vmul.f32 -0.5, %v1472
        %v4023 = vadd.f32 %v4022, 1.0
        %v4024 = vmul.f32 %v4023, %v1472
        %v4025 = vand.u32 2147483647, %v1472
        %vm4026 = vcmp.lt.f32.partialorder %v4025, 0.0004427343
        %v4027 = vsel %vm4026, %v4024, %v4021
        %v4028 = vadd.f32 %v1474, 1.0
        %v4029 = vlog2.pop %v4028
        %v4030 = vmul.f32 %v4029, 0.6931472
        %v4031 = vmul.f32 -0.5, %v1474
        %v4032 = vadd.f32 %v4031, 1.0
        %v4033 = vmul.f32 %v4032, %v1474
        %v4034 = vand.u32 2147483647, %v1474
        %vm4035 = vcmp.lt.f32.partialorder %v4034, 0.0004427343
        %v4036 = vsel %vm4035, %v4033, %v4030
        %v4037 = vadd.f32 %v1476, 1.0
        %v4038 = vlog2.pop %v4037
        %v4039 = vmul.f32 %v4038, 0.6931472
        %v4040 = vmul.f32 -0.5, %v1476
        %v4041 = vadd.f32 %v4040, 1.0
        %v4042 = vmul.f32 %v4041, %v1476
        %v4043 = vand.u32 2147483647, %v1476
        %vm4044 = vcmp.lt.f32.partialorder %v4043, 0.0004427343
        %v4045 = vsel %vm4044, %v4042, %v4039
        %v4046 = vadd.f32 %v1478, 1.0
        %v4047 = vlog2.pop %v4046
        %v4048 = vmul.f32 %v4047, 0.6931472
        %v4049 = vmul.f32 -0.5, %v1478
        %v4050 = vadd.f32 %v4049, 1.0
        %v4051 = vmul.f32 %v4050, %v1478
        %v4052 = vand.u32 2147483647, %v1478
        %vm4053 = vcmp.lt.f32.partialorder %v4052, 0.0004427343
        %v4054 = vsel %vm4053, %v4051, %v4048
        %v4055 = vadd.f32 %v1480, 1.0
        %v4056 = vlog2.pop %v4055
        %v4057 = vmul.f32 %v4056, 0.6931472
        %v4058 = vmul.f32 -0.5, %v1480
        %v4059 = vadd.f32 %v4058, 1.0
        %v4060 = vmul.f32 %v4059, %v1480
        %v4061 = vand.u32 2147483647, %v1480
        %vm4062 = vcmp.lt.f32.partialorder %v4061, 0.0004427343
        %v4063 = vsel %vm4062, %v4060, %v4057
        %v4064 = vadd.f32 %v1482, 1.0
        %v4065 = vlog2.pop %v4064
        %v4066 = vmul.f32 %v4065, 0.6931472
        %v4067 = vmul.f32 -0.5, %v1482
        %v4068 = vadd.f32 %v4067, 1.0
        %v4069 = vmul.f32 %v4068, %v1482
        %v4070 = vand.u32 2147483647, %v1482
        %vm4071 = vcmp.lt.f32.partialorder %v4070, 0.0004427343
        %v4072 = vsel %vm4071, %v4069, %v4066
        %v4073 = vadd.f32 %v1484, 1.0
        %v4074 = vlog2.pop %v4073
        %v4075 = vmul.f32 %v4074, 0.6931472
        %v4076 = vmul.f32 -0.5, %v1484
        %v4077 = vadd.f32 %v4076, 1.0
        %v4078 = vmul.f32 %v4077, %v1484
        %v4079 = vand.u32 2147483647, %v1484
        %vm4080 = vcmp.lt.f32.partialorder %v4079, 0.0004427343
        %v4081 = vsel %vm4080, %v4078, %v4075
        %v4082 = vadd.f32 %v1486, 1.0
        %v4083 = vlog2.pop %v4082
        %v4084 = vmul.f32 %v4083, 0.6931472
        %v4085 = vmul.f32 -0.5, %v1486
        %v4086 = vadd.f32 %v4085, 1.0
        %v4087 = vmul.f32 %v4086, %v1486
        %v4088 = vand.u32 2147483647, %v1486
        %vm4089 = vcmp.lt.f32.partialorder %v4088, 0.0004427343
        %v4090 = vsel %vm4089, %v4087, %v4084
        %v4091 = vadd.f32 %v1488, 1.0
        %v4092 = vlog2.pop %v4091
        %v4093 = vmul.f32 %v4092, 0.6931472
        %v4094 = vmul.f32 -0.5, %v1488
        %v4095 = vadd.f32 %v4094, 1.0
        %v4096 = vmul.f32 %v4095, %v1488
        %v4097 = vand.u32 2147483647, %v1488
        %vm4098 = vcmp.lt.f32.partialorder %v4097, 0.0004427343
        %v4099 = vsel %vm4098, %v4096, %v4093
        %v4100 = vadd.f32 %v1490, 1.0
        %v4101 = vlog2.pop %v4100
        %v4102 = vmul.f32 %v4101, 0.6931472
        %v4103 = vmul.f32 -0.5, %v1490
        %v4104 = vadd.f32 %v4103, 1.0
        %v4105 = vmul.f32 %v4104, %v1490
        %v4106 = vand.u32 2147483647, %v1490
        %vm4107 = vcmp.lt.f32.partialorder %v4106, 0.0004427343
        %v4108 = vsel %vm4107, %v4105, %v4102
        %v4109 = vadd.f32 %v1492, 1.0
        %v4110 = vlog2.pop %v4109
        %v4111 = vmul.f32 %v4110, 0.6931472
        %v4112 = vmul.f32 -0.5, %v1492
        %v4113 = vadd.f32 %v4112, 1.0
        %v4114 = vmul.f32 %v4113, %v1492
        %v4115 = vand.u32 2147483647, %v1492
        %vm4116 = vcmp.lt.f32.partialorder %v4115, 0.0004427343
        %v4117 = vsel %vm4116, %v4114, %v4111
        %v4118 = vadd.f32 %v1494, 1.0
        %v4119 = vlog2.pop %v4118
        %v4120 = vmul.f32 %v4119, 0.6931472
        %v4121 = vmul.f32 -0.5, %v1494
        %v4122 = vadd.f32 %v4121, 1.0
        %v4123 = vmul.f32 %v4122, %v1494
        %v4124 = vand.u32 2147483647, %v1494
        %vm4125 = vcmp.lt.f32.partialorder %v4124, 0.0004427343
        %v4126 = vsel %vm4125, %v4123, %v4120
        %v4127 = vadd.f32 %v1496, 1.0
        %v4128 = vlog2.pop %v4127
        %v4129 = vmul.f32 %v4128, 0.6931472
        %v4130 = vmul.f32 -0.5, %v1496
        %v4131 = vadd.f32 %v4130, 1.0
        %v4132 = vmul.f32 %v4131, %v1496
        %v4133 = vand.u32 2147483647, %v1496
        %vm4134 = vcmp.lt.f32.partialorder %v4133, 0.0004427343
        %v4135 = vsel %vm4134, %v4132, %v4129
        %v4136 = vadd.f32 %v1498, 1.0
        %v4137 = vlog2.pop %v4136
        %v4138 = vmul.f32 %v4137, 0.6931472
        %v4139 = vmul.f32 -0.5, %v1498
        %v4140 = vadd.f32 %v4139, 1.0
        %v4141 = vmul.f32 %v4140, %v1498
        %v4142 = vand.u32 2147483647, %v1498
        %vm4143 = vcmp.lt.f32.partialorder %v4142, 0.0004427343
        %v4144 = vsel %vm4143, %v4141, %v4138
        %v4145 = vadd.f32 %v1500, 1.0
        %v4146 = vlog2.pop %v4145
        %v4147 = vmul.f32 %v4146, 0.6931472
        %v4148 = vmul.f32 -0.5, %v1500
        %v4149 = vadd.f32 %v4148, 1.0
        %v4150 = vmul.f32 %v4149, %v1500
        %v4151 = vand.u32 2147483647, %v1500
        %vm4152 = vcmp.lt.f32.partialorder %v4151, 0.0004427343
        %v4153 = vsel %vm4152, %v4150, %v4147
        %v4154 = vadd.f32 %v1502, 1.0
        %v4155 = vlog2.pop %v4154
        %v4156 = vmul.f32 %v4155, 0.6931472
        %v4157 = vmul.f32 -0.5, %v1502
        %v4158 = vadd.f32 %v4157, 1.0
        %v4159 = vmul.f32 %v4158, %v1502
        %v4160 = vand.u32 2147483647, %v1502
        %vm4161 = vcmp.lt.f32.partialorder %v4160, 0.0004427343
        %v4162 = vsel %vm4161, %v4159, %v4156
        %v4163 = vadd.f32 %v1504, 1.0
        %v4164 = vlog2.pop %v4163
        %v4165 = vmul.f32 %v4164, 0.6931472
        %v4166 = vmul.f32 -0.5, %v1504
        %v4167 = vadd.f32 %v4166, 1.0
        %v4168 = vmul.f32 %v4167, %v1504
        %v4169 = vand.u32 2147483647, %v1504
        %vm4170 = vcmp.lt.f32.partialorder %v4169, 0.0004427343
        %v4171 = vsel %vm4170, %v4168, %v4165
        %v4172 = vadd.f32 %v1506, 1.0
        %v4173 = vlog2.pop %v4172
        %v4174 = vmul.f32 %v4173, 0.6931472
        %v4175 = vmul.f32 -0.5, %v1506
        %v4176 = vadd.f32 %v4175, 1.0
        %v4177 = vmul.f32 %v4176, %v1506
        %v4178 = vand.u32 2147483647, %v1506
        %vm4179 = vcmp.lt.f32.partialorder %v4178, 0.0004427343
        %v4180 = vsel %vm4179, %v4177, %v4174
        %v4181 = vadd.f32 %v1508, 1.0
        %v4182 = vlog2.pop %v4181
        %v4183 = vmul.f32 %v4182, 0.6931472
        %v4184 = vmul.f32 -0.5, %v1508
        %v4185 = vadd.f32 %v4184, 1.0
        %v4186 = vmul.f32 %v4185, %v1508
        %v4187 = vand.u32 2147483647, %v1508
        %vm4188 = vcmp.lt.f32.partialorder %v4187, 0.0004427343
        %v4189 = vsel %vm4188, %v4186, %v4183
        %v4190 = vadd.f32 %v1510, 1.0
        %v4191 = vlog2.pop %v4190
        %v4192 = vmul.f32 %v4191, 0.6931472
        %v4193 = vmul.f32 -0.5, %v1510
        %v4194 = vadd.f32 %v4193, 1.0
        %v4195 = vmul.f32 %v4194, %v1510
        %v4196 = vand.u32 2147483647, %v1510
        %vm4197 = vcmp.lt.f32.partialorder %v4196, 0.0004427343
        %v4198 = vsel %vm4197, %v4195, %v4192
        %v4199 = vadd.f32 %v2919, %v3055
        %v4200 = vadd.f32 %v2920, %v3064
        %v4201 = vadd.f32 %v2921, %v3073
        %v4202 = vadd.f32 %v2922, %v3082
        %v4203 = vadd.f32 %v2923, %v3091
        %v4204 = vadd.f32 %v2924, %v3100
        %v4205 = vadd.f32 %v2925, %v3109
        %v4206 = vadd.f32 %v2926, %v3118
        %v4207 = vadd.f32 %v2927, %v3127
        %v4208 = vadd.f32 %v2928, %v3136
        %v4209 = vadd.f32 %v2929, %v3145
        %v4210 = vadd.f32 %v2930, %v3154
        %v4211 = vadd.f32 %v2931, %v3163
        %v4212 = vadd.f32 %v2932, %v3172
        %v4213 = vadd.f32 %v2933, %v3181
        %v4214 = vadd.f32 %v2934, %v3190
        %v4215 = vadd.f32 %v2935, %v3199
        %v4216 = vadd.f32 %v2936, %v3208
        %v4217 = vadd.f32 %v2937, %v3217
        %v4218 = vadd.f32 %v2938, %v3226
        %v4219 = vadd.f32 %v2939, %v3235
        %v4220 = vadd.f32 %v2940, %v3244
        %v4221 = vadd.f32 %v2941, %v3253
        %v4222 = vadd.f32 %v2942, %v3262
        %v4223 = vadd.f32 %v2943, %v3271
        %v4224 = vadd.f32 %v2944, %v3280
        %v4225 = vadd.f32 %v2945, %v3289
        %v4226 = vadd.f32 %v2946, %v3298
        %v4227 = vadd.f32 %v2947, %v3307
        %v4228 = vadd.f32 %v2948, %v3316
        %v4229 = vadd.f32 %v2949, %v3325
        %v4230 = vadd.f32 %v2950, %v3334
        %v4231 = vadd.f32 %v2951, %v3343
        %v4232 = vadd.f32 %v2952, %v3352
        %v4233 = vadd.f32 %v2953, %v3361
        %v4234 = vadd.f32 %v2954, %v3370
        %v4235 = vadd.f32 %v2955, %v3379
        %v4236 = vadd.f32 %v2956, %v3388
        %v4237 = vadd.f32 %v2957, %v3397
        %v4238 = vadd.f32 %v2958, %v3406
        %v4239 = vadd.f32 %v2959, %v3415
        %v4240 = vadd.f32 %v2960, %v3424
        %v4241 = vadd.f32 %v2961, %v3433
        %v4242 = vadd.f32 %v2962, %v3442
        %v4243 = vadd.f32 %v2963, %v3451
        %v4244 = vadd.f32 %v2964, %v3460
        %v4245 = vadd.f32 %v2965, %v3469
        %v4246 = vadd.f32 %v2966, %v3478
        %v4247 = vadd.f32 %v2967, %v3487
        %v4248 = vadd.f32 %v2968, %v3496
        %v4249 = vadd.f32 %v2969, %v3505
        %v4250 = vadd.f32 %v2970, %v3514
        %v4251 = vadd.f32 %v2971, %v3523
        %v4252 = vadd.f32 %v2972, %v3532
        %v4253 = vadd.f32 %v2973, %v3541
        %v4254 = vadd.f32 %v2974, %v3550
        %v4255 = vadd.f32 %v2975, %v3559
        %v4256 = vadd.f32 %v2976, %v3568
        %v4257 = vadd.f32 %v2977, %v3577
        %v4258 = vadd.f32 %v2978, %v3586
        %v4259 = vadd.f32 %v2979, %v3595
        %v4260 = vadd.f32 %v2980, %v3604
        %v4261 = vadd.f32 %v2981, %v3613
        %v4262 = vadd.f32 %v2982, %v3622
        %v4263 = vadd.f32 %v2983, %v3631
        %v4264 = vadd.f32 %v2984, %v3640
        %v4265 = vadd.f32 %v2985, %v3649
        %v4266 = vadd.f32 %v2986, %v3658
        %v4267 = vadd.f32 %v2987, %v3667
        %v4268 = vadd.f32 %v2988, %v3676
        %v4269 = vadd.f32 %v2989, %v3685
        %v4270 = vadd.f32 %v2990, %v3694
        %v4271 = vadd.f32 %v2991, %v3703
        %v4272 = vadd.f32 %v2992, %v3712
        %v4273 = vadd.f32 %v2993, %v3721
        %v4274 = vadd.f32 %v2994, %v3730
        %v4275 = vadd.f32 %v2995, %v3739
        %v4276 = vadd.f32 %v2996, %v3748
        %v4277 = vadd.f32 %v2997, %v3757
        %v4278 = vadd.f32 %v2998, %v3766
        %v4279 = vadd.f32 %v2999, %v3775
        %v4280 = vadd.f32 %v3000, %v3784
        %v4281 = vadd.f32 %v3001, %v3793
        %v4282 = vadd.f32 %v3002, %v3802
        %v4283 = vadd.f32 %v3003, %v3811
        %v4284 = vadd.f32 %v3004, %v3820
        %v4285 = vadd.f32 %v3005, %v3829
        %v4286 = vadd.f32 %v3006, %v3838
        %v4287 = vadd.f32 %v3007, %v3847
        %v4288 = vadd.f32 %v3008, %v3856
        %v4289 = vadd.f32 %v3009, %v3865
        %v4290 = vadd.f32 %v3010, %v3874
        %v4291 = vadd.f32 %v3011, %v3883
        %v4292 = vadd.f32 %v3012, %v3892
        %v4293 = vadd.f32 %v3013, %v3901
        %v4294 = vadd.f32 %v3014, %v3910
        %v4295 = vadd.f32 %v3015, %v3919
        %v4296 = vadd.f32 %v3016, %v3928
        %v4297 = vadd.f32 %v3017, %v3937
        %v4298 = vadd.f32 %v3018, %v3946
        %v4299 = vadd.f32 %v3019, %v3955
        %v4300 = vadd.f32 %v3020, %v3964
        %v4301 = vadd.f32 %v3021, %v3973
        %v4302 = vadd.f32 %v3022, %v3982
        %v4303 = vadd.f32 %v3023, %v3991
        %v4304 = vadd.f32 %v3024, %v4000
        %v4305 = vadd.f32 %v3025, %v4009
        %v4306 = vadd.f32 %v3026, %v4018
        %v4307 = vadd.f32 %v3027, %v4027
        %v4308 = vadd.f32 %v3028, %v4036
        %v4309 = vadd.f32 %v3029, %v4045
        %v4310 = vadd.f32 %v3030, %v4054
        %v4311 = vadd.f32 %v3031, %v4063
        %v4312 = vadd.f32 %v3032, %v4072
        %v4313 = vadd.f32 %v3033, %v4081
        %v4314 = vadd.f32 %v3034, %v4090
        %v4315 = vadd.f32 %v3035, %v4099
        %v4316 = vadd.f32 %v3036, %v4108
        %v4317 = vadd.f32 %v3037, %v4117
        %v4318 = vadd.f32 %v3038, %v4126
        %v4319 = vadd.f32 %v3039, %v4135
        %v4320 = vadd.f32 %v3040, %v4144
        %v4321 = vadd.f32 %v3041, %v4153
        %v4322 = vadd.f32 %v3042, %v4162
        %v4323 = vadd.f32 %v3043, %v4171
        %v4324 = vadd.f32 %v3044, %v4180
        %v4325 = vadd.f32 %v3045, %v4189
        %v4326 = vadd.f32 %v3046, %v4198
        %v4327 = vsub.f32 %v359, %v4199
        %v4328 = vsub.f32 %v360, %v4200
        %v4329 = vsub.f32 %v361, %v4201
        %v4330 = vsub.f32 %v362, %v4202
        %v4331 = vsub.f32 %v363, %v4203
        %v4332 = vsub.f32 %v364, %v4204
        %v4333 = vsub.f32 %v365, %v4205
        %v4334 = vsub.f32 %v366, %v4206
        %v4335 = vsub.f32 %v367, %v4207
        %v4336 = vsub.f32 %v368, %v4208
        %v4337 = vsub.f32 %v369, %v4209
        %v4338 = vsub.f32 %v370, %v4210
        %v4339 = vsub.f32 %v371, %v4211
        %v4340 = vsub.f32 %v372, %v4212
        %v4341 = vsub.f32 %v373, %v4213
        %v4342 = vsub.f32 %v374, %v4214
        %v4343 = vsub.f32 %v375, %v4215
        %v4344 = vsub.f32 %v376, %v4216
        %v4345 = vsub.f32 %v377, %v4217
        %v4346 = vsub.f32 %v378, %v4218
        %v4347 = vsub.f32 %v379, %v4219
        %v4348 = vsub.f32 %v380, %v4220
        %v4349 = vsub.f32 %v381, %v4221
        %v4350 = vsub.f32 %v382, %v4222
        %v4351 = vsub.f32 %v383, %v4223
        %v4352 = vsub.f32 %v384, %v4224
        %v4353 = vsub.f32 %v385, %v4225
        %v4354 = vsub.f32 %v386, %v4226
        %v4355 = vsub.f32 %v387, %v4227
        %v4356 = vsub.f32 %v388, %v4228
        %v4357 = vsub.f32 %v389, %v4229
        %v4358 = vsub.f32 %v390, %v4230
        %v4359 = vsub.f32 %v391, %v4231
        %v4360 = vsub.f32 %v392, %v4232
        %v4361 = vsub.f32 %v393, %v4233
        %v4362 = vsub.f32 %v394, %v4234
        %v4363 = vsub.f32 %v395, %v4235
        %v4364 = vsub.f32 %v396, %v4236
        %v4365 = vsub.f32 %v397, %v4237
        %v4366 = vsub.f32 %v398, %v4238
        %v4367 = vsub.f32 %v399, %v4239
        %v4368 = vsub.f32 %v400, %v4240
        %v4369 = vsub.f32 %v401, %v4241
        %v4370 = vsub.f32 %v402, %v4242
        %v4371 = vsub.f32 %v403, %v4243
        %v4372 = vsub.f32 %v404, %v4244
        %v4373 = vsub.f32 %v405, %v4245
        %v4374 = vsub.f32 %v406, %v4246
        %v4375 = vsub.f32 %v407, %v4247
        %v4376 = vsub.f32 %v408, %v4248
        %v4377 = vsub.f32 %v409, %v4249
        %v4378 = vsub.f32 %v410, %v4250
        %v4379 = vsub.f32 %v411, %v4251
        %v4380 = vsub.f32 %v412, %v4252
        %v4381 = vsub.f32 %v413, %v4253
        %v4382 = vsub.f32 %v414, %v4254
        %v4383 = vsub.f32 %v415, %v4255
        %v4384 = vsub.f32 %v416, %v4256
        %v4385 = vsub.f32 %v417, %v4257
        %v4386 = vsub.f32 %v418, %v4258
        %v4387 = vsub.f32 %v419, %v4259
        %v4388 = vsub.f32 %v420, %v4260
        %v4389 = vsub.f32 %v421, %v4261
        %v4390 = vsub.f32 %v422, %v4262
        %v4391 = vsub.f32 %v423, %v4263
        %v4392 = vsub.f32 %v424, %v4264
        %v4393 = vsub.f32 %v425, %v4265
        %v4394 = vsub.f32 %v426, %v4266
        %v4395 = vsub.f32 %v427, %v4267
        %v4396 = vsub.f32 %v428, %v4268
        %v4397 = vsub.f32 %v429, %v4269
        %v4398 = vsub.f32 %v430, %v4270
        %v4399 = vsub.f32 %v431, %v4271
        %v4400 = vsub.f32 %v432, %v4272
        %v4401 = vsub.f32 %v433, %v4273
        %v4402 = vsub.f32 %v434, %v4274
        %v4403 = vsub.f32 %v435, %v4275
        %v4404 = vsub.f32 %v436, %v4276
        %v4405 = vsub.f32 %v437, %v4277
        %v4406 = vsub.f32 %v438, %v4278
        %v4407 = vsub.f32 %v439, %v4279
        %v4408 = vsub.f32 %v440, %v4280
        %v4409 = vsub.f32 %v441, %v4281
        %v4410 = vsub.f32 %v442, %v4282
        %v4411 = vsub.f32 %v443, %v4283
        %v4412 = vsub.f32 %v444, %v4284
        %v4413 = vsub.f32 %v445, %v4285
        %v4414 = vsub.f32 %v446, %v4286
        %v4415 = vsub.f32 %v447, %v4287
        %v4416 = vsub.f32 %v448, %v4288
        %v4417 = vsub.f32 %v449, %v4289
        %v4418 = vsub.f32 %v450, %v4290
        %v4419 = vsub.f32 %v451, %v4291
        %v4420 = vsub.f32 %v452, %v4292
        %v4421 = vsub.f32 %v453, %v4293
        %v4422 = vsub.f32 %v454, %v4294
        %v4423 = vsub.f32 %v455, %v4295
        %v4424 = vsub.f32 %v456, %v4296
        %v4425 = vsub.f32 %v457, %v4297
        %v4426 = vsub.f32 %v458, %v4298
        %v4427 = vsub.f32 %v459, %v4299
        %v4428 = vsub.f32 %v460, %v4300
        %v4429 = vsub.f32 %v461, %v4301
        %v4430 = vsub.f32 %v462, %v4302
        %v4431 = vsub.f32 %v463, %v4303
        %v4432 = vsub.f32 %v464, %v4304
        %v4433 = vsub.f32 %v465, %v4305
        %v4434 = vsub.f32 %v466, %v4306
        %v4435 = vsub.f32 %v467, %v4307
        %v4436 = vsub.f32 %v468, %v4308
        %v4437 = vsub.f32 %v469, %v4309
        %v4438 = vsub.f32 %v470, %v4310
        %v4439 = vsub.f32 %v471, %v4311
        %v4440 = vsub.f32 %v472, %v4312
        %v4441 = vsub.f32 %v473, %v4313
        %v4442 = vsub.f32 %v474, %v4314
        %v4443 = vsub.f32 %v475, %v4315
        %v4444 = vsub.f32 %v476, %v4316
        %v4445 = vsub.f32 %v477, %v4317
        %v4446 = vsub.f32 %v478, %v4318
        %v4447 = vsub.f32 %v479, %v4319
        %v4448 = vsub.f32 %v480, %v4320
        %v4449 = vsub.f32 %v481, %v4321
        %v4450 = vsub.f32 %v482, %v4322
        %v4451 = vsub.f32 %v483, %v4323
        %v4452 = vsub.f32 %v484, %v4324
        %v4453 = vsub.f32 %v485, %v4325
        %v4454 = vsub.f32 %v486, %v4326
        %v4455 = vmul.f32 %v4327, 1.442695
        %v4456 = vpow.pop %v4455
        %v4457 = vmul.f32 %v4328, 1.442695
        %v4458 = vpow.pop %v4457
        %v4459 = vmul.f32 %v4329, 1.442695
        %v4460 = vpow.pop %v4459
        %v4461 = vmul.f32 %v4330, 1.442695
        %v4462 = vpow.pop %v4461
        %v4463 = vmul.f32 %v4331, 1.442695
        %v4464 = vpow.pop %v4463
        %v4465 = vmul.f32 %v4332, 1.442695
        %v4466 = vpow.pop %v4465
        %v4467 = vmul.f32 %v4333, 1.442695
        %v4468 = vpow.pop %v4467
        %v4469 = vmul.f32 %v4334, 1.442695
        %v4470 = vpow.pop %v4469
        %v4471 = vmul.f32 %v4335, 1.442695
        %v4472 = vpow.pop %v4471
        %v4473 = vmul.f32 %v4336, 1.442695
        %v4474 = vpow.pop %v4473
        %v4475 = vmul.f32 %v4337, 1.442695
        %v4476 = vpow.pop %v4475
        %v4477 = vmul.f32 %v4338, 1.442695
        %v4478 = vpow.pop %v4477
        %v4479 = vmul.f32 %v4339, 1.442695
        %v4480 = vpow.pop %v4479
        %v4481 = vmul.f32 %v4340, 1.442695
        %v4482 = vpow.pop %v4481
        %v4483 = vmul.f32 %v4341, 1.442695
        %v4484 = vpow.pop %v4483
        %v4485 = vmul.f32 %v4342, 1.442695
        %v4486 = vpow.pop %v4485
        %v4487 = vmul.f32 %v4343, 1.442695
        %v4488 = vpow.pop %v4487
        %v4489 = vmul.f32 %v4344, 1.442695
        %v4490 = vpow.pop %v4489
        %v4491 = vmul.f32 %v4345, 1.442695
        %v4492 = vpow.pop %v4491
        %v4493 = vmul.f32 %v4346, 1.442695
        %v4494 = vpow.pop %v4493
        %v4495 = vmul.f32 %v4347, 1.442695
        %v4496 = vpow.pop %v4495
        %v4497 = vmul.f32 %v4348, 1.442695
        %v4498 = vpow.pop %v4497
        %v4499 = vmul.f32 %v4349, 1.442695
        %v4500 = vpow.pop %v4499
        %v4501 = vmul.f32 %v4350, 1.442695
        %v4502 = vpow.pop %v4501
        %v4503 = vmul.f32 %v4351, 1.442695
        %v4504 = vpow.pop %v4503
        %v4505 = vmul.f32 %v4352, 1.442695
        %v4506 = vpow.pop %v4505
        %v4507 = vmul.f32 %v4353, 1.442695
        %v4508 = vpow.pop %v4507
        %v4509 = vmul.f32 %v4354, 1.442695
        %v4510 = vpow.pop %v4509
        %v4511 = vmul.f32 %v4355, 1.442695
        %v4512 = vpow.pop %v4511
        %v4513 = vmul.f32 %v4356, 1.442695
        %v4514 = vpow.pop %v4513
        %v4515 = vmul.f32 %v4357, 1.442695
        %v4516 = vpow.pop %v4515
        %v4517 = vmul.f32 %v4358, 1.442695
        %v4518 = vpow.pop %v4517
        %v4519 = vmul.f32 %v4359, 1.442695
        %v4520 = vpow.pop %v4519
        %v4521 = vmul.f32 %v4360, 1.442695
        %v4522 = vpow.pop %v4521
        %v4523 = vmul.f32 %v4361, 1.442695
        %v4524 = vpow.pop %v4523
        %v4525 = vmul.f32 %v4362, 1.442695
        %v4526 = vpow.pop %v4525
        %v4527 = vmul.f32 %v4363, 1.442695
        %v4528 = vpow.pop %v4527
        %v4529 = vmul.f32 %v4364, 1.442695
        %v4530 = vpow.pop %v4529
        %v4531 = vmul.f32 %v4365, 1.442695
        %v4532 = vpow.pop %v4531
        %v4533 = vmul.f32 %v4366, 1.442695
        %v4534 = vpow.pop %v4533
        %v4535 = vmul.f32 %v4367, 1.442695
        %v4536 = vpow.pop %v4535
        %v4537 = vmul.f32 %v4368, 1.442695
        %v4538 = vpow.pop %v4537
        %v4539 = vmul.f32 %v4369, 1.442695
        %v4540 = vpow.pop %v4539
        %v4541 = vmul.f32 %v4370, 1.442695
        %v4542 = vpow.pop %v4541
        %v4543 = vmul.f32 %v4371, 1.442695
        %v4544 = vpow.pop %v4543
        %v4545 = vmul.f32 %v4372, 1.442695
        %v4546 = vpow.pop %v4545
        %v4547 = vmul.f32 %v4373, 1.442695
        %v4548 = vpow.pop %v4547
        %v4549 = vmul.f32 %v4374, 1.442695
        %v4550 = vpow.pop %v4549
        %v4551 = vmul.f32 %v4375, 1.442695
        %v4552 = vpow.pop %v4551
        %v4553 = vmul.f32 %v4376, 1.442695
        %v4554 = vpow.pop %v4553
        %v4555 = vmul.f32 %v4377, 1.442695
        %v4556 = vpow.pop %v4555
        %v4557 = vmul.f32 %v4378, 1.442695
        %v4558 = vpow.pop %v4557
        %v4559 = vmul.f32 %v4379, 1.442695
        %v4560 = vpow.pop %v4559
        %v4561 = vmul.f32 %v4380, 1.442695
        %v4562 = vpow.pop %v4561
        %v4563 = vmul.f32 %v4381, 1.442695
        %v4564 = vpow.pop %v4563
        %v4565 = vmul.f32 %v4382, 1.442695
        %v4566 = vpow.pop %v4565
        %v4567 = vmul.f32 %v4383, 1.442695
        %v4568 = vpow.pop %v4567
        %v4569 = vmul.f32 %v4384, 1.442695
        %v4570 = vpow.pop %v4569
        %v4571 = vmul.f32 %v4385, 1.442695
        %v4572 = vpow.pop %v4571
        %v4573 = vmul.f32 %v4386, 1.442695
        %v4574 = vpow.pop %v4573
        %v4575 = vmul.f32 %v4387, 1.442695
        %v4576 = vpow.pop %v4575
        %v4577 = vmul.f32 %v4388, 1.442695
        %v4578 = vpow.pop %v4577
        %v4579 = vmul.f32 %v4389, 1.442695
        %v4580 = vpow.pop %v4579
        %v4581 = vmul.f32 %v4390, 1.442695
        %v4582 = vpow.pop %v4581
        %v4583 = vmul.f32 %v4391, 1.442695
        %v4584 = vpow.pop %v4583
        %v4585 = vmul.f32 %v4392, 1.442695
        %v4586 = vpow.pop %v4585
        %v4587 = vmul.f32 %v4393, 1.442695
        %v4588 = vpow.pop %v4587
        %v4589 = vmul.f32 %v4394, 1.442695
        %v4590 = vpow.pop %v4589
        %v4591 = vmul.f32 %v4395, 1.442695
        %v4592 = vpow.pop %v4591
        %v4593 = vmul.f32 %v4396, 1.442695
        %v4594 = vpow.pop %v4593
        %v4595 = vmul.f32 %v4397, 1.442695
        %v4596 = vpow.pop %v4595
        %v4597 = vmul.f32 %v4398, 1.442695
        %v4598 = vpow.pop %v4597
        %v4599 = vmul.f32 %v4399, 1.442695
        %v4600 = vpow.pop %v4599
        %v4601 = vmul.f32 %v4400, 1.442695
        %v4602 = vpow.pop %v4601
        %v4603 = vmul.f32 %v4401, 1.442695
        %v4604 = vpow.pop %v4603
        %v4605 = vmul.f32 %v4402, 1.442695
        %v4606 = vpow.pop %v4605
        %v4607 = vmul.f32 %v4403, 1.442695
        %v4608 = vpow.pop %v4607
        %v4609 = vmul.f32 %v4404, 1.442695
        %v4610 = vpow.pop %v4609
        %v4611 = vmul.f32 %v4405, 1.442695
        %v4612 = vpow.pop %v4611
        %v4613 = vmul.f32 %v4406, 1.442695
        %v4614 = vpow.pop %v4613
        %v4615 = vmul.f32 %v4407, 1.442695
        %v4616 = vpow.pop %v4615
        %v4617 = vmul.f32 %v4408, 1.442695
        %v4618 = vpow.pop %v4617
        %v4619 = vmul.f32 %v4409, 1.442695
        %v4620 = vpow.pop %v4619
        %v4621 = vmul.f32 %v4410, 1.442695
        %v4622 = vpow.pop %v4621
        %v4623 = vmul.f32 %v4411, 1.442695
        %v4624 = vpow.pop %v4623
        %v4625 = vmul.f32 %v4412, 1.442695
        %v4626 = vpow.pop %v4625
        %v4627 = vmul.f32 %v4413, 1.442695
        %v4628 = vpow.pop %v4627
        %v4629 = vmul.f32 %v4414, 1.442695
        %v4630 = vpow.pop %v4629
        %v4631 = vmul.f32 %v4415, 1.442695
        %v4632 = vpow.pop %v4631
        %v4633 = vmul.f32 %v4416, 1.442695
        %v4634 = vpow.pop %v4633
        %v4635 = vmul.f32 %v4417, 1.442695
        %v4636 = vpow.pop %v4635
        %v4637 = vmul.f32 %v4418, 1.442695
        %v4638 = vpow.pop %v4637
        %v4639 = vmul.f32 %v4419, 1.442695
        %v4640 = vpow.pop %v4639
        %v4641 = vmul.f32 %v4420, 1.442695
        %v4642 = vpow.pop %v4641
        %v4643 = vmul.f32 %v4421, 1.442695
        %v4644 = vpow.pop %v4643
        %v4645 = vmul.f32 %v4422, 1.442695
        %v4646 = vpow.pop %v4645
        %v4647 = vmul.f32 %v4423, 1.442695
        %v4648 = vpow.pop %v4647
        %v4649 = vmul.f32 %v4424, 1.442695
        %v4650 = vpow.pop %v4649
        %v4651 = vmul.f32 %v4425, 1.442695
        %v4652 = vpow.pop %v4651
        %v4653 = vmul.f32 %v4426, 1.442695
        %v4654 = vpow.pop %v4653
        %v4655 = vmul.f32 %v4427, 1.442695
        %v4656 = vpow.pop %v4655
        %v4657 = vmul.f32 %v4428, 1.442695
        %v4658 = vpow.pop %v4657
        %v4659 = vmul.f32 %v4429, 1.442695
        %v4660 = vpow.pop %v4659
        %v4661 = vmul.f32 %v4430, 1.442695
        %v4662 = vpow.pop %v4661
        %v4663 = vmul.f32 %v4431, 1.442695
        %v4664 = vpow.pop %v4663
        %v4665 = vmul.f32 %v4432, 1.442695
        %v4666 = vpow.pop %v4665
        %v4667 = vmul.f32 %v4433, 1.442695
        %v4668 = vpow.pop %v4667
        %v4669 = vmul.f32 %v4434, 1.442695
        %v4670 = vpow.pop %v4669
        %v4671 = vmul.f32 %v4435, 1.442695
        %v4672 = vpow.pop %v4671
        %v4673 = vmul.f32 %v4436, 1.442695
        %v4674 = vpow.pop %v4673
        %v4675 = vmul.f32 %v4437, 1.442695
        %v4676 = vpow.pop %v4675
        %v4677 = vmul.f32 %v4438, 1.442695
        %v4678 = vpow.pop %v4677
        %v4679 = vmul.f32 %v4439, 1.442695
        %v4680 = vpow.pop %v4679
        %v4681 = vmul.f32 %v4440, 1.442695
        %v4682 = vpow.pop %v4681
        %v4683 = vmul.f32 %v4441, 1.442695
        %v4684 = vpow.pop %v4683
        %v4685 = vmul.f32 %v4442, 1.442695
        %v4686 = vpow.pop %v4685
        %v4687 = vmul.f32 %v4443, 1.442695
        %v4688 = vpow.pop %v4687
        %v4689 = vmul.f32 %v4444, 1.442695
        %v4690 = vpow.pop %v4689
        %v4691 = vmul.f32 %v4445, 1.442695
        %v4692 = vpow.pop %v4691
        %v4693 = vmul.f32 %v4446, 1.442695
        %v4694 = vpow.pop %v4693
        %v4695 = vmul.f32 %v4447, 1.442695
        %v4696 = vpow.pop %v4695
        %v4697 = vmul.f32 %v4448, 1.442695
        %v4698 = vpow.pop %v4697
        %v4699 = vmul.f32 %v4449, 1.442695
        %v4700 = vpow.pop %v4699
        %v4701 = vmul.f32 %v4450, 1.442695
        %v4702 = vpow.pop %v4701
        %v4703 = vmul.f32 %v4451, 1.442695
        %v4704 = vpow.pop %v4703
        %v4705 = vmul.f32 %v4452, 1.442695
        %v4706 = vpow.pop %v4705
        %v4707 = vmul.f32 %v4453, 1.442695
        %v4708 = vpow.pop %v4707
        %v4709 = vmul.f32 %v4454, 1.442695
        %v4710 = vpow.pop %v4709
        %v4711 = vmul.f32 %v231, %v4456
        %v4712 = vmul.f32 %v232, %v4458
        %v4713 = vmul.f32 %v233, %v4460
        %v4714 = vmul.f32 %v234, %v4462
        %v4715 = vmul.f32 %v235, %v4464
        %v4716 = vmul.f32 %v236, %v4466
        %v4717 = vmul.f32 %v237, %v4468
        %v4718 = vmul.f32 %v238, %v4470
        %v4719 = vmul.f32 %v239, %v4472
        %v4720 = vmul.f32 %v240, %v4474
        %v4721 = vmul.f32 %v241, %v4476
        %v4722 = vmul.f32 %v242, %v4478
        %v4723 = vmul.f32 %v243, %v4480
        %v4724 = vmul.f32 %v244, %v4482
        %v4725 = vmul.f32 %v245, %v4484
        %v4726 = vmul.f32 %v246, %v4486
        %v4727 = vmul.f32 %v247, %v4488
        %v4728 = vmul.f32 %v248, %v4490
        %v4729 = vmul.f32 %v249, %v4492
        %v4730 = vmul.f32 %v250, %v4494
        %v4731 = vmul.f32 %v251, %v4496
        %v4732 = vmul.f32 %v252, %v4498
        %v4733 = vmul.f32 %v253, %v4500
        %v4734 = vmul.f32 %v254, %v4502
        %v4735 = vmul.f32 %v255, %v4504
        %v4736 = vmul.f32 %v256, %v4506
        %v4737 = vmul.f32 %v257, %v4508
        %v4738 = vmul.f32 %v258, %v4510
        %v4739 = vmul.f32 %v259, %v4512
        %v4740 = vmul.f32 %v260, %v4514
        %v4741 = vmul.f32 %v261, %v4516
        %v4742 = vmul.f32 %v262, %v4518
        %v4743 = vmul.f32 %v263, %v4520
        %v4744 = vmul.f32 %v264, %v4522
        %v4745 = vmul.f32 %v265, %v4524
        %v4746 = vmul.f32 %v266, %v4526
        %v4747 = vmul.f32 %v267, %v4528
        %v4748 = vmul.f32 %v268, %v4530
        %v4749 = vmul.f32 %v269, %v4532
        %v4750 = vmul.f32 %v270, %v4534
        %v4751 = vmul.f32 %v271, %v4536
        %v4752 = vmul.f32 %v272, %v4538
        %v4753 = vmul.f32 %v273, %v4540
        %v4754 = vmul.f32 %v274, %v4542
        %v4755 = vmul.f32 %v275, %v4544
        %v4756 = vmul.f32 %v276, %v4546
        %v4757 = vmul.f32 %v277, %v4548
        %v4758 = vmul.f32 %v278, %v4550
        %v4759 = vmul.f32 %v279, %v4552
        %v4760 = vmul.f32 %v280, %v4554
        %v4761 = vmul.f32 %v281, %v4556
        %v4762 = vmul.f32 %v282, %v4558
        %v4763 = vmul.f32 %v283, %v4560
        %v4764 = vmul.f32 %v284, %v4562
        %v4765 = vmul.f32 %v285, %v4564
        %v4766 = vmul.f32 %v286, %v4566
        %v4767 = vmul.f32 %v287, %v4568
        %v4768 = vmul.f32 %v288, %v4570
        %v4769 = vmul.f32 %v289, %v4572
        %v4770 = vmul.f32 %v290, %v4574
        %v4771 = vmul.f32 %v291, %v4576
        %v4772 = vmul.f32 %v292, %v4578
        %v4773 = vmul.f32 %v293, %v4580
        %v4774 = vmul.f32 %v294, %v4582
        %v4775 = vmul.f32 %v295, %v4584
        %v4776 = vmul.f32 %v296, %v4586
        %v4777 = vmul.f32 %v297, %v4588
        %v4778 = vmul.f32 %v298, %v4590
        %v4779 = vmul.f32 %v299, %v4592
        %v4780 = vmul.f32 %v300, %v4594
        %v4781 = vmul.f32 %v301, %v4596
        %v4782 = vmul.f32 %v302, %v4598
        %v4783 = vmul.f32 %v303, %v4600
        %v4784 = vmul.f32 %v304, %v4602
        %v4785 = vmul.f32 %v305, %v4604
        %v4786 = vmul.f32 %v306, %v4606
        %v4787 = vmul.f32 %v307, %v4608
        %v4788 = vmul.f32 %v308, %v4610
        %v4789 = vmul.f32 %v309, %v4612
        %v4790 = vmul.f32 %v310, %v4614
        %v4791 = vmul.f32 %v311, %v4616
        %v4792 = vmul.f32 %v312, %v4618
        %v4793 = vmul.f32 %v313, %v4620
        %v4794 = vmul.f32 %v314, %v4622
        %v4795 = vmul.f32 %v315, %v4624
        %v4796 = vmul.f32 %v316, %v4626
        %v4797 = vmul.f32 %v317, %v4628
        %v4798 = vmul.f32 %v318, %v4630
        %v4799 = vmul.f32 %v319, %v4632
        %v4800 = vmul.f32 %v320, %v4634
        %v4801 = vmul.f32 %v321, %v4636
        %v4802 = vmul.f32 %v322, %v4638
        %v4803 = vmul.f32 %v323, %v4640
        %v4804 = vmul.f32 %v324, %v4642
        %v4805 = vmul.f32 %v325, %v4644
        %v4806 = vmul.f32 %v326, %v4646
        %v4807 = vmul.f32 %v327, %v4648
        %v4808 = vmul.f32 %v328, %v4650
        %v4809 = vmul.f32 %v329, %v4652
        %v4810 = vmul.f32 %v330, %v4654
        %v4811 = vmul.f32 %v331, %v4656
        %v4812 = vmul.f32 %v332, %v4658
        %v4813 = vmul.f32 %v333, %v4660
        %v4814 = vmul.f32 %v334, %v4662
        %v4815 = vmul.f32 %v335, %v4664
        %v4816 = vmul.f32 %v336, %v4666
        %v4817 = vmul.f32 %v337, %v4668
        %v4818 = vmul.f32 %v338, %v4670
        %v4819 = vmul.f32 %v339, %v4672
        %v4820 = vmul.f32 %v340, %v4674
        %v4821 = vmul.f32 %v341, %v4676
        %v4822 = vmul.f32 %v342, %v4678
        %v4823 = vmul.f32 %v343, %v4680
        %v4824 = vmul.f32 %v344, %v4682
        %v4825 = vmul.f32 %v345, %v4684
        %v4826 = vmul.f32 %v346, %v4686
        %v4827 = vmul.f32 %v347, %v4688
        %v4828 = vmul.f32 %v348, %v4690
        %v4829 = vmul.f32 %v349, %v4692
        %v4830 = vmul.f32 %v350, %v4694
        %v4831 = vmul.f32 %v351, %v4696
        %v4832 = vmul.f32 %v352, %v4698
        %v4833 = vmul.f32 %v353, %v4700
        %v4834 = vmul.f32 %v354, %v4702
        %v4835 = vmul.f32 %v355, %v4704
        %v4836 = vmul.f32 %v356, %v4706
        %v4837 = vmul.f32 %v357, %v4708
        %v4838 = vmul.f32 %v358, %v4710
        %v4839 = vsub.f32 %v4711, %v2791
        %v4840 = vsub.f32 %v4712, %v2792
        %v4841 = vsub.f32 %v4713, %v2793
        %v4842 = vsub.f32 %v4714, %v2794
        %v4843 = vsub.f32 %v4715, %v2795
        %v4844 = vsub.f32 %v4716, %v2796
        %v4845 = vsub.f32 %v4717, %v2797
        %v4846 = vsub.f32 %v4718, %v2798
        %v4847 = vsub.f32 %v4719, %v2799
        %v4848 = vsub.f32 %v4720, %v2800
        %v4849 = vsub.f32 %v4721, %v2801
        %v4850 = vsub.f32 %v4722, %v2802
        %v4851 = vsub.f32 %v4723, %v2803
        %v4852 = vsub.f32 %v4724, %v2804
        %v4853 = vsub.f32 %v4725, %v2805
        %v4854 = vsub.f32 %v4726, %v2806
        %v4855 = vsub.f32 %v4727, %v2807
        %v4856 = vsub.f32 %v4728, %v2808
        %v4857 = vsub.f32 %v4729, %v2809
        %v4858 = vsub.f32 %v4730, %v2810
        %v4859 = vsub.f32 %v4731, %v2811
        %v4860 = vsub.f32 %v4732, %v2812
        %v4861 = vsub.f32 %v4733, %v2813
        %v4862 = vsub.f32 %v4734, %v2814
        %v4863 = vsub.f32 %v4735, %v2815
        %v4864 = vsub.f32 %v4736, %v2816
        %v4865 = vsub.f32 %v4737, %v2817
        %v4866 = vsub.f32 %v4738, %v2818
        %v4867 = vsub.f32 %v4739, %v2819
        %v4868 = vsub.f32 %v4740, %v2820
        %v4869 = vsub.f32 %v4741, %v2821
        %v4870 = vsub.f32 %v4742, %v2822
        %v4871 = vsub.f32 %v4743, %v2823
        %v4872 = vsub.f32 %v4744, %v2824
        %v4873 = vsub.f32 %v4745, %v2825
        %v4874 = vsub.f32 %v4746, %v2826
        %v4875 = vsub.f32 %v4747, %v2827
        %v4876 = vsub.f32 %v4748, %v2828
        %v4877 = vsub.f32 %v4749, %v2829
        %v4878 = vsub.f32 %v4750, %v2830
        %v4879 = vsub.f32 %v4751, %v2831
        %v4880 = vsub.f32 %v4752, %v2832
        %v4881 = vsub.f32 %v4753, %v2833
        %v4882 = vsub.f32 %v4754, %v2834
        %v4883 = vsub.f32 %v4755, %v2835
        %v4884 = vsub.f32 %v4756, %v2836
        %v4885 = vsub.f32 %v4757, %v2837
        %v4886 = vsub.f32 %v4758, %v2838
        %v4887 = vsub.f32 %v4759, %v2839
        %v4888 = vsub.f32 %v4760, %v2840
        %v4889 = vsub.f32 %v4761, %v2841
        %v4890 = vsub.f32 %v4762, %v2842
        %v4891 = vsub.f32 %v4763, %v2843
        %v4892 = vsub.f32 %v4764, %v2844
        %v4893 = vsub.f32 %v4765, %v2845
        %v4894 = vsub.f32 %v4766, %v2846
        %v4895 = vsub.f32 %v4767, %v2847
        %v4896 = vsub.f32 %v4768, %v2848
        %v4897 = vsub.f32 %v4769, %v2849
        %v4898 = vsub.f32 %v4770, %v2850
        %v4899 = vsub.f32 %v4771, %v2851
        %v4900 = vsub.f32 %v4772, %v2852
        %v4901 = vsub.f32 %v4773, %v2853
        %v4902 = vsub.f32 %v4774, %v2854
        %v4903 = vsub.f32 %v4775, %v2855
        %v4904 = vsub.f32 %v4776, %v2856
        %v4905 = vsub.f32 %v4777, %v2857
        %v4906 = vsub.f32 %v4778, %v2858
        %v4907 = vsub.f32 %v4779, %v2859
        %v4908 = vsub.f32 %v4780, %v2860
        %v4909 = vsub.f32 %v4781, %v2861
        %v4910 = vsub.f32 %v4782, %v2862
        %v4911 = vsub.f32 %v4783, %v2863
        %v4912 = vsub.f32 %v4784, %v2864
        %v4913 = vsub.f32 %v4785, %v2865
        %v4914 = vsub.f32 %v4786, %v2866
        %v4915 = vsub.f32 %v4787, %v2867
        %v4916 = vsub.f32 %v4788, %v2868
        %v4917 = vsub.f32 %v4789, %v2869
        %v4918 = vsub.f32 %v4790, %v2870
        %v4919 = vsub.f32 %v4791, %v2871
        %v4920 = vsub.f32 %v4792, %v2872
        %v4921 = vsub.f32 %v4793, %v2873
        %v4922 = vsub.f32 %v4794, %v2874
        %v4923 = vsub.f32 %v4795, %v2875
        %v4924 = vsub.f32 %v4796, %v2876
        %v4925 = vsub.f32 %v4797, %v2877
        %v4926 = vsub.f32 %v4798, %v2878
        %v4927 = vsub.f32 %v4799, %v2879
        %v4928 = vsub.f32 %v4800, %v2880
        %v4929 = vsub.f32 %v4801, %v2881
        %v4930 = vsub.f32 %v4802, %v2882
        %v4931 = vsub.f32 %v4803, %v2883
        %v4932 = vsub.f32 %v4804, %v2884
        %v4933 = vsub.f32 %v4805, %v2885
        %v4934 = vsub.f32 %v4806, %v2886
        %v4935 = vsub.f32 %v4807, %v2887
        %v4936 = vsub.f32 %v4808, %v2888
        %v4937 = vsub.f32 %v4809, %v2889
        %v4938 = vsub.f32 %v4810, %v2890
        %v4939 = vsub.f32 %v4811, %v2891
        %v4940 = vsub.f32 %v4812, %v2892
        %v4941 = vsub.f32 %v4813, %v2893
        %v4942 = vsub.f32 %v4814, %v2894
        %v4943 = vsub.f32 %v4815, %v2895
        %v4944 = vsub.f32 %v4816, %v2896
        %v4945 = vsub.f32 %v4817, %v2897
        %v4946 = vsub.f32 %v4818, %v2898
        %v4947 = vsub.f32 %v4819, %v2899
        %v4948 = vsub.f32 %v4820, %v2900
        %v4949 = vsub.f32 %v4821, %v2901
        %v4950 = vsub.f32 %v4822, %v2902
        %v4951 = vsub.f32 %v4823, %v2903
        %v4952 = vsub.f32 %v4824, %v2904
        %v4953 = vsub.f32 %v4825, %v2905
        %v4954 = vsub.f32 %v4826, %v2906
        %v4955 = vsub.f32 %v4827, %v2907
        %v4956 = vsub.f32 %v4828, %v2908
        %v4957 = vsub.f32 %v4829, %v2909
        %v4958 = vsub.f32 %v4830, %v2910
        %v4959 = vsub.f32 %v4831, %v2911
        %v4960 = vsub.f32 %v4832, %v2912
        %v4961 = vsub.f32 %v4833, %v2913
        %v4962 = vsub.f32 %v4834, %v2914
        %v4963 = vsub.f32 %v4835, %v2915
        %v4964 = vsub.f32 %v4836, %v2916
        %v4965 = vsub.f32 %v4837, %v2917
        %v4966 = vsub.f32 %v4838, %v2918
        %v4967 = vmul.f32 %v359, %v4456
        %v4968 = vmul.f32 %v360, %v4458
        %v4969 = vmul.f32 %v361, %v4460
        %v4970 = vmul.f32 %v362, %v4462
        %v4971 = vmul.f32 %v363, %v4464
        %v4972 = vmul.f32 %v364, %v4466
        %v4973 = vmul.f32 %v365, %v4468
        %v4974 = vmul.f32 %v366, %v4470
        %v4975 = vmul.f32 %v367, %v4472
        %v4976 = vmul.f32 %v368, %v4474
        %v4977 = vmul.f32 %v369, %v4476
        %v4978 = vmul.f32 %v370, %v4478
        %v4979 = vmul.f32 %v371, %v4480
        %v4980 = vmul.f32 %v372, %v4482
        %v4981 = vmul.f32 %v373, %v4484
        %v4982 = vmul.f32 %v374, %v4486
        %v4983 = vmul.f32 %v375, %v4488
        %v4984 = vmul.f32 %v376, %v4490
        %v4985 = vmul.f32 %v377, %v4492
        %v4986 = vmul.f32 %v378, %v4494
        %v4987 = vmul.f32 %v379, %v4496
        %v4988 = vmul.f32 %v380, %v4498
        %v4989 = vmul.f32 %v381, %v4500
        %v4990 = vmul.f32 %v382, %v4502
        %v4991 = vmul.f32 %v383, %v4504
        %v4992 = vmul.f32 %v384, %v4506
        %v4993 = vmul.f32 %v385, %v4508
        %v4994 = vmul.f32 %v386, %v4510
        %v4995 = vmul.f32 %v387, %v4512
        %v4996 = vmul.f32 %v388, %v4514
        %v4997 = vmul.f32 %v389, %v4516
        %v4998 = vmul.f32 %v390, %v4518
        %v4999 = vmul.f32 %v391, %v4520
        %v5000 = vmul.f32 %v392, %v4522
        %v5001 = vmul.f32 %v393, %v4524
        %v5002 = vmul.f32 %v394, %v4526
        %v5003 = vmul.f32 %v395, %v4528
        %v5004 = vmul.f32 %v396, %v4530
        %v5005 = vmul.f32 %v397, %v4532
        %v5006 = vmul.f32 %v398, %v4534
        %v5007 = vmul.f32 %v399, %v4536
        %v5008 = vmul.f32 %v400, %v4538
        %v5009 = vmul.f32 %v401, %v4540
        %v5010 = vmul.f32 %v402, %v4542
        %v5011 = vmul.f32 %v403, %v4544
        %v5012 = vmul.f32 %v404, %v4546
        %v5013 = vmul.f32 %v405, %v4548
        %v5014 = vmul.f32 %v406, %v4550
        %v5015 = vmul.f32 %v407, %v4552
        %v5016 = vmul.f32 %v408, %v4554
        %v5017 = vmul.f32 %v409, %v4556
        %v5018 = vmul.f32 %v410, %v4558
        %v5019 = vmul.f32 %v411, %v4560
        %v5020 = vmul.f32 %v412, %v4562
        %v5021 = vmul.f32 %v413, %v4564
        %v5022 = vmul.f32 %v414, %v4566
        %v5023 = vmul.f32 %v415, %v4568
        %v5024 = vmul.f32 %v416, %v4570
        %v5025 = vmul.f32 %v417, %v4572
        %v5026 = vmul.f32 %v418, %v4574
        %v5027 = vmul.f32 %v419, %v4576
        %v5028 = vmul.f32 %v420, %v4578
        %v5029 = vmul.f32 %v421, %v4580
        %v5030 = vmul.f32 %v422, %v4582
        %v5031 = vmul.f32 %v423, %v4584
        %v5032 = vmul.f32 %v424, %v4586
        %v5033 = vmul.f32 %v425, %v4588
        %v5034 = vmul.f32 %v426, %v4590
        %v5035 = vmul.f32 %v427, %v4592
        %v5036 = vmul.f32 %v428, %v4594
        %v5037 = vmul.f32 %v429, %v4596
        %v5038 = vmul.f32 %v430, %v4598
        %v5039 = vmul.f32 %v431, %v4600
        %v5040 = vmul.f32 %v432, %v4602
        %v5041 = vmul.f32 %v433, %v4604
        %v5042 = vmul.f32 %v434, %v4606
        %v5043 = vmul.f32 %v435, %v4608
        %v5044 = vmul.f32 %v436, %v4610
        %v5045 = vmul.f32 %v437, %v4612
        %v5046 = vmul.f32 %v438, %v4614
        %v5047 = vmul.f32 %v439, %v4616
        %v5048 = vmul.f32 %v440, %v4618
        %v5049 = vmul.f32 %v441, %v4620
        %v5050 = vmul.f32 %v442, %v4622
        %v5051 = vmul.f32 %v443, %v4624
        %v5052 = vmul.f32 %v444, %v4626
        %v5053 = vmul.f32 %v445, %v4628
        %v5054 = vmul.f32 %v446, %v4630
        %v5055 = vmul.f32 %v447, %v4632
        %v5056 = vmul.f32 %v448, %v4634
        %v5057 = vmul.f32 %v449, %v4636
        %v5058 = vmul.f32 %v450, %v4638
        %v5059 = vmul.f32 %v451, %v4640
        %v5060 = vmul.f32 %v452, %v4642
        %v5061 = vmul.f32 %v453, %v4644
        %v5062 = vmul.f32 %v454, %v4646
        %v5063 = vmul.f32 %v455, %v4648
        %v5064 = vmul.f32 %v456, %v4650
        %v5065 = vmul.f32 %v457, %v4652
        %v5066 = vmul.f32 %v458, %v4654
        %v5067 = vmul.f32 %v459, %v4656
        %v5068 = vmul.f32 %v460, %v4658
        %v5069 = vmul.f32 %v461, %v4660
        %v5070 = vmul.f32 %v462, %v4662
        %v5071 = vmul.f32 %v463, %v4664
        %v5072 = vmul.f32 %v464, %v4666
        %v5073 = vmul.f32 %v465, %v4668
        %v5074 = vmul.f32 %v466, %v4670
        %v5075 = vmul.f32 %v467, %v4672
        %v5076 = vmul.f32 %v468, %v4674
        %v5077 = vmul.f32 %v469, %v4676
        %v5078 = vmul.f32 %v470, %v4678
        %v5079 = vmul.f32 %v471, %v4680
        %v5080 = vmul.f32 %v472, %v4682
        %v5081 = vmul.f32 %v473, %v4684
        %v5082 = vmul.f32 %v474, %v4686
        %v5083 = vmul.f32 %v475, %v4688
        %v5084 = vmul.f32 %v476, %v4690
        %v5085 = vmul.f32 %v477, %v4692
        %v5086 = vmul.f32 %v478, %v4694
        %v5087 = vmul.f32 %v479, %v4696
        %v5088 = vmul.f32 %v480, %v4698
        %v5089 = vmul.f32 %v481, %v4700
        %v5090 = vmul.f32 %v482, %v4702
        %v5091 = vmul.f32 %v483, %v4704
        %v5092 = vmul.f32 %v484, %v4706
        %v5093 = vmul.f32 %v485, %v4708
        %v5094 = vmul.f32 %v486, %v4710
        %v5095 = vsub.f32 %v4967, %v4199
        %v5096 = vsub.f32 %v4968, %v4200
        %v5097 = vsub.f32 %v4969, %v4201
        %v5098 = vsub.f32 %v4970, %v4202
        %v5099 = vsub.f32 %v4971, %v4203
        %v5100 = vsub.f32 %v4972, %v4204
        %v5101 = vsub.f32 %v4973, %v4205
        %v5102 = vsub.f32 %v4974, %v4206
        %v5103 = vsub.f32 %v4975, %v4207
        %v5104 = vsub.f32 %v4976, %v4208
        %v5105 = vsub.f32 %v4977, %v4209
        %v5106 = vsub.f32 %v4978, %v4210
        %v5107 = vsub.f32 %v4979, %v4211
        %v5108 = vsub.f32 %v4980, %v4212
        %v5109 = vsub.f32 %v4981, %v4213
        %v5110 = vsub.f32 %v4982, %v4214
        %v5111 = vsub.f32 %v4983, %v4215
        %v5112 = vsub.f32 %v4984, %v4216
        %v5113 = vsub.f32 %v4985, %v4217
        %v5114 = vsub.f32 %v4986, %v4218
        %v5115 = vsub.f32 %v4987, %v4219
        %v5116 = vsub.f32 %v4988, %v4220
        %v5117 = vsub.f32 %v4989, %v4221
        %v5118 = vsub.f32 %v4990, %v4222
        %v5119 = vsub.f32 %v4991, %v4223
        %v5120 = vsub.f32 %v4992, %v4224
        %v5121 = vsub.f32 %v4993, %v4225
        %v5122 = vsub.f32 %v4994, %v4226
        %v5123 = vsub.f32 %v4995, %v4227
        %v5124 = vsub.f32 %v4996, %v4228
        %v5125 = vsub.f32 %v4997, %v4229
        %v5126 = vsub.f32 %v4998, %v4230
        %v5127 = vsub.f32 %v4999, %v4231
        %v5128 = vsub.f32 %v5000, %v4232
        %v5129 = vsub.f32 %v5001, %v4233
        %v5130 = vsub.f32 %v5002, %v4234
        %v5131 = vsub.f32 %v5003, %v4235
        %v5132 = vsub.f32 %v5004, %v4236
        %v5133 = vsub.f32 %v5005, %v4237
        %v5134 = vsub.f32 %v5006, %v4238
        %v5135 = vsub.f32 %v5007, %v4239
        %v5136 = vsub.f32 %v5008, %v4240
        %v5137 = vsub.f32 %v5009, %v4241
        %v5138 = vsub.f32 %v5010, %v4242
        %v5139 = vsub.f32 %v5011, %v4243
        %v5140 = vsub.f32 %v5012, %v4244
        %v5141 = vsub.f32 %v5013, %v4245
        %v5142 = vsub.f32 %v5014, %v4246
        %v5143 = vsub.f32 %v5015, %v4247
        %v5144 = vsub.f32 %v5016, %v4248
        %v5145 = vsub.f32 %v5017, %v4249
        %v5146 = vsub.f32 %v5018, %v4250
        %v5147 = vsub.f32 %v5019, %v4251
        %v5148 = vsub.f32 %v5020, %v4252
        %v5149 = vsub.f32 %v5021, %v4253
        %v5150 = vsub.f32 %v5022, %v4254
        %v5151 = vsub.f32 %v5023, %v4255
        %v5152 = vsub.f32 %v5024, %v4256
        %v5153 = vsub.f32 %v5025, %v4257
        %v5154 = vsub.f32 %v5026, %v4258
        %v5155 = vsub.f32 %v5027, %v4259
        %v5156 = vsub.f32 %v5028, %v4260
        %v5157 = vsub.f32 %v5029, %v4261
        %v5158 = vsub.f32 %v5030, %v4262
        %v5159 = vsub.f32 %v5031, %v4263
        %v5160 = vsub.f32 %v5032, %v4264
        %v5161 = vsub.f32 %v5033, %v4265
        %v5162 = vsub.f32 %v5034, %v4266
        %v5163 = vsub.f32 %v5035, %v4267
        %v5164 = vsub.f32 %v5036, %v4268
        %v5165 = vsub.f32 %v5037, %v4269
        %v5166 = vsub.f32 %v5038, %v4270
        %v5167 = vsub.f32 %v5039, %v4271
        %v5168 = vsub.f32 %v5040, %v4272
        %v5169 = vsub.f32 %v5041, %v4273
        %v5170 = vsub.f32 %v5042, %v4274
        %v5171 = vsub.f32 %v5043, %v4275
        %v5172 = vsub.f32 %v5044, %v4276
        %v5173 = vsub.f32 %v5045, %v4277
        %v5174 = vsub.f32 %v5046, %v4278
        %v5175 = vsub.f32 %v5047, %v4279
        %v5176 = vsub.f32 %v5048, %v4280
        %v5177 = vsub.f32 %v5049, %v4281
        %v5178 = vsub.f32 %v5050, %v4282
        %v5179 = vsub.f32 %v5051, %v4283
        %v5180 = vsub.f32 %v5052, %v4284
        %v5181 = vsub.f32 %v5053, %v4285
        %v5182 = vsub.f32 %v5054, %v4286
        %v5183 = vsub.f32 %v5055, %v4287
        %v5184 = vsub.f32 %v5056, %v4288
        %v5185 = vsub.f32 %v5057, %v4289
        %v5186 = vsub.f32 %v5058, %v4290
        %v5187 = vsub.f32 %v5059, %v4291
        %v5188 = vsub.f32 %v5060, %v4292
        %v5189 = vsub.f32 %v5061, %v4293
        %v5190 = vsub.f32 %v5062, %v4294
        %v5191 = vsub.f32 %v5063, %v4295
        %v5192 = vsub.f32 %v5064, %v4296
        %v5193 = vsub.f32 %v5065, %v4297
        %v5194 = vsub.f32 %v5066, %v4298
        %v5195 = vsub.f32 %v5067, %v4299
        %v5196 = vsub.f32 %v5068, %v4300
        %v5197 = vsub.f32 %v5069, %v4301
        %v5198 = vsub.f32 %v5070, %v4302
        %v5199 = vsub.f32 %v5071, %v4303
        %v5200 = vsub.f32 %v5072, %v4304
        %v5201 = vsub.f32 %v5073, %v4305
        %v5202 = vsub.f32 %v5074, %v4306
        %v5203 = vsub.f32 %v5075, %v4307
        %v5204 = vsub.f32 %v5076, %v4308
        %v5205 = vsub.f32 %v5077, %v4309
        %v5206 = vsub.f32 %v5078, %v4310
        %v5207 = vsub.f32 %v5079, %v4311
        %v5208 = vsub.f32 %v5080, %v4312
        %v5209 = vsub.f32 %v5081, %v4313
        %v5210 = vsub.f32 %v5082, %v4314
        %v5211 = vsub.f32 %v5083, %v4315
        %v5212 = vsub.f32 %v5084, %v4316
        %v5213 = vsub.f32 %v5085, %v4317
        %v5214 = vsub.f32 %v5086, %v4318
        %v5215 = vsub.f32 %v5087, %v4319
        %v5216 = vsub.f32 %v5088, %v4320
        %v5217 = vsub.f32 %v5089, %v4321
        %v5218 = vsub.f32 %v5090, %v4322
        %v5219 = vsub.f32 %v5091, %v4323
        %v5220 = vsub.f32 %v5092, %v4324
        %v5221 = vsub.f32 %v5093, %v4325
        %v5222 = vsub.f32 %v5094, %v4326
        %v5223 = vld [vmem:[%s219] sm:$0xff]
        %v5224 = vadd.f32 %v4839, %v4840
        %v5225 = vadd.f32 %v5224, %v4841
        %v5226 = vadd.f32 %v5225, %v4842
        %v5227 = vadd.f32 %v5226, %v4843
        %v5228 = vadd.f32 %v5227, %v4844
        %v5229 = vadd.f32 %v5228, %v4845
        %v5230 = vadd.f32 %v5229, %v4846
        %v5231 = vadd.f32 %v5230, %v4847
        %v5232 = vadd.f32 %v5231, %v4848
        %v5233 = vadd.f32 %v5232, %v4849
        %v5234 = vadd.f32 %v5233, %v4850
        %v5235 = vadd.f32 %v5234, %v4851
        %v5236 = vadd.f32 %v5235, %v4852
        %v5237 = vadd.f32 %v5236, %v4853
        %v5238 = vadd.f32 %v5237, %v4854
        %v5239 = vadd.f32 %v5238, %v4855
        %v5240 = vadd.f32 %v5239, %v4856
        %v5241 = vadd.f32 %v5240, %v4857
        %v5242 = vadd.f32 %v5241, %v4858
        %v5243 = vadd.f32 %v5242, %v4859
        %v5244 = vadd.f32 %v5243, %v4860
        %v5245 = vadd.f32 %v5244, %v4861
        %v5246 = vadd.f32 %v5245, %v4862
        %v5247 = vadd.f32 %v5246, %v4863
        %v5248 = vadd.f32 %v5247, %v4864
        %v5249 = vadd.f32 %v5248, %v4865
        %v5250 = vadd.f32 %v5249, %v4866
        %v5251 = vadd.f32 %v5250, %v4867
        %v5252 = vadd.f32 %v5251, %v4868
        %v5253 = vadd.f32 %v5252, %v4869
        %v5254 = vadd.f32 %v5253, %v4870
        %v5255 = vadd.f32 %v5254, %v4871
        %v5256 = vadd.f32 %v5255, %v4872
        %v5257 = vadd.f32 %v5256, %v4873
        %v5258 = vadd.f32 %v5257, %v4874
        %v5259 = vadd.f32 %v5258, %v4875
        %v5260 = vadd.f32 %v5259, %v4876
        %v5261 = vadd.f32 %v5260, %v4877
        %v5262 = vadd.f32 %v5261, %v4878
        %v5263 = vadd.f32 %v5262, %v4879
        %v5264 = vadd.f32 %v5263, %v4880
        %v5265 = vadd.f32 %v5264, %v4881
        %v5266 = vadd.f32 %v5265, %v4882
        %v5267 = vadd.f32 %v5266, %v4883
        %v5268 = vadd.f32 %v5267, %v4884
        %v5269 = vadd.f32 %v5268, %v4885
        %v5270 = vadd.f32 %v5269, %v4886
        %v5271 = vadd.f32 %v5270, %v4887
        %v5272 = vadd.f32 %v5271, %v4888
        %v5273 = vadd.f32 %v5272, %v4889
        %v5274 = vadd.f32 %v5273, %v4890
        %v5275 = vadd.f32 %v5274, %v4891
        %v5276 = vadd.f32 %v5275, %v4892
        %v5277 = vadd.f32 %v5276, %v4893
        %v5278 = vadd.f32 %v5277, %v4894
        %v5279 = vadd.f32 %v5278, %v4895
        %v5280 = vadd.f32 %v5279, %v4896
        %v5281 = vadd.f32 %v5280, %v4897
        %v5282 = vadd.f32 %v5281, %v4898
        %v5283 = vadd.f32 %v5282, %v4899
        %v5284 = vadd.f32 %v5283, %v4900
        %v5285 = vadd.f32 %v5284, %v4901
        %v5286 = vadd.f32 %v5285, %v4902
        %v5287 = vadd.f32 %v5286, %v4903
        %v5288 = vadd.f32 %v5287, %v4904
        %v5289 = vadd.f32 %v5288, %v4905
        %v5290 = vadd.f32 %v5289, %v4906
        %v5291 = vadd.f32 %v5290, %v4907
        %v5292 = vadd.f32 %v5291, %v4908
        %v5293 = vadd.f32 %v5292, %v4909
        %v5294 = vadd.f32 %v5293, %v4910
        %v5295 = vadd.f32 %v5294, %v4911
        %v5296 = vadd.f32 %v5295, %v4912
        %v5297 = vadd.f32 %v5296, %v4913
        %v5298 = vadd.f32 %v5297, %v4914
        %v5299 = vadd.f32 %v5298, %v4915
        %v5300 = vadd.f32 %v5299, %v4916
        %v5301 = vadd.f32 %v5300, %v4917
        %v5302 = vadd.f32 %v5301, %v4918
        %v5303 = vadd.f32 %v5302, %v4919
        %v5304 = vadd.f32 %v5303, %v4920
        %v5305 = vadd.f32 %v5304, %v4921
        %v5306 = vadd.f32 %v5305, %v4922
        %v5307 = vadd.f32 %v5306, %v4923
        %v5308 = vadd.f32 %v5307, %v4924
        %v5309 = vadd.f32 %v5308, %v4925
        %v5310 = vadd.f32 %v5309, %v4926
        %v5311 = vadd.f32 %v5310, %v4927
        %v5312 = vadd.f32 %v5311, %v4928
        %v5313 = vadd.f32 %v5312, %v4929
        %v5314 = vadd.f32 %v5313, %v4930
        %v5315 = vadd.f32 %v5314, %v4931
        %v5316 = vadd.f32 %v5315, %v4932
        %v5317 = vadd.f32 %v5316, %v4933
        %v5318 = vadd.f32 %v5317, %v4934
        %v5319 = vadd.f32 %v5318, %v4935
        %v5320 = vadd.f32 %v5319, %v4936
        %v5321 = vadd.f32 %v5320, %v4937
        %v5322 = vadd.f32 %v5321, %v4938
        %v5323 = vadd.f32 %v5322, %v4939
        %v5324 = vadd.f32 %v5323, %v4940
        %v5325 = vadd.f32 %v5324, %v4941
        %v5326 = vadd.f32 %v5325, %v4942
        %v5327 = vadd.f32 %v5326, %v4943
        %v5328 = vadd.f32 %v5327, %v4944
        %v5329 = vadd.f32 %v5328, %v4945
        %v5330 = vadd.f32 %v5329, %v4946
        %v5331 = vadd.f32 %v5330, %v4947
        %v5332 = vadd.f32 %v5331, %v4948
        %v5333 = vadd.f32 %v5332, %v4949
        %v5334 = vadd.f32 %v5333, %v4950
        %v5335 = vadd.f32 %v5334, %v4951
        %v5336 = vadd.f32 %v5335, %v4952
        %v5337 = vadd.f32 %v5336, %v4953
        %v5338 = vadd.f32 %v5337, %v4954
        %v5339 = vadd.f32 %v5338, %v4955
        %v5340 = vadd.f32 %v5339, %v4956
        %v5341 = vadd.f32 %v5340, %v4957
        %v5342 = vadd.f32 %v5341, %v4958
        %v5343 = vadd.f32 %v5342, %v4959
        %v5344 = vadd.f32 %v5343, %v4960
        %v5345 = vadd.f32 %v5344, %v4961
        %v5346 = vadd.f32 %v5345, %v4962
        %v5347 = vadd.f32 %v5346, %v4963
        %v5348 = vadd.f32 %v5347, %v4964
        %v5349 = vadd.f32 %v5348, %v4965
        %v5350 = vadd.f32 %v5349, %v4966
        %v5351 = vadd.f32 %v5223, %v5350
        %5352 = vst [vmem:[%s219] sm:$0xff] %v5351
        %s5353 = scalar_lea.vmem %s219, 8 [#allocation7]
        %v5354 = vld [vmem:[%s5353] sm:$0xff]
        %v5355 = vadd.f32 %v5095, %v5096
        %v5356 = vadd.f32 %v5355, %v5097
        %v5357 = vadd.f32 %v5356, %v5098
        %v5358 = vadd.f32 %v5357, %v5099
        %v5359 = vadd.f32 %v5358, %v5100
        %v5360 = vadd.f32 %v5359, %v5101
        %v5361 = vadd.f32 %v5360, %v5102
        %v5362 = vadd.f32 %v5361, %v5103
        %v5363 = vadd.f32 %v5362, %v5104
        %v5364 = vadd.f32 %v5363, %v5105
        %v5365 = vadd.f32 %v5364, %v5106
        %v5366 = vadd.f32 %v5365, %v5107
        %v5367 = vadd.f32 %v5366, %v5108
        %v5368 = vadd.f32 %v5367, %v5109
        %v5369 = vadd.f32 %v5368, %v5110
        %v5370 = vadd.f32 %v5369, %v5111
        %v5371 = vadd.f32 %v5370, %v5112
        %v5372 = vadd.f32 %v5371, %v5113
        %v5373 = vadd.f32 %v5372, %v5114
        %v5374 = vadd.f32 %v5373, %v5115
        %v5375 = vadd.f32 %v5374, %v5116
        %v5376 = vadd.f32 %v5375, %v5117
        %v5377 = vadd.f32 %v5376, %v5118
        %v5378 = vadd.f32 %v5377, %v5119
        %v5379 = vadd.f32 %v5378, %v5120
        %v5380 = vadd.f32 %v5379, %v5121
        %v5381 = vadd.f32 %v5380, %v5122
        %v5382 = vadd.f32 %v5381, %v5123
        %v5383 = vadd.f32 %v5382, %v5124
        %v5384 = vadd.f32 %v5383, %v5125
        %v5385 = vadd.f32 %v5384, %v5126
        %v5386 = vadd.f32 %v5385, %v5127
        %v5387 = vadd.f32 %v5386, %v5128
        %v5388 = vadd.f32 %v5387, %v5129
        %v5389 = vadd.f32 %v5388, %v5130
        %v5390 = vadd.f32 %v5389, %v5131
        %v5391 = vadd.f32 %v5390, %v5132
        %v5392 = vadd.f32 %v5391, %v5133
        %v5393 = vadd.f32 %v5392, %v5134
        %v5394 = vadd.f32 %v5393, %v5135
        %v5395 = vadd.f32 %v5394, %v5136
        %v5396 = vadd.f32 %v5395, %v5137
        %v5397 = vadd.f32 %v5396, %v5138
        %v5398 = vadd.f32 %v5397, %v5139
        %v5399 = vadd.f32 %v5398, %v5140
        %v5400 = vadd.f32 %v5399, %v5141
        %v5401 = vadd.f32 %v5400, %v5142
        %v5402 = vadd.f32 %v5401, %v5143
        %v5403 = vadd.f32 %v5402, %v5144
        %v5404 = vadd.f32 %v5403, %v5145
        %v5405 = vadd.f32 %v5404, %v5146
        %v5406 = vadd.f32 %v5405, %v5147
        %v5407 = vadd.f32 %v5406, %v5148
        %v5408 = vadd.f32 %v5407, %v5149
        %v5409 = vadd.f32 %v5408, %v5150
        %v5410 = vadd.f32 %v5409, %v5151
        %v5411 = vadd.f32 %v5410, %v5152
        %v5412 = vadd.f32 %v5411, %v5153
        %v5413 = vadd.f32 %v5412, %v5154
        %v5414 = vadd.f32 %v5413, %v5155
        %v5415 = vadd.f32 %v5414, %v5156
        %v5416 = vadd.f32 %v5415, %v5157
        %v5417 = vadd.f32 %v5416, %v5158
        %v5418 = vadd.f32 %v5417, %v5159
        %v5419 = vadd.f32 %v5418, %v5160
        %v5420 = vadd.f32 %v5419, %v5161
        %v5421 = vadd.f32 %v5420, %v5162
        %v5422 = vadd.f32 %v5421, %v5163
        %v5423 = vadd.f32 %v5422, %v5164
        %v5424 = vadd.f32 %v5423, %v5165
        %v5425 = vadd.f32 %v5424, %v5166
        %v5426 = vadd.f32 %v5425, %v5167
        %v5427 = vadd.f32 %v5426, %v5168
        %v5428 = vadd.f32 %v5427, %v5169
        %v5429 = vadd.f32 %v5428, %v5170
        %v5430 = vadd.f32 %v5429, %v5171
        %v5431 = vadd.f32 %v5430, %v5172
        %v5432 = vadd.f32 %v5431, %v5173
        %v5433 = vadd.f32 %v5432, %v5174
        %v5434 = vadd.f32 %v5433, %v5175
        %v5435 = vadd.f32 %v5434, %v5176
        %v5436 = vadd.f32 %v5435, %v5177
        %v5437 = vadd.f32 %v5436, %v5178
        %v5438 = vadd.f32 %v5437, %v5179
        %v5439 = vadd.f32 %v5438, %v5180
        %v5440 = vadd.f32 %v5439, %v5181
        %v5441 = vadd.f32 %v5440, %v5182
        %v5442 = vadd.f32 %v5441, %v5183
        %v5443 = vadd.f32 %v5442, %v5184
        %v5444 = vadd.f32 %v5443, %v5185
        %v5445 = vadd.f32 %v5444, %v5186
        %v5446 = vadd.f32 %v5445, %v5187
        %v5447 = vadd.f32 %v5446, %v5188
        %v5448 = vadd.f32 %v5447, %v5189
        %v5449 = vadd.f32 %v5448, %v5190
        %v5450 = vadd.f32 %v5449, %v5191
        %v5451 = vadd.f32 %v5450, %v5192
        %v5452 = vadd.f32 %v5451, %v5193
        %v5453 = vadd.f32 %v5452, %v5194
        %v5454 = vadd.f32 %v5453, %v5195
        %v5455 = vadd.f32 %v5454, %v5196
        %v5456 = vadd.f32 %v5455, %v5197
        %v5457 = vadd.f32 %v5456, %v5198
        %v5458 = vadd.f32 %v5457, %v5199
        %v5459 = vadd.f32 %v5458, %v5200
        %v5460 = vadd.f32 %v5459, %v5201
        %v5461 = vadd.f32 %v5460, %v5202
        %v5462 = vadd.f32 %v5461, %v5203
        %v5463 = vadd.f32 %v5462, %v5204
        %v5464 = vadd.f32 %v5463, %v5205
        %v5465 = vadd.f32 %v5464, %v5206
        %v5466 = vadd.f32 %v5465, %v5207
        %v5467 = vadd.f32 %v5466, %v5208
        %v5468 = vadd.f32 %v5467, %v5209
        %v5469 = vadd.f32 %v5468, %v5210
        %v5470 = vadd.f32 %v5469, %v5211
        %v5471 = vadd.f32 %v5470, %v5212
        %v5472 = vadd.f32 %v5471, %v5213
        %v5473 = vadd.f32 %v5472, %v5214
        %v5474 = vadd.f32 %v5473, %v5215
        %v5475 = vadd.f32 %v5474, %v5216
        %v5476 = vadd.f32 %v5475, %v5217
        %v5477 = vadd.f32 %v5476, %v5218
        %v5478 = vadd.f32 %v5477, %v5219
        %v5479 = vadd.f32 %v5478, %v5220
        %v5480 = vadd.f32 %v5479, %v5221
        %v5481 = vadd.f32 %v5480, %v5222
        %v5482 = vadd.f32 %v5354, %v5481
        %5483 = vst [vmem:[%s5353] sm:$0xff] %v5482
        %s5484 = sand.u32 %s98, 1
        %s5485 = scalar_lea.sflag [#allocation4], %s5484
        %s5486 = sand.u32 %s98, 1
        %s5487 = smul.addr %s5486, 16
        %s5488 = scalar_lea.vmem [#allocation7], %s5487
        // Predicated region
        $region41: #{tpu_custom_call.1} parent=27 // pred_check
          %p5489 = pneg %p108
        $region42: #{tpu_custom_call.1} parent=27 // pred_check_branch
          %5491 = sbr.rel (%p5489) target = $region44
        $region43: #{tpu_custom_call.1} parent=27 // pred_region
          %s5492 = smul.u32 2, %s26
          %s5494 = ssub.s32 256, 256
          %5495 = vsyncadd %s5485, %s5494
          %s5496 = smul.addr %s5492, 128
          %s5497 = scalar_lea.hbm %s2, %s5496
          %s5498 = sshll.u32 %s5488, 4
          %s5499 = int_to_ptr.vmem [resolvable:$true] %s5498
          %5504 = dma.vmem_to_hbm [thread:$0]  %s5499, 256, %s5497, %s5485, 128, 128, 8
        $region44: #{tpu_custom_call.1} parent=27 // pred_fallthru
          _
      $region28: #{tpu_custom_call.1} parent=5 // pred_fallthru
        _
      %p5505 = scmp.le.s32.totalorder 2, %s17
      // Predicated region
      $region45: #{tpu_custom_call.1} parent=5 // pred_check
        %p5506 = pneg %p5505
      $region46: #{tpu_custom_call.1} parent=5 // pred_check_branch
        %5508 = sbr.rel (%p5506) target = $region48
      $region47: #{tpu_custom_call.1} parent=5 // pred_region
        %s5509 = ssub.s32 %s17, 2
        // Predicated region
        $region49: #{tpu_custom_call.1} parent=47 // pred_check
          %p5510 = pneg %p114
        $region50: #{tpu_custom_call.1} parent=47 // pred_check_branch
          %5512 = sbr.rel (%p5510) target = $region52
        $region51: #{tpu_custom_call.1} parent=47 // pred_region
          %s5513 = sand.u32 %s99, 1
          %s5514 = scalar_lea.sflag [#allocation4], %s5513
          %s5515 = sand.u32 %s99, 1
          %s5516 = smul.addr %s5515, 16
          %s5517 = scalar_lea.vmem [#allocation7], %s5516
          %5518 = dma.done %s5514, 256
        $region52: #{tpu_custom_call.1} parent=47 // pred_fallthru
          _
      $region48: #{tpu_custom_call.1} parent=5 // pred_fallthru
        _
    $region6: #{tpu_custom_call.1} parent=1 // loop_footer
      %s21 = sadd.s32 1, %s17
    $region7: #{tpu_custom_call.1} parent=1 // loop_footer_branch
      %16 = sbr.rel target = $region3
    $region8: #{tpu_custom_call.1} parent=1 // loop_exit
      _
    %5519 = vsyncpa [#allocation3], 1
    %s5520 = scalar_lea.sflag [#allocation3], 1
    %5521 = vsyncpa %s5520, 1
    %5522 = vsyncpa [#allocation6], 1
    %s5523 = scalar_lea.sflag [#allocation6], 1
    %5524 = vsyncpa %s5523, 1
    %5525 = vsyncpa [#allocation4], 1
    %s5526 = scalar_lea.sflag [#allocation4], 1
    %5527 = vsyncpa %s5526, 1

</llo_original>
